<compile_context>
chip_gen: v7x
topology: tpu7x:2x2x1
jax: 0.10.0
libtpu: 0.0.40
codegen_flags: <defaults>
</compile_context>

<pallas_src>
import functools
import math

import jax
import jax.numpy as jnp
from jax.experimental import pallas as pl
from jax.experimental.pallas import tpu as pltpu


# ---------------------------------------------------------------------------
# Fused kernel: grid = (batch, q-tile).
#   qi == 0 : GroupNorm (two-pass centered variance) + one fused (HW,Cp)x(Cp,3Cp)
#             bf16 qkv matmul into per-batch VMEM scratch (q pre-scaled by 1/sqrt(C)).
#   every qi: (tq, HW) scores vs the whole VMEM-resident k, plain softmax, p@v,
#             out projection, residual with xn, lane-dense (tq, Cp) store.
# ---------------------------------------------------------------------------
def fused_attention_kernel(x_ref, m_ref, gnw_ref, gnb_ref, wqkv_ref, bqkv_ref,
                           wo_ref, bo_ref, o_ref,
                           xn_sc, q_sc, k_sc, v_sc,
                           *, eps, cp, hw, hw_p, tq, exp_dtype):
    qi = pl.program_id(1)

    # ---- once per batch element: GroupNorm + fused qkv projection -> VMEM scratch ----
    @pl.when(qi == 0)
    def _():
        x = x_ref[0].astype(jnp.float32)                      # (hw_p, cp)
        if hw_p != hw:
            row = jax.lax.broadcasted_iota(jnp.int32, (hw_p, 1), 0)
            valid_row = row < hw
            x = jnp.where(valid_row, x, 0.0)

        M = m_ref[...]                                        # (cp, cp) group-avg matrix
        # Two-pass centered variance; divide by the *true* hw (padded rows are zero),
        # M zeroes padded channels so padding never pollutes group stats.
        mean_c = jnp.sum(x, axis=0, keepdims=True) * (1.0 / hw)
        g_mean = jnp.dot(mean_c, M, preferred_element_type=jnp.float32)
        xc = x - g_mean
        xc_v = jnp.where(valid_row, xc, 0.0) if hw_p != hw else xc
        var_c = jnp.sum(xc_v * xc_v, axis=0, keepdims=True) * (1.0 / hw)
        g_var = jnp.dot(var_c, M, preferred_element_type=jnp.float32)
        xn = xc * jax.lax.rsqrt(g_var + eps) * gnw_ref[...] + gnb_ref[...]
        xn_sc[...] = xn                                       # f32 residual (VMEM only)

        # One fused bf16 MXU matmul for q|k|v; 1/sqrt(C) already folded into q weights.
        qkv = jnp.dot(xn.astype(jnp.bfloat16), wqkv_ref[...],
                      preferred_element_type=jnp.float32) + bqkv_ref[...]
        q_sc[...] = qkv[:, :cp].astype(jnp.bfloat16)
        k_sc[...] = qkv[:, cp:2 * cp].astype(jnp.bfloat16)
        v_sc[...] = qkv[:, 2 * cp:].astype(jnp.bfloat16)

    # ---- per q tile: full-kv softmax attention + out projection + residual ----
    start = pl.multiple_of(qi * tq, tq)
    q = q_sc[pl.ds(start, tq), :]                             # (tq, cp) bf16, pre-scaled
    k = k_sc[...]                                             # (hw_p, cp) bf16
    v = v_sc[...]                                             # (hw_p, cp) bf16

    s = jax.lax.dot_general(q, k, (((1,), (1,)), ((), ())),
                            preferred_element_type=jnp.float32)   # (tq, hw_p)
    if hw_p != hw:
        col = jax.lax.broadcasted_iota(jnp.int32, (tq, hw_p), 1)
        s = jnp.where(col < hw, s, -jnp.inf)                  # mask padded kv columns

    m = jnp.max(s, axis=-1, keepdims=True)
    p = jnp.exp((s - m).astype(exp_dtype))                    # bf16 EUP on v6e/v7x
    l = jnp.sum(p.astype(jnp.float32), axis=-1, keepdims=True)
    pv = jnp.dot(p.astype(jnp.bfloat16), v, preferred_element_type=jnp.float32)
    out = pv * pl.reciprocal(l, approx=False)                 # exact; once per q tile

    proj = jnp.dot(out.astype(jnp.bfloat16), wo_ref[...],
                   preferred_element_type=jnp.float32) + bo_ref[...]
    o_ref[0] = (proj + xn_sc[pl.ds(start, tq), :]).astype(o_ref.dtype)


def _pick_tile(n, candidates):
    for t in candidates:
        if n % t == 0:
            return t
    return n


def _exp_dtype():
    # bf16 EUP exists on v6e/v7x (≈2x exp throughput); keep f32 on v5e and older, or
    # if the device kind cannot be determined.
    try:
        kind = jax.devices()[0].device_kind.lower()
    except Exception:
        return jnp.float32
    if any(g in kind for g in ("v2", "v3", "v4", "v5")):
        return jnp.float32
    return jnp.bfloat16


def attention_block(x_nchw, params):
    b, c, h, w = x_nchw.shape
    hw = h * w
    groups = min(8, c)
    cs = c // groups
    eps = 1e-5
    scale = 1.0 / math.sqrt(c)

    # Lane-dense channel padding and 8/128-aligned spatial padding.
    cp = ((max(c, 128) + 127) // 128) * 128
    pad_c = cp - c
    hw_p = ((hw + 127) // 128) * 128
    pad_hw = hw_p - hw

    tq = _pick_tile(hw_p, (512, 256, 128))     # hw_p % 128 == 0, so this always hits
    nq = hw_p // tq

    x = jnp.transpose(x_nchw, (0, 2, 3, 1)).reshape(b, hw, c)
    x = jnp.pad(x, ((0, 0), (0, pad_hw), (0, pad_c)))

    # Group-averaging matrix; rows/cols for padded channels are zero (padding mask).
    gid = jnp.concatenate([jnp.arange(c, dtype=jnp.int32) // cs,
                           jnp.full((pad_c,), -1, jnp.int32)])
    valid = gid >= 0
    M = ((gid[:, None] == gid[None, :]) & valid[:, None] & valid[None, :]
         ).astype(jnp.float32) / float(cs)

    gnw = jnp.pad(params["gn_w"], (0, pad_c)).reshape(1, cp)
    gnb = jnp.pad(params["gn_b"], (0, pad_c)).reshape(1, cp)

    # 1x1 convs -> (in, out) matmul weights; fold the 1/sqrt(C) attention scale into
    # the q projection so the kernel never does an HW^2 scale multiply.
    wqkv_oc = params["to_qkv_w"][:, :, 0, 0]                  # (3c, c)
    bqkv_o = params["to_qkv_b"]                               # (3c,)
    wq = wqkv_oc[:c].T * scale
    wk = wqkv_oc[c:2 * c].T
    wv = wqkv_oc[2 * c:].T
    bq = bqkv_o[:c] * scale
    bk = bqkv_o[c:2 * c]
    bv = bqkv_o[2 * c:]

    pad2 = lambda m_: jnp.pad(m_, ((0, pad_c), (0, pad_c)))
    pad1 = lambda v_: jnp.pad(v_, (0, pad_c)).reshape(1, cp)

    wqkv = jnp.concatenate([pad2(wq), pad2(wk), pad2(wv)], axis=1
                           ).astype(jnp.bfloat16)             # (cp, 3cp) bf16
    bqkv = jnp.concatenate([pad1(bq), pad1(bk), pad1(bv)], axis=1)  # (1, 3cp) f32
    wo = pad2(params["to_out_w"][:, :, 0, 0].T).astype(jnp.bfloat16)
    bo = pad1(params["to_out_b"])

    # Explicit VMEM budget (review: don't rely on the 16/32 MiB scoped defaults).
    vmem_est = (
        2 * hw_p * cp * 4            # x input block, double-buffered
        + hw_p * cp * 4              # xn scratch (f32)
        + 3 * hw_p * cp * 2          # q/k/v scratch (bf16)
        + 2 * tq * cp * 4            # output block, double-buffered
        + hw_p * 3 * cp * 4          # qkv f32 temporary (qi == 0)
        + tq * hw_p * 6              # score (f32) + p (bf16) temporaries
        + 2 * (cp * cp * 4 + 4 * cp * cp * 2 + 64 * cp)   # M, wqkv, wo, small vectors
    )
    vmem_limit = int(min(max(vmem_est * 3 // 2, 32 * 1024 * 1024),
                         64 * 1024 * 1024))

    const = lambda shp: pl.BlockSpec(shp, lambda bi, qi: (0, 0))
    out = pl.pallas_call(
        functools.partial(fused_attention_kernel, eps=eps, cp=cp, hw=hw,
                          hw_p=hw_p, tq=tq, exp_dtype=_exp_dtype()),
        out_shape=jax.ShapeDtypeStruct((b, hw_p, cp), jnp.float32),
        grid=(b, nq),
        in_specs=[
            pl.BlockSpec((1, hw_p, cp), lambda bi, qi: (bi, 0, 0)),  # x (per batch)
            const((cp, cp)),                                         # group-avg matrix
            const((1, cp)), const((1, cp)),                          # gn gamma, beta
            const((cp, 3 * cp)), const((1, 3 * cp)),                 # fused wqkv, bqkv
            const((cp, cp)), const((1, cp)),                         # wo, bo
        ],
        out_specs=pl.BlockSpec((1, tq, cp), lambda bi, qi: (bi, qi, 0)),
        scratch_shapes=[
            pltpu.VMEM((hw_p, cp), jnp.float32),    # xn (residual)
            pltpu.VMEM((hw_p, cp), jnp.bfloat16),   # q (pre-scaled)
            pltpu.VMEM((hw_p, cp), jnp.bfloat16),   # k
            pltpu.VMEM((hw_p, cp), jnp.bfloat16),   # v
        ],
        compiler_params=pltpu.CompilerParams(
            dimension_semantics=("parallel", "arbitrary"),
            vmem_limit_bytes=vmem_limit),
    )(x, M, gnw, gnb, wqkv, bqkv, wo, bo)

    out = out[:, :hw, :c]                               # drop spatial/channel padding
    return out.reshape(b, h, w, c).transpose(0, 3, 1, 2)


def attention_block_reference(x_nchw, params):
    """Pure-JAX reference matching the PyTorch module."""
    b, c, h, w = x_nchw.shape
    g = min(8, c)
    xg = x_nchw.reshape(b, g, c // g, h, w)
    mean = xg.mean(axis=(2, 3, 4), keepdims=True)
    var = ((xg - mean) ** 2).mean(axis=(2, 3, 4), keepdims=True)
    xn = ((xg - mean) / jnp.sqrt(var + 1e-5)).reshape(b, c, h, w)
    xn = xn * params["gn_w"][None, :, None, None] + params["gn_b"][None, :, None, None]

    wqkv = params["to_qkv_w"][:, :, 0, 0]
    qkv = jnp.einsum("oc,bchw->bohw", wqkv, xn) + params["to_qkv_b"][None, :, None, None]
    q, k, v = qkv[:, :c], qkv[:, c:2 * c], qkv[:, 2 * c:]
    q = q.transpose(0, 2, 3, 1).reshape(b, h * w, c)
    k = k.transpose(0, 2, 3, 1).reshape(b, h * w, c)
    v = v.transpose(0, 2, 3, 1).reshape(b, h * w, c)
    attn = jax.nn.softmax(jnp.einsum("bqc,bkc->bqk", q, k) / math.sqrt(c), axis=-1)
    out = jnp.einsum("bqk,bkc->bqc", attn, v)
    out = out.reshape(b, h, w, c).transpose(0, 3, 1, 2)
    wo = params["to_out_w"][:, :, 0, 0]
    out = jnp.einsum("oc,bchw->bohw", wo, out) + params["to_out_b"][None, :, None, None]
    return out + xn


if __name__ == "__main__":
    B, C, H, W = 2, 4, 16, 16
    key = jax.random.PRNGKey(0)
    ks = jax.random.split(key, 7)

    x = jax.random.normal(ks[0], (B, C, H, W), jnp.float32)
    params = {
        "gn_w":     1.0 + 0.1 * jax.random.normal(ks[1], (C,), jnp.float32),
        "gn_b":     0.1 * jax.random.normal(ks[2], (C,), jnp.float32),
        "to_qkv_w": 0.2 * jax.random.normal(ks[3], (3 * C, C, 1, 1), jnp.float32),
        "to_qkv_b": 0.1 * jax.random.normal(ks[4], (3 * C,), jnp.float32),
        "to_out_w": 0.2 * jax.random.normal(ks[5], (C, C, 1, 1), jnp.float32),
        "to_out_b": 0.1 * jax.random.normal(ks[6], (C,), jnp.float32),
    }

    y = attention_block(x, params)
    jax.block_until_ready(y)

    y_ref = attention_block_reference(x, params)
    assert y.shape == (B, C, H, W)
    max_err = float(jnp.max(jnp.abs(y - y_ref)))
    # bf16 MXU operands (q/k/v/p, weights) and bf16 exp on v6e/v7x => relaxed tolerance
    # vs the pure-f32 reference.
    assert jnp.allclose(y, y_ref, atol=1e-2, rtol=1e-2), \
        f"mismatch vs reference (max abs err {max_err})"

    print("KERNEL_OK")
</pallas_src>

<mosaic_0001>
module attributes {stable_mosaic.version = 11 : i64} {
  func.func @fused_attention_kernel(%arg0: i32, %arg1: i32, %arg2: memref<1x256x128xf32, #tpu.memory_space<vmem>>, %arg3: memref<128x128xf32, #tpu.memory_space<vmem>>, %arg4: memref<1x128xf32, #tpu.memory_space<vmem>>, %arg5: memref<1x128xf32, #tpu.memory_space<vmem>>, %arg6: memref<128x384xbf16, #tpu.memory_space<vmem>>, %arg7: memref<1x384xf32, #tpu.memory_space<vmem>>, %arg8: memref<128x128xbf16, #tpu.memory_space<vmem>>, %arg9: memref<1x128xf32, #tpu.memory_space<vmem>>, %arg10: memref<1x256x128xf32, #tpu.memory_space<vmem>>, %arg11: memref<256x128xf32, #tpu.memory_space<vmem>>, %arg12: memref<256x128xbf16, #tpu.memory_space<vmem>>, %arg13: memref<256x128xbf16, #tpu.memory_space<vmem>>, %arg14: memref<256x128xbf16, #tpu.memory_space<vmem>>) attributes {dimension_semantics = [#tpu.dimension_semantics<parallel>, #tpu.dimension_semantics<arbitrary>], iteration_bounds = array<i64: 2, 1>, scalar_prefetch = 0 : i64, scratch_operands = 4 : i64, tpu.core_type = #tpu.core_type<tc>, window_params = [{transform_indices = @transform_0, window_bounds = array<i64: 1, 256, 128>}, {pipeline_mode = #tpu.pipeline_mode<synchronous>, transform_indices = @transform_1, window_bounds = array<i64: 128, 128>}, {pipeline_mode = #tpu.pipeline_mode<synchronous>, transform_indices = @transform_2, window_bounds = array<i64: 1, 128>}, {pipeline_mode = #tpu.pipeline_mode<synchronous>, transform_indices = @transform_3, window_bounds = array<i64: 1, 128>}, {pipeline_mode = #tpu.pipeline_mode<synchronous>, transform_indices = @transform_4, window_bounds = array<i64: 128, 384>}, {pipeline_mode = #tpu.pipeline_mode<synchronous>, transform_indices = @transform_5, window_bounds = array<i64: 1, 384>}, {pipeline_mode = #tpu.pipeline_mode<synchronous>, transform_indices = @transform_6, window_bounds = array<i64: 128, 128>}, {pipeline_mode = #tpu.pipeline_mode<synchronous>, transform_indices = @transform_7, window_bounds = array<i64: 1, 128>}, {transform_indices = @transform_8, window_bounds = array<i64: 1, 256, 128>}]} {
    %c0_i32 = arith.constant 0 : i32
    %0 = arith.cmpi eq, %arg1, %c0_i32 : i32
    %1 = arith.extui %0 : i1 to i32
    %c0_i32_0 = arith.constant 0 : i32
    %2 = arith.cmpi ne, %1, %c0_i32_0 : i32
    scf.if %2 {
      %c0_17 = arith.constant 0 : index
      %c0_18 = arith.constant 0 : index
      %c0_19 = arith.constant 0 : index
      %35 = vector.load %arg2[%c0_17, %c0_18, %c0_19] : memref<1x256x128xf32, #tpu.memory_space<vmem>>, vector<1x256x128xf32>
      %36 = vector.shape_cast %35 : vector<1x256x128xf32> to vector<256x128xf32>
      %c0_20 = arith.constant 0 : index
      %c0_21 = arith.constant 0 : index
      %37 = vector.load %arg3[%c0_20, %c0_21] : memref<128x128xf32, #tpu.memory_space<vmem>>, vector<128x128xf32>
      %cst_22 = arith.constant dense<0.000000e+00> : vector<128xf32>
      %38 = vector.multi_reduction <add>, %36, %cst_22 [0] : vector<256x128xf32> to vector<128xf32>
      %39 = vector.shape_cast %38 : vector<128xf32> to vector<1x128xf32>
      %cst_23 = arith.constant 3.906250e-03 : f32
      %40 = vector.broadcast %cst_23 : f32 to vector<1x128xf32>
      %41 = arith.mulf %39, %40 : vector<1x128xf32>
      %cst_24 = arith.constant dense<0.000000e+00> : vector<1x128xf32>
      %42 = tpu.matmul %41, %37, %cst_24 {dimension_numbers = #tpu.dot_dimension_numbers<[1], [0], [0], [1], [0, 0, 1, 1], [], []>} : vector<1x128xf32>, vector<128x128xf32>, vector<1x128xf32> -> vector<1x128xf32>
      %43 = vector.broadcast %42 : vector<1x128xf32> to vector<256x128xf32>
      %44 = arith.subf %36, %43 : vector<256x128xf32>
      %45 = arith.mulf %44, %44 : vector<256x128xf32>
      %cst_25 = arith.constant dense<0.000000e+00> : vector<128xf32>
      %46 = vector.multi_reduction <add>, %45, %cst_25 [0] : vector<256x128xf32> to vector<128xf32>
      %47 = vector.shape_cast %46 : vector<128xf32> to vector<1x128xf32>
      %cst_26 = arith.constant 3.906250e-03 : f32
      %48 = vector.broadcast %cst_26 : f32 to vector<1x128xf32>
      %49 = arith.mulf %47, %48 : vector<1x128xf32>
      %cst_27 = arith.constant dense<0.000000e+00> : vector<1x128xf32>
      %50 = tpu.matmul %49, %37, %cst_27 {dimension_numbers = #tpu.dot_dimension_numbers<[1], [0], [0], [1], [0, 0, 1, 1], [], []>} : vector<1x128xf32>, vector<128x128xf32>, vector<1x128xf32> -> vector<1x128xf32>
      %cst_28 = arith.constant 9.99999974E-6 : f32
      %51 = vector.broadcast %cst_28 : f32 to vector<1x128xf32>
      %52 = arith.addf %50, %51 : vector<1x128xf32>
      %53 = math.rsqrt %52 : vector<1x128xf32>
      %54 = vector.broadcast %53 : vector<1x128xf32> to vector<256x128xf32>
      %55 = arith.mulf %44, %54 : vector<256x128xf32>
      %c0_29 = arith.constant 0 : index
      %c0_30 = arith.constant 0 : index
      %56 = vector.load %arg4[%c0_29, %c0_30] : memref<1x128xf32, #tpu.memory_space<vmem>>, vector<1x128xf32>
      %57 = vector.broadcast %56 : vector<1x128xf32> to vector<256x128xf32>
      %58 = arith.mulf %55, %57 : vector<256x128xf32>
      %c0_31 = arith.constant 0 : index
      %c0_32 = arith.constant 0 : index
      %59 = vector.load %arg5[%c0_31, %c0_32] : memref<1x128xf32, #tpu.memory_space<vmem>>, vector<1x128xf32>
      %60 = vector.broadcast %59 : vector<1x128xf32> to vector<256x128xf32>
      %61 = arith.addf %58, %60 : vector<256x128xf32>
      %c0_33 = arith.constant 0 : index
      %c0_34 = arith.constant 0 : index
      %62 = vector.load %arg11[%c0_33, %c0_34] : memref<256x128xf32, #tpu.memory_space<vmem>>, vector<256x128xf32>
      tpu.vector_store %arg11[%c0_33, %c0_34], %61 {strides = array<i32>} : memref<256x128xf32, #tpu.memory_space<vmem>>, vector<256x128xf32>,
      %63 = arith.truncf %61 : vector<256x128xf32> to vector<256x128xbf16>
      %c0_35 = arith.constant 0 : index
      %c0_36 = arith.constant 0 : index
      %64 = vector.load %arg6[%c0_35, %c0_36] : memref<128x384xbf16, #tpu.memory_space<vmem>>, vector<128x384xbf16>
      %cst_37 = arith.constant dense<0.000000e+00> : vector<256x384xf32>
      %65 = tpu.matmul %63, %64, %cst_37 {dimension_numbers = #tpu.dot_dimension_numbers<[1], [0], [0], [1], [0, 0, 1, 1], [], []>} : vector<256x128xbf16>, vector<128x384xbf16>, vector<256x384xf32> -> vector<256x384xf32>
      %c0_38 = arith.constant 0 : index
      %c0_39 = arith.constant 0 : index
      %66 = vector.load %arg7[%c0_38, %c0_39] : memref<1x384xf32, #tpu.memory_space<vmem>>, vector<1x384xf32>
      %67 = vector.broadcast %66 : vector<1x384xf32> to vector<256x384xf32>
      %68 = arith.addf %65, %67 : vector<256x384xf32>
      %69 = vector.extract_strided_slice %68 {offsets = [0, 0], sizes = [256, 128], strides = [1, 1]} : vector<256x384xf32> to vector<256x128xf32>
      %70 = arith.truncf %69 : vector<256x128xf32> to vector<256x128xbf16>
      %c0_40 = arith.constant 0 : index
      %c0_41 = arith.constant 0 : index
      %71 = vector.load %arg12[%c0_40, %c0_41] : memref<256x128xbf16, #tpu.memory_space<vmem>>, vector<256x128xbf16>
      tpu.vector_store %arg12[%c0_40, %c0_41], %70 {strides = array<i32>} : memref<256x128xbf16, #tpu.memory_space<vmem>>, vector<256x128xbf16>,
      %72 = vector.extract_strided_slice %68 {offsets = [0, 128], sizes = [256, 128], strides = [1, 1]} : vector<256x384xf32> to vector<256x128xf32>
      %73 = arith.truncf %72 : vector<256x128xf32> to vector<256x128xbf16>
      %c0_42 = arith.constant 0 : index
      %c0_43 = arith.constant 0 : index
      %74 = vector.load %arg13[%c0_42, %c0_43] : memref<256x128xbf16, #tpu.memory_space<vmem>>, vector<256x128xbf16>
      tpu.vector_store %arg13[%c0_42, %c0_43], %73 {strides = array<i32>} : memref<256x128xbf16, #tpu.memory_space<vmem>>, vector<256x128xbf16>,
      %75 = vector.extract_strided_slice %68 {offsets = [0, 256], sizes = [256, 128], strides = [1, 1]} : vector<256x384xf32> to vector<256x128xf32>
      %76 = arith.truncf %75 : vector<256x128xf32> to vector<256x128xbf16>
      %c0_44 = arith.constant 0 : index
      %c0_45 = arith.constant 0 : index
      %77 = vector.load %arg14[%c0_44, %c0_45] : memref<256x128xbf16, #tpu.memory_space<vmem>>, vector<256x128xbf16>
      tpu.vector_store %arg14[%c0_44, %c0_45], %76 {strides = array<i32>} : memref<256x128xbf16, #tpu.memory_space<vmem>>, vector<256x128xbf16>,
    } else {
    }
    %c256_i32 = arith.constant 256 : i32
    %3 = arith.muli %arg1, %c256_i32 : i32
    %4 = tpu.assume_multiple %3, 256 : i32
    %5 = arith.index_cast %4 : i32 to index
    %c0 = arith.constant 0 : index
    %6 = vector.load %arg12[%5, %c0] : memref<256x128xbf16, #tpu.memory_space<vmem>>, vector<256x128xbf16>
    %c0_1 = arith.constant 0 : index
    %c0_2 = arith.constant 0 : index
    %7 = vector.load %arg13[%c0_1, %c0_2] : memref<256x128xbf16, #tpu.memory_space<vmem>>, vector<256x128xbf16>
    %c0_3 = arith.constant 0 : index
    %c0_4 = arith.constant 0 : index
    %8 = vector.load %arg14[%c0_3, %c0_4] : memref<256x128xbf16, #tpu.memory_space<vmem>>, vector<256x128xbf16>
    %cst = arith.constant dense<0.000000e+00> : vector<256x256xf32>
    %9 = tpu.matmul %6, %7, %cst {dimension_numbers = #tpu.dot_dimension_numbers<[1], [1], [0], [0], [0, 0, 1, 0], [], []>} : vector<256x128xbf16>, vector<256x128xbf16>, vector<256x256xf32> -> vector<256x256xf32>
    %cst_5 = arith.constant dense<0xFF800000> : vector<256xf32>
    %10 = vector.multi_reduction <maximumf>, %9, %cst_5 [1] : vector<256x256xf32> to vector<256xf32>
    %11 = vector.shape_cast %10 : vector<256xf32> to vector<256x1xf32>
    %12 = vector.broadcast %11 : vector<256x1xf32> to vector<256x256xf32>
    %13 = arith.subf %9, %12 : vector<256x256xf32>
    %14 = arith.truncf %13 : vector<256x256xf32> to vector<256x256xbf16>
    %15 = math.exp %14 : vector<256x256xbf16>
    %16 = arith.extf %15 : vector<256x256xbf16> to vector<256x256xf32>
    %cst_6 = arith.constant dense<0.000000e+00> : vector<256xf32>
    %17 = vector.multi_reduction <add>, %16, %cst_6 [1] : vector<256x256xf32> to vector<256xf32>
    %18 = vector.shape_cast %17 : vector<256xf32> to vector<256x1xf32>
    %cst_7 = arith.constant dense<0.000000e+00> : vector<256x128xf32>
    %19 = tpu.matmul %15, %8, %cst_7 {dimension_numbers = #tpu.dot_dimension_numbers<[1], [0], [0], [1], [0, 0, 1, 1], [], []>} : vector<256x256xbf16>, vector<256x128xbf16>, vector<256x128xf32> -> vector<256x128xf32>
    %20 = tpu.reciprocal %18 : vector<256x1xf32> -> vector<256x1xf32>
    %21 = vector.broadcast %20 : vector<256x1xf32> to vector<256x128xf32>
    %22 = arith.mulf %19, %21 : vector<256x128xf32>
    %23 = arith.truncf %22 : vector<256x128xf32> to vector<256x128xbf16>
    %c0_8 = arith.constant 0 : index
    %c0_9 = arith.constant 0 : index
    %24 = vector.load %arg8[%c0_8, %c0_9] : memref<128x128xbf16, #tpu.memory_space<vmem>>, vector<128x128xbf16>
    %cst_10 = arith.constant dense<0.000000e+00> : vector<256x128xf32>
    %25 = tpu.matmul %23, %24, %cst_10 {dimension_numbers = #tpu.dot_dimension_numbers<[1], [0], [0], [1], [0, 0, 1, 1], [], []>} : vector<256x128xbf16>, vector<128x128xbf16>, vector<256x128xf32> -> vector<256x128xf32>
    %c0_11 = arith.constant 0 : index
    %c0_12 = arith.constant 0 : index
    %26 = vector.load %arg9[%c0_11, %c0_12] : memref<1x128xf32, #tpu.memory_space<vmem>>, vector<1x128xf32>
    %27 = vector.broadcast %26 : vector<1x128xf32> to vector<256x128xf32>
    %28 = arith.addf %25, %27 : vector<256x128xf32>
    %29 = arith.index_cast %4 : i32 to index
    %c0_13 = arith.constant 0 : index
    %30 = vector.load %arg11[%29, %c0_13] : memref<256x128xf32, #tpu.memory_space<vmem>>, vector<256x128xf32>
    %31 = arith.addf %28, %30 : vector<256x128xf32>
    %c0_14 = arith.constant 0 : index
    %c0_15 = arith.constant 0 : index
    %c0_16 = arith.constant 0 : index
    %32 = vector.load %arg10[%c0_14, %c0_15, %c0_16] : memref<1x256x128xf32, #tpu.memory_space<vmem>>, vector<1x256x128xf32>
    %33 = vector.shape_cast %32 : vector<1x256x128xf32> to vector<256x128xf32>
    %34 = vector.shape_cast %31 : vector<256x128xf32> to vector<1x256x128xf32>
    tpu.vector_store %arg10[%c0_14, %c0_15, %c0_16], %34 {strides = array<i32>} : memref<1x256x128xf32, #tpu.memory_space<vmem>>, vector<1x256x128xf32>,
    return
  }
  func.func @transform_0(%arg0: i32, %arg1: i32) -> (i32, i32, i32) {
    %c0_i32 = arith.constant 0 : i32
    %c0_i32_0 = arith.constant 0 : i32
    %c0_i32_1 = arith.constant 0 : i32
    return %arg0, %c0_i32, %c0_i32_0 : i32, i32, i32
  }
  func.func @transform_1(%arg0: i32, %arg1: i32) -> (i32, i32) {
    %c0_i32 = arith.constant 0 : i32
    %c0_i32_0 = arith.constant 0 : i32
    %c0_i32_1 = arith.constant 0 : i32
    return %c0_i32, %c0_i32_0 : i32, i32
  }
  func.func @transform_2(%arg0: i32, %arg1: i32) -> (i32, i32) {
    %c0_i32 = arith.constant 0 : i32
    %c0_i32_0 = arith.constant 0 : i32
    %c0_i32_1 = arith.constant 0 : i32
    return %c0_i32, %c0_i32_0 : i32, i32
  }
  func.func @transform_3(%arg0: i32, %arg1: i32) -> (i32, i32) {
    %c0_i32 = arith.constant 0 : i32
    %c0_i32_0 = arith.constant 0 : i32
    %c0_i32_1 = arith.constant 0 : i32
    return %c0_i32, %c0_i32_0 : i32, i32
  }
  func.func @transform_4(%arg0: i32, %arg1: i32) -> (i32, i32) {
    %c0_i32 = arith.constant 0 : i32
    %c0_i32_0 = arith.constant 0 : i32
    %c0_i32_1 = arith.constant 0 : i32
    return %c0_i32, %c0_i32_0 : i32, i32
  }
  func.func @transform_5(%arg0: i32, %arg1: i32) -> (i32, i32) {
    %c0_i32 = arith.constant 0 : i32
    %c0_i32_0 = arith.constant 0 : i32
    %c0_i32_1 = arith.constant 0 : i32
    return %c0_i32, %c0_i32_0 : i32, i32
  }
  func.func @transform_6(%arg0: i32, %arg1: i32) -> (i32, i32) {
    %c0_i32 = arith.constant 0 : i32
    %c0_i32_0 = arith.constant 0 : i32
    %c0_i32_1 = arith.constant 0 : i32
    return %c0_i32, %c0_i32_0 : i32, i32
  }
  func.func @transform_7(%arg0: i32, %arg1: i32) -> (i32, i32) {
    %c0_i32 = arith.constant 0 : i32
    %c0_i32_0 = arith.constant 0 : i32
    %c0_i32_1 = arith.constant 0 : i32
    return %c0_i32, %c0_i32_0 : i32, i32
  }
  func.func @transform_8(%arg0: i32, %arg1: i32) -> (i32, i32, i32) {
    %c0_i32 = arith.constant 0 : i32
    %c0_i32_0 = arith.constant 0 : i32
    return %arg0, %arg1, %c0_i32 : i32, i32, i32
  }
}

</mosaic_0001>

<llo_original>
// kernel: tpu_custom_call.1
$region0: #{tpu_custom_call.1}
  #allocation0 [shape = 'u32[]', space=smem, size = 0x4, offset = 0x4, fixed_abs, tag = 'smem constant byte address 0x4 - core index']
  #allocation1 [shape = 'u32[144,128]{1,0:T(1,128)}', space=vmem, size = 0x12000, scoped, tag = 'internal scratch']
  #allocation2 [shape = 'f32[256,128]{1,0:T(8,128)}', space=vmem, size = 0x20000, scoped, tag = 'scratch operand']
  #allocation3 [shape = 'bf16[256,128]{1,0:T(16,128)(2,1)}', space=vmem, size = 0x10000, scoped, tag = 'scratch operand']
  #allocation4 [shape = 'bf16[256,128]{1,0:T(16,128)(2,1)}', space=vmem, size = 0x10000, scoped, tag = 'scratch operand']
  #allocation5 [shape = 'bf16[256,128]{1,0:T(16,128)(2,1)}', space=vmem, size = 0x10000, scoped, tag = 'scratch operand']
  %s0 = inlined_call_operand.hbm [shape: f32[2,256,128], index: 0, kind: input, shape index: {}]
  %s1 = inlined_call_operand.hbm [shape: f32[128,128], index: 1, kind: input, shape index: {}]
  %s2 = inlined_call_operand.vmem [shape: f32[1,128], index: 2, kind: input, shape index: {}]
  %s3 = inlined_call_operand.vmem [shape: f32[1,128], index: 3, kind: input, shape index: {}]
  %s4 = inlined_call_operand.hbm [shape: bf16[128,384], index: 4, kind: input, shape index: {}]
  %s5 = inlined_call_operand.vmem [shape: f32[1,384], index: 5, kind: input, shape index: {}]
  %s6 = inlined_call_operand.hbm [shape: bf16[128,128], index: 6, kind: input, shape index: {}]
  %s7 = inlined_call_operand.vmem [shape: f32[1,128], index: 7, kind: input, shape index: {}]
  %s8 = inlined_call_operand.hbm [shape: f32[2,256,128], index: 8, kind: output, shape index: {}]
  %s9 = sld [smem:[#allocation0]]
  $region85: #{tpu_custom_call.1} parent=0
    _
  %s11 = ssub.s32 1, %s9
  %s12 = scalar_select 0, %s11, %s9
  $region1: #{tpu_custom_call.1} parent=0
    #allocation6 [shape = 'u8[262144]{0}', space=vmem, size = 0x40000, scoped, tag = 'input window, operand 0']
    #allocation7 [shape = 's32[2]{0}', space=sflag, size = 0x8, scoped, tag = 'scoped memory for tpu_custom_call.1']
    #allocation8 [shape = 's32[2]{0}', space=sflag, size = 0x8, scoped, tag = 'scoped memory for tpu_custom_call.1']
    #allocation9 [shape = 'u8[65536]{0}', space=vmem, size = 0x10000, scoped, tag = 'input window, operand 1, single buffered']
    #allocation10 [shape = 's32[1]{0}', space=sflag, size = 0x4, scoped, tag = 'scoped memory for tpu_custom_call.1']
    #allocation11 [shape = 'u8[98304]{0}', space=vmem, size = 0x18000, scoped, tag = 'input window, operand 4, single buffered']
    #allocation12 [shape = 'u8[32768]{0}', space=vmem, size = 0x8000, scoped, tag = 'input window, operand 6, single buffered']
    #allocation13 [shape = 's32[1]{0}', space=sflag, size = 0x4, scoped, tag = 'scoped memory for tpu_custom_call.1']
    #allocation14 [shape = 'u8[262144]{0}', space=vmem, size = 0x40000, scoped, tag = 'output window, operand 0']
    %13 = vsyncpa [#allocation7], 0
    %s14 = scalar_lea.sflag [#allocation7], 1
    %15 = vsyncpa %s14, 0
    %16 = vsyncpa [#allocation10], 0
    %17 = vsyncpa [#allocation13], 0
    %18 = vsyncpa [#allocation8], 0
    %s19 = scalar_lea.sflag [#allocation8], 1
    %20 = vsyncpa %s19, 0
    loop: start=0, step=1, limit=4
    $region2: #{tpu_custom_call.1} parent=1 // loop_pre_header
      _
    $region3: #{tpu_custom_call.1} parent=1 // loop_header
      %s22 = sphi 0, %s26
      %p23 = scmp.ge.s32.totalorder %s22, 4
      %s29 = sphi 0, %s41
      %s30 = sphi 0, %s37
      %s31 = sphi 0, %s29
      %s32 = sphi 0, %s30
      %s33 = sphi 0, %s31
      %s34 = sphi 0, %s32
      %s44 = sphi 0, %s46
      %s47 = sphi 0, %s44
      %s48 = sphi 0, %s47
      %s64 = sphi 0, %s48
      %s68 = sphi 0, %s68
      %s70 = sphi 0, %s68
      %s71 = sphi 0, %s70
      %s85 = sphi 0, %s71
      %s89 = sphi 0, %s89
      %s91 = sphi 0, %s89
      %s92 = sphi 0, %s91
      %s106 = sphi 0, %s92
      %s110 = sphi 0, %s110
      %s112 = sphi 0, %s110
      %s113 = sphi 0, %s112
      %s127 = sphi 0, %s113
      %s131 = sphi 0, %s131
      %s133 = sphi 0, %s131
      %s134 = sphi 0, %s133
      %s148 = sphi 0, %s134
      %s152 = sphi 0, %s152
      %s154 = sphi 0, %s152
      %s155 = sphi 0, %s154
      %s169 = sphi 0, %s155
      %s173 = sphi 0, %s173
      %s175 = sphi 0, %s173
      %s176 = sphi 0, %s175
      %s190 = sphi 0, %s176
      %s194 = sphi 0, %s194
      %s196 = sphi 0, %s194
      %s197 = sphi 0, %s196
      %s211 = sphi 0, %s197
      %s219 = sphi 0, %s221
      %s222 = sphi 0, %s219
      %s223 = sphi 0, %s222
      %s239 = sphi 0, %s223
    $region4: #{tpu_custom_call.1} parent=1 // loop_header_branch
      %25 = sbr.rel (%p23) target = $region8
    $region5: #{tpu_custom_call.1} parent=1 // loop_body
      %s27 = ssub.s32 %s22, 1
      %s28 = ssub.s32 %s22, 2
      %s35 = sadd.s32 1, %s30
      %p36 = scmp.ge.s32.totalorder %s35, 1
      %s37 = scalar_select %p36, 0, %s35
      %s38 = sadd.s32 1, %s29
      %s39 = scalar_select %p36, %s38, %s29
      %p40 = scmp.ge.s32.totalorder %s39, 2
      %s41 = scalar_select %p40, 0, %s39
      %s42 = ssub.s32 %s29, %s41
      %p43 = scmp.eq.s32.totalorder %s42, 0
      %s45 = sadd.s32 %s44, 1
      %s46 = scalar_select %p43, %s44, %s45
      %p49 = pneg %p43
      %p50 = scmp.eq.s32.totalorder %s22, 1
      %p51 = por %p49, %p50
      %p52 = scmp.ne.s32.totalorder %s44, %s47
      %p53 = scmp.eq.s32.totalorder %s22, 0
      %p54 = por %p52, %p53
      %p55 = scmp.ne.s32.totalorder %s44, %s47
      %p56 = scmp.eq.s32.totalorder %s27, 1
      %p57 = por %p55, %p56
      %p58 = scmp.ne.s32.totalorder %s47, %s48
      %p59 = scmp.eq.s32.totalorder %s27, 0
      %p60 = por %p58, %p59
      %p61 = scmp.ne.s32.totalorder %s47, %s48
      %p62 = scmp.eq.s32.totalorder %s28, 1
      %p63 = por %p61, %p62
      %p65 = scmp.ne.s32.totalorder %s48, %s64
      %p66 = scmp.eq.s32.totalorder %s28, 0
      %p67 = por %p65, %p66
      %s69 = sadd.s32 %s68, 1
      %p72 = scmp.eq.s32.totalorder %s22, 1
      %p73 = scmp.ne.s32.totalorder %s68, %s70
      %p74 = scmp.eq.s32.totalorder %s22, 0
      %p75 = por %p73, %p74
      %p76 = scmp.ne.s32.totalorder %s68, %s70
      %p77 = scmp.eq.s32.totalorder %s27, 1
      %p78 = por %p76, %p77
      %p79 = scmp.ne.s32.totalorder %s70, %s71
      %p80 = scmp.eq.s32.totalorder %s27, 0
      %p81 = por %p79, %p80
      %p82 = scmp.ne.s32.totalorder %s70, %s71
      %p83 = scmp.eq.s32.totalorder %s28, 1
      %p84 = por %p82, %p83
      %p86 = scmp.ne.s32.totalorder %s71, %s85
      %p87 = scmp.eq.s32.totalorder %s28, 0
      %p88 = por %p86, %p87
      %s90 = sadd.s32 %s89, 1
      %p93 = scmp.eq.s32.totalorder %s22, 1
      %p94 = scmp.ne.s32.totalorder %s89, %s91
      %p95 = scmp.eq.s32.totalorder %s22, 0
      %p96 = por %p94, %p95
      %p97 = scmp.ne.s32.totalorder %s89, %s91
      %p98 = scmp.eq.s32.totalorder %s27, 1
      %p99 = por %p97, %p98
      %p100 = scmp.ne.s32.totalorder %s91, %s92
      %p101 = scmp.eq.s32.totalorder %s27, 0
      %p102 = por %p100, %p101
      %p103 = scmp.ne.s32.totalorder %s91, %s92
      %p104 = scmp.eq.s32.totalorder %s28, 1
      %p105 = por %p103, %p104
      %p107 = scmp.ne.s32.totalorder %s92, %s106
      %p108 = scmp.eq.s32.totalorder %s28, 0
      %p109 = por %p107, %p108
      %s111 = sadd.s32 %s110, 1
      %p114 = scmp.eq.s32.totalorder %s22, 1
      %p115 = scmp.ne.s32.totalorder %s110, %s112
      %p116 = scmp.eq.s32.totalorder %s22, 0
      %p117 = por %p115, %p116
      %p118 = scmp.ne.s32.totalorder %s110, %s112
      %p119 = scmp.eq.s32.totalorder %s27, 1
      %p120 = por %p118, %p119
      %p121 = scmp.ne.s32.totalorder %s112, %s113
      %p122 = scmp.eq.s32.totalorder %s27, 0
      %p123 = por %p121, %p122
      %p124 = scmp.ne.s32.totalorder %s112, %s113
      %p125 = scmp.eq.s32.totalorder %s28, 1
      %p126 = por %p124, %p125
      %p128 = scmp.ne.s32.totalorder %s113, %s127
      %p129 = scmp.eq.s32.totalorder %s28, 0
      %p130 = por %p128, %p129
      %s132 = sadd.s32 %s131, 1
      %p135 = scmp.eq.s32.totalorder %s22, 1
      %p136 = scmp.ne.s32.totalorder %s131, %s133
      %p137 = scmp.eq.s32.totalorder %s22, 0
      %p138 = por %p136, %p137
      %p139 = scmp.ne.s32.totalorder %s131, %s133
      %p140 = scmp.eq.s32.totalorder %s27, 1
      %p141 = por %p139, %p140
      %p142 = scmp.ne.s32.totalorder %s133, %s134
      %p143 = scmp.eq.s32.totalorder %s27, 0
      %p144 = por %p142, %p143
      %p145 = scmp.ne.s32.totalorder %s133, %s134
      %p146 = scmp.eq.s32.totalorder %s28, 1
      %p147 = por %p145, %p146
      %p149 = scmp.ne.s32.totalorder %s134, %s148
      %p150 = scmp.eq.s32.totalorder %s28, 0
      %p151 = por %p149, %p150
      %s153 = sadd.s32 %s152, 1
      %p156 = scmp.eq.s32.totalorder %s22, 1
      %p157 = scmp.ne.s32.totalorder %s152, %s154
      %p158 = scmp.eq.s32.totalorder %s22, 0
      %p159 = por %p157, %p158
      %p160 = scmp.ne.s32.totalorder %s152, %s154
      %p161 = scmp.eq.s32.totalorder %s27, 1
      %p162 = por %p160, %p161
      %p163 = scmp.ne.s32.totalorder %s154, %s155
      %p164 = scmp.eq.s32.totalorder %s27, 0
      %p165 = por %p163, %p164
      %p166 = scmp.ne.s32.totalorder %s154, %s155
      %p167 = scmp.eq.s32.totalorder %s28, 1
      %p168 = por %p166, %p167
      %p170 = scmp.ne.s32.totalorder %s155, %s169
      %p171 = scmp.eq.s32.totalorder %s28, 0
      %p172 = por %p170, %p171
      %s174 = sadd.s32 %s173, 1
      %p177 = scmp.eq.s32.totalorder %s22, 1
      %p178 = scmp.ne.s32.totalorder %s173, %s175
      %p179 = scmp.eq.s32.totalorder %s22, 0
      %p180 = por %p178, %p179
      %p181 = scmp.ne.s32.totalorder %s173, %s175
      %p182 = scmp.eq.s32.totalorder %s27, 1
      %p183 = por %p181, %p182
      %p184 = scmp.ne.s32.totalorder %s175, %s176
      %p185 = scmp.eq.s32.totalorder %s27, 0
      %p186 = por %p184, %p185
      %p187 = scmp.ne.s32.totalorder %s175, %s176
      %p188 = scmp.eq.s32.totalorder %s28, 1
      %p189 = por %p187, %p188
      %p191 = scmp.ne.s32.totalorder %s176, %s190
      %p192 = scmp.eq.s32.totalorder %s28, 0
      %p193 = por %p191, %p192
      %s195 = sadd.s32 %s194, 1
      %p198 = scmp.eq.s32.totalorder %s22, 1
      %p199 = scmp.ne.s32.totalorder %s194, %s196
      %p200 = scmp.eq.s32.totalorder %s22, 0
      %p201 = por %p199, %p200
      %p202 = scmp.ne.s32.totalorder %s194, %s196
      %p203 = scmp.eq.s32.totalorder %s27, 1
      %p204 = por %p202, %p203
      %p205 = scmp.ne.s32.totalorder %s196, %s197
      %p206 = scmp.eq.s32.totalorder %s27, 0
      %p207 = por %p205, %p206
      %p208 = scmp.ne.s32.totalorder %s196, %s197
      %p209 = scmp.eq.s32.totalorder %s28, 1
      %p210 = por %p208, %p209
      %p212 = scmp.ne.s32.totalorder %s197, %s211
      %p213 = scmp.eq.s32.totalorder %s28, 0
      %p214 = por %p212, %p213
      %s215 = ssub.s32 %s29, %s41
      %s216 = ssub.s32 %s30, %s37
      %s217 = sor.u32 %s215, %s216
      %p218 = scmp.eq.s32.totalorder %s217, 0
      %s220 = sadd.s32 %s219, 1
      %s221 = scalar_select %p218, %s219, %s220
      %p224 = pneg %p218
      %p225 = scmp.eq.s32.totalorder %s22, 1
      %p226 = por %p224, %p225
      %p227 = scmp.ne.s32.totalorder %s219, %s222
      %p228 = scmp.eq.s32.totalorder %s22, 0
      %p229 = por %p227, %p228
      %p230 = scmp.ne.s32.totalorder %s219, %s222
      %p231 = scmp.eq.s32.totalorder %s27, 1
      %p232 = por %p230, %p231
      %p233 = scmp.ne.s32.totalorder %s222, %s223
      %p234 = scmp.eq.s32.totalorder %s27, 0
      %p235 = por %p233, %p234
      %p236 = scmp.ne.s32.totalorder %s222, %s223
      %p237 = scmp.eq.s32.totalorder %s28, 1
      %p238 = por %p236, %p237
      %p240 = scmp.ne.s32.totalorder %s223, %s239
      %p241 = scmp.eq.s32.totalorder %s28, 0
      %p242 = por %p240, %p241
      %p243 = scmp.le.s32.totalorder 1, %s22
      %p244 = scmp.lt.s32.totalorder %s22, 3
      %p245 = pnand %p243, %p244
      %p246 = pneg %p245
      // Predicated region
      $region9: #{tpu_custom_call.1} parent=5 // pred_check
        _
      $region10: #{tpu_custom_call.1} parent=5 // pred_check_branch
        %248 = sbr.rel (%p245) target = $region12
      $region11: #{tpu_custom_call.1} parent=5 // pred_region
        %s249 = ssub.s32 %s22, 1
        // Predicated region
        $region13: #{tpu_custom_call.1} parent=11 // pred_check
          %p250 = pneg %p81
        $region14: #{tpu_custom_call.1} parent=11 // pred_check_branch
          %252 = sbr.rel (%p250) target = $region16
        $region15: #{tpu_custom_call.1} parent=11 // pred_region
          %s254 = ssub.s32 2048, 2048
          %255 = vsyncadd [#allocation10], %s254
          %s256 = sshll.u32 [#allocation9], 4
          %s257 = int_to_ptr.vmem [resolvable:$true] %s256
          %262 = dma.hbm_to_vmem [thread:$0]  %s1, 2048, %s257, [#allocation10], 128, 128, 8
        $region16: #{tpu_custom_call.1} parent=11 // pred_fallthru
          _
        // Predicated region
        $region17: #{tpu_custom_call.1} parent=11 // pred_check
          %p263 = pneg %p102
        $region18: #{tpu_custom_call.1} parent=11 // pred_check_branch
          %265 = sbr.rel (%p263) target = $region20
        $region19: #{tpu_custom_call.1} parent=11 // pred_region
          _
        $region20: #{tpu_custom_call.1} parent=11 // pred_fallthru
          _
        // Predicated region
        $region21: #{tpu_custom_call.1} parent=11 // pred_check
          %p266 = pneg %p123
        $region22: #{tpu_custom_call.1} parent=11 // pred_check_branch
          %268 = sbr.rel (%p266) target = $region24
        $region23: #{tpu_custom_call.1} parent=11 // pred_region
          _
        $region24: #{tpu_custom_call.1} parent=11 // pred_fallthru
          _
        // Predicated region
        $region25: #{tpu_custom_call.1} parent=11 // pred_check
          %p269 = pneg %p144
        $region26: #{tpu_custom_call.1} parent=11 // pred_check_branch
          %271 = sbr.rel (%p269) target = $region28
        $region27: #{tpu_custom_call.1} parent=11 // pred_region
          %s273 = ssub.s32 3072, 3072
          %274 = vsyncadd [#allocation10], %s273
          %s275 = sshll.u32 [#allocation11], 4
          %s276 = int_to_ptr.vmem [resolvable:$true] %s275
          %281 = dma.hbm_to_vmem [thread:$0]  %s4, 3072, %s276, [#allocation10], 192, 192, 12
        $region28: #{tpu_custom_call.1} parent=11 // pred_fallthru
          _
        // Predicated region
        $region29: #{tpu_custom_call.1} parent=11 // pred_check
          %p282 = pneg %p165
        $region30: #{tpu_custom_call.1} parent=11 // pred_check_branch
          %284 = sbr.rel (%p282) target = $region32
        $region31: #{tpu_custom_call.1} parent=11 // pred_region
          _
        $region32: #{tpu_custom_call.1} parent=11 // pred_fallthru
          _
        // Predicated region
        $region33: #{tpu_custom_call.1} parent=11 // pred_check
          %p285 = pneg %p186
        $region34: #{tpu_custom_call.1} parent=11 // pred_check_branch
          %287 = sbr.rel (%p285) target = $region36
        $region35: #{tpu_custom_call.1} parent=11 // pred_region
          %s289 = ssub.s32 1024, 1024
          %290 = vsyncadd [#allocation13], %s289
          %s291 = sshll.u32 [#allocation12], 4
          %s292 = int_to_ptr.vmem [resolvable:$true] %s291
          %297 = dma.hbm_to_vmem [thread:$0]  %s6, 1024, %s292, [#allocation13], 64, 64, 4
        $region36: #{tpu_custom_call.1} parent=11 // pred_fallthru
          _
        // Predicated region
        $region37: #{tpu_custom_call.1} parent=11 // pred_check
          %p298 = pneg %p207
        $region38: #{tpu_custom_call.1} parent=11 // pred_check_branch
          %300 = sbr.rel (%p298) target = $region40
        $region39: #{tpu_custom_call.1} parent=11 // pred_region
          _
        $region40: #{tpu_custom_call.1} parent=11 // pred_fallthru
          _
      $region12: #{tpu_custom_call.1} parent=5 // pred_fallthru
        _
      %p301 = scmp.lt.s32.totalorder %s22, 2
      // Predicated region
      $region41: #{tpu_custom_call.1} parent=5 // pred_check
        %p302 = pneg %p301
      $region42: #{tpu_custom_call.1} parent=5 // pred_check_branch
        %304 = sbr.rel (%p302) target = $region44
      $region43: #{tpu_custom_call.1} parent=5 // pred_region
        // Predicated region
        $region45: #{tpu_custom_call.1} parent=43 // pred_check
          %p305 = pneg %p54
        $region46: #{tpu_custom_call.1} parent=43 // pred_check_branch
          %307 = sbr.rel (%p305) target = $region48
        $region47: #{tpu_custom_call.1} parent=43 // pred_region
          %s308 = sand.u32 %s44, 1
          %s309 = scalar_lea.sflag [#allocation7], %s308
          %s310 = sand.u32 %s44, 1
          %s311 = smul.addr %s310, 256
          %s312 = scalar_lea.vmem [#allocation6], %s311
          %s314 = ssub.s32 4096, 4096
          %315 = vsyncadd %s309, %s314
          %s316 = smul.addr %s29, 32
          %s317 = smul.addr %s316, 128
          %s318 = scalar_lea.hbm %s0, %s317
          %s319 = sshll.u32 %s312, 4
          %s320 = int_to_ptr.vmem [resolvable:$true] %s319
          %325 = dma.hbm_to_vmem [thread:$0]  %s318, 4096, %s320, %s309, 128, 128, 8
        $region48: #{tpu_custom_call.1} parent=43 // pred_fallthru
          _
      $region44: #{tpu_custom_call.1} parent=5 // pred_fallthru
        _
      %p326 = scmp.le.s32.totalorder 1, %s22
      %p327 = scmp.lt.s32.totalorder %s22, 3
      %p328 = pnand %p326, %p327
      %p329 = pneg %p328
      // Predicated region
      $region49: #{tpu_custom_call.1} parent=5 // pred_check
        _
      $region50: #{tpu_custom_call.1} parent=5 // pred_check_branch
        %331 = sbr.rel (%p328) target = $region52
      $region51: #{tpu_custom_call.1} parent=5 // pred_region
        %s332 = ssub.s32 %s22, 1
        %s333 = sand.u32 %s47, 1
        %s334 = scalar_lea.sflag [#allocation7], %s333
        %s335 = sand.u32 %s47, 1
        %s336 = smul.addr %s335, 256
        %s337 = scalar_lea.vmem [#allocation6], %s336
        // Predicated region
        $region53: #{tpu_custom_call.1} parent=51 // pred_check
          %p338 = pneg %p60
        $region54: #{tpu_custom_call.1} parent=51 // pred_check_branch
          %340 = sbr.rel (%p338) target = $region56
        $region55: #{tpu_custom_call.1} parent=51 // pred_region
          %341 = dma.done %s334, 4096
        $region56: #{tpu_custom_call.1} parent=51 // pred_fallthru
          _
        // Predicated region
        $region57: #{tpu_custom_call.1} parent=51 // pred_check
          %p342 = pneg %p81
        $region58: #{tpu_custom_call.1} parent=51 // pred_check_branch
          %344 = sbr.rel (%p342) target = $region60
        $region59: #{tpu_custom_call.1} parent=51 // pred_region
          %345 = dma.done [#allocation10], 2048
        $region60: #{tpu_custom_call.1} parent=51 // pred_fallthru
          _
        // Predicated region
        $region61: #{tpu_custom_call.1} parent=51 // pred_check
          %p346 = pneg %p144
        $region62: #{tpu_custom_call.1} parent=51 // pred_check_branch
          %348 = sbr.rel (%p346) target = $region64
        $region63: #{tpu_custom_call.1} parent=51 // pred_region
          %349 = dma.done [#allocation10], 3072
        $region64: #{tpu_custom_call.1} parent=51 // pred_fallthru
          _
        // Predicated region
        $region65: #{tpu_custom_call.1} parent=51 // pred_check
          %p350 = pneg %p186
        $region66: #{tpu_custom_call.1} parent=51 // pred_check_branch
          %352 = sbr.rel (%p350) target = $region68
        $region67: #{tpu_custom_call.1} parent=51 // pred_region
          %353 = dma.done [#allocation13], 1024
        $region68: #{tpu_custom_call.1} parent=51 // pred_fallthru
          _
        %s354 = sand.u32 %s47, 1
        %s355 = scalar_lea.sflag [#allocation7], %s354
        %s356 = sand.u32 %s47, 1
        %s357 = smul.addr %s356, 256
        %s358 = scalar_lea.vmem [#allocation6], %s357
        %p359 = pneg %p60
        %p360 = pneg %p57
        %p361 = pneg %p81
        %p362 = pneg %p78
        %p363 = pneg %p102
        %p364 = pneg %p99
        %p365 = pneg %p123
        %p366 = pneg %p120
        %p367 = pneg %p144
        %p368 = pneg %p141
        %p369 = pneg %p165
        %p370 = pneg %p162
        %p371 = pneg %p186
        %p372 = pneg %p183
        %p373 = pneg %p207
        %p374 = pneg %p204
        %p375 = pneg %p235
        %p376 = pneg %p232
        %s377 = sand.u32 %s222, 1
        %s378 = scalar_lea.sflag [#allocation8], %s377
        %s379 = sand.u32 %s222, 1
        %s380 = smul.addr %s379, 256
        %s381 = scalar_lea.vmem [#allocation14], %s380
        %s382 = smul.u32 32, %s32
        %p384 = scmp.eq.s32.totalorder %s32, 0
        // Predicated region
        $region69: #{tpu_custom_call.1} parent=51 // pred_check
          %p385 = pneg %p384
        $region70: #{tpu_custom_call.1} parent=51 // pred_check_branch
          %387 = sbr.rel (%p385) target = $region72
        $region71: #{tpu_custom_call.1} parent=51 // pred_region
          %v388 = vld [vmem:[%s337] sm:$0xff]
          %v389 = vld [vmem:[%s337 + $0x8] sm:$0xff]
          %v390 = vld [vmem:[%s337 + $0x10] sm:$0xff]
          %v391 = vld [vmem:[%s337 + $0x18] sm:$0xff]
          %v392 = vld [vmem:[%s337 + $0x20] sm:$0xff]
          %v393 = vld [vmem:[%s337 + $0x28] sm:$0xff]
          %v394 = vld [vmem:[%s337 + $0x30] sm:$0xff]
          %v395 = vld [vmem:[%s337 + $0x38] sm:$0xff]
          %v396 = vld [vmem:[%s337 + $0x40] sm:$0xff]
          %v397 = vld [vmem:[%s337 + $0x48] sm:$0xff]
          %v398 = vld [vmem:[%s337 + $0x50] sm:$0xff]
          %v399 = vld [vmem:[%s337 + $0x58] sm:$0xff]
          %v400 = vld [vmem:[%s337 + $0x60] sm:$0xff]
          %v401 = vld [vmem:[%s337 + $0x68] sm:$0xff]
          %v402 = vld [vmem:[%s337 + $0x70] sm:$0xff]
          %v403 = vld [vmem:[%s337 + $0x78] sm:$0xff]
          %v404 = vld [vmem:[%s337 + $0x80] sm:$0xff]
          %v405 = vld [vmem:[%s337 + $0x88] sm:$0xff]
          %v406 = vld [vmem:[%s337 + $0x90] sm:$0xff]
          %v407 = vld [vmem:[%s337 + $0x98] sm:$0xff]
          %v408 = vld [vmem:[%s337 + $0xa0] sm:$0xff]
          %v409 = vld [vmem:[%s337 + $0xa8] sm:$0xff]
          %v410 = vld [vmem:[%s337 + $0xb0] sm:$0xff]
          %v411 = vld [vmem:[%s337 + $0xb8] sm:$0xff]
          %v412 = vld [vmem:[%s337 + $0xc0] sm:$0xff]
          %v413 = vld [vmem:[%s337 + $0xc8] sm:$0xff]
          %v414 = vld [vmem:[%s337 + $0xd0] sm:$0xff]
          %v415 = vld [vmem:[%s337 + $0xd8] sm:$0xff]
          %v416 = vld [vmem:[%s337 + $0xe0] sm:$0xff]
          %v417 = vld [vmem:[%s337 + $0xe8] sm:$0xff]
          %v418 = vld [vmem:[%s337 + $0xf0] sm:$0xff]
          %v419 = vld [vmem:[%s337 + $0xf8] sm:$0xff]
          %v420 = vld [vmem:[#allocation9] sm:$0xff]
          %v421 = vld [vmem:[#allocation9 + $0x8] sm:$0xff]
          %v422 = vld [vmem:[#allocation9 + $0x10] sm:$0xff]
          %v423 = vld [vmem:[#allocation9 + $0x18] sm:$0xff]
          %v424 = vld [vmem:[#allocation9 + $0x20] sm:$0xff]
          %v425 = vld [vmem:[#allocation9 + $0x28] sm:$0xff]
          %v426 = vld [vmem:[#allocation9 + $0x30] sm:$0xff]
          %v427 = vld [vmem:[#allocation9 + $0x38] sm:$0xff]
          %v428 = vld [vmem:[#allocation9 + $0x40] sm:$0xff]
          %v429 = vld [vmem:[#allocation9 + $0x48] sm:$0xff]
          %v430 = vld [vmem:[#allocation9 + $0x50] sm:$0xff]
          %v431 = vld [vmem:[#allocation9 + $0x58] sm:$0xff]
          %v432 = vld [vmem:[#allocation9 + $0x60] sm:$0xff]
          %v433 = vld [vmem:[#allocation9 + $0x68] sm:$0xff]
          %v434 = vld [vmem:[#allocation9 + $0x70] sm:$0xff]
          %v435 = vld [vmem:[#allocation9 + $0x78] sm:$0xff]
          %v436 = vadd.f32 %v388, %v389
          %v437 = vadd.f32 %v436, %v390
          %v438 = vadd.f32 %v437, %v391
          %v439 = vadd.f32 %v438, %v392
          %v440 = vadd.f32 %v439, %v393
          %v441 = vadd.f32 %v440, %v394
          %v442 = vadd.f32 %v441, %v395
          %v443 = vadd.f32 %v442, %v396
          %v444 = vadd.f32 %v443, %v397
          %v445 = vadd.f32 %v444, %v398
          %v446 = vadd.f32 %v445, %v399
          %v447 = vadd.f32 %v446, %v400
          %v448 = vadd.f32 %v447, %v401
          %v449 = vadd.f32 %v448, %v402
          %v450 = vadd.f32 %v449, %v403
          %v451 = vadd.f32 %v450, %v404
          %v452 = vadd.f32 %v451, %v405
          %v453 = vadd.f32 %v452, %v406
          %v454 = vadd.f32 %v453, %v407
          %v455 = vadd.f32 %v454, %v408
          %v456 = vadd.f32 %v455, %v409
          %v457 = vadd.f32 %v456, %v410
          %v458 = vadd.f32 %v457, %v411
          %v459 = vadd.f32 %v458, %v412
          %v460 = vadd.f32 %v459, %v413
          %v461 = vadd.f32 %v460, %v414
          %v462 = vadd.f32 %v461, %v415
          %v463 = vadd.f32 %v462, %v416
          %v464 = vadd.f32 %v463, %v417
          %v465 = vadd.f32 %v464, %v418
          %v466 = vadd.f32 %v465, %v419
          %v467 = vrot.slane %v466, 4
          %v468 = vadd.f32 %v466, %v467
          %v469 = vrot.slane %v468, 2
          %v470 = vadd.f32 %v468, %v469
          %v471 = vrot.slane %v470, 1
          %v472 = vadd.f32 %v470, %v471
          %v473 = vmul.f32 %v472, 0.00390625
          %474 = vmatprep.subr.mxu0 0.0
          %475 = vmatpush1.msra.mxu0 %v420
          %476 = vmatprep.subr.mxu0 0.0
          %477 = vmatpush1.msra.mxu0 %v421
          %478 = vmatprep.subr.mxu0 0.0
          %479 = vmatpush1.msra.mxu0 %v422
          %480 = vmatprep.subr.mxu0 0.0
          %481 = vmatpush1.msra.mxu0 %v423
          %482 = vmatprep.subr.mxu0 0.0
          %483 = vmatpush1.msra.mxu0 %v424
          %484 = vmatprep.subr.mxu0 0.0
          %485 = vmatpush1.msra.mxu0 %v425
          %486 = vmatprep.subr.mxu0 0.0
          %487 = vmatpush1.msra.mxu0 %v426
          %488 = vmatprep.subr.mxu0 0.0
          %489 = vmatpush1.msra.mxu0 %v427
          %490 = vmatprep.subr.mxu0 0.0
          %491 = vmatpush1.msra.mxu0 %v428
          %492 = vmatprep.subr.mxu0 0.0
          %493 = vmatpush1.msra.mxu0 %v429
          %494 = vmatprep.subr.mxu0 0.0
          %495 = vmatpush1.msra.mxu0 %v430
          %496 = vmatprep.subr.mxu0 0.0
          %497 = vmatpush1.msra.mxu0 %v431
          %498 = vmatprep.subr.mxu0 0.0
          %499 = vmatpush1.msra.mxu0 %v432
          %500 = vmatprep.subr.mxu0 0.0
          %501 = vmatpush1.msra.mxu0 %v433
          %502 = vmatprep.subr.mxu0 0.0
          %503 = vmatpush1.msra.mxu0 %v434
          %504 = vmatprep.subr.mxu0 0.0
          %505 = vmatpush1.msra.mxu0 %v435
          %506 = vmatprep.subr.mxu0 0.0
          %507 = vmatpush1.msra.mxu0 0.0
          %508 = vmatprep.subr.mxu0 0.0
          %509 = vmatpush1.msra.mxu0 0.0
          %510 = vmatprep.subr.mxu0 0.0
          %511 = vmatpush1.msra.mxu0 0.0
          %512 = vmatprep.subr.mxu0 0.0
          %513 = vmatpush1.msra.mxu0 0.0
          %514 = vmatprep.subr.mxu0 0.0
          %515 = vmatpush1.msra.mxu0 0.0
          %516 = vmatprep.subr.mxu0 0.0
          %517 = vmatpush1.msra.mxu0 0.0
          %518 = vmatprep.subr.mxu0 0.0
          %519 = vmatpush1.msra.mxu0 0.0
          %520 = vmatprep.subr.mxu0 0.0
          %521 = vmatpush1.msra.mxu0 0.0
          %522 = vmatprep.subr.mxu0 0.0
          %523 = vmatpush1.msra.mxu0 0.0
          %524 = vmatprep.subr.mxu0 0.0
          %525 = vmatpush1.msra.mxu0 0.0
          %526 = vmatprep.subr.mxu0 0.0
          %527 = vmatpush1.msra.mxu0 0.0
          %528 = vmatprep.subr.mxu0 0.0
          %529 = vmatpush1.msra.mxu0 0.0
          %530 = vmatprep.subr.mxu0 0.0
          %531 = vmatpush1.msra.mxu0 0.0
          %532 = vmatprep.subr.mxu0 0.0
          %533 = vmatpush1.msra.mxu0 0.0
          %534 = vmatprep.subr.mxu0 0.0
          %535 = vmatpush1.msra.mxu0 0.0
          %536 = vmatprep.subr.mxu0 0.0
          %537 = vmatpush1.msra.mxu0 0.0
          %538 = vmatprep.mubr.f32.mxu0 0.0
          %539 = vmatmul.mubr.f32.gmra.mrb[0].mxu0 %v473
          %v540 = vpop.f32.mrb[0].mxu0
          %v541 = vadd.f32 0.0, %v540
          %v542 = vpop.f32.mrb[0].mxu0
          %543 = vdwg.mxu0
          %v544 = vlaneseq
          %v545 = vshrl.u32 %v544, 7
          %v546 = vsub.s32 0, %v545
          %v547 = vrot.slane %v541, %v546
          %v548 = vsub.f32 %v388, %v547
          %v549 = vsub.f32 %v389, %v547
          %v550 = vsub.f32 %v390, %v547
          %v551 = vsub.f32 %v391, %v547
          %v552 = vsub.f32 %v392, %v547
          %v553 = vsub.f32 %v393, %v547
          %v554 = vsub.f32 %v394, %v547
          %v555 = vsub.f32 %v395, %v547
          %v556 = vsub.f32 %v396, %v547
          %v557 = vsub.f32 %v397, %v547
          %v558 = vsub.f32 %v398, %v547
          %v559 = vsub.f32 %v399, %v547
          %v560 = vsub.f32 %v400, %v547
          %v561 = vsub.f32 %v401, %v547
          %v562 = vsub.f32 %v402, %v547
          %v563 = vsub.f32 %v403, %v547
          %v564 = vsub.f32 %v404, %v547
          %v565 = vsub.f32 %v405, %v547
          %v566 = vsub.f32 %v406, %v547
          %v567 = vsub.f32 %v407, %v547
          %v568 = vsub.f32 %v408, %v547
          %v569 = vsub.f32 %v409, %v547
          %v570 = vsub.f32 %v410, %v547
          %v571 = vsub.f32 %v411, %v547
          %v572 = vsub.f32 %v412, %v547
          %v573 = vsub.f32 %v413, %v547
          %v574 = vsub.f32 %v414, %v547
          %v575 = vsub.f32 %v415, %v547
          %v576 = vsub.f32 %v416, %v547
          %v577 = vsub.f32 %v417, %v547
          %v578 = vsub.f32 %v418, %v547
          %v579 = vsub.f32 %v419, %v547
          %v580 = vmul.f32 %v548, %v548
          %v581 = vmul.f32 %v549, %v549
          %v582 = vmul.f32 %v550, %v550
          %v583 = vmul.f32 %v551, %v551
          %v584 = vmul.f32 %v552, %v552
          %v585 = vmul.f32 %v553, %v553
          %v586 = vmul.f32 %v554, %v554
          %v587 = vmul.f32 %v555, %v555
          %v588 = vmul.f32 %v556, %v556
          %v589 = vmul.f32 %v557, %v557
          %v590 = vmul.f32 %v558, %v558
          %v591 = vmul.f32 %v559, %v559
          %v592 = vmul.f32 %v560, %v560
          %v593 = vmul.f32 %v561, %v561
          %v594 = vmul.f32 %v562, %v562
          %v595 = vmul.f32 %v563, %v563
          %v596 = vmul.f32 %v564, %v564
          %v597 = vmul.f32 %v565, %v565
          %v598 = vmul.f32 %v566, %v566
          %v599 = vmul.f32 %v567, %v567
          %v600 = vmul.f32 %v568, %v568
          %v601 = vmul.f32 %v569, %v569
          %v602 = vmul.f32 %v570, %v570
          %v603 = vmul.f32 %v571, %v571
          %v604 = vmul.f32 %v572, %v572
          %v605 = vmul.f32 %v573, %v573
          %v606 = vmul.f32 %v574, %v574
          %v607 = vmul.f32 %v575, %v575
          %v608 = vmul.f32 %v576, %v576
          %v609 = vmul.f32 %v577, %v577
          %v610 = vmul.f32 %v578, %v578
          %v611 = vmul.f32 %v579, %v579
          %v612 = vadd.f32 %v580, %v581
          %v613 = vadd.f32 %v612, %v582
          %v614 = vadd.f32 %v613, %v583
          %v615 = vadd.f32 %v614, %v584
          %v616 = vadd.f32 %v615, %v585
          %v617 = vadd.f32 %v616, %v586
          %v618 = vadd.f32 %v617, %v587
          %v619 = vadd.f32 %v618, %v588
          %v620 = vadd.f32 %v619, %v589
          %v621 = vadd.f32 %v620, %v590
          %v622 = vadd.f32 %v621, %v591
          %v623 = vadd.f32 %v622, %v592
          %v624 = vadd.f32 %v623, %v593
          %v625 = vadd.f32 %v624, %v594
          %v626 = vadd.f32 %v625, %v595
          %v627 = vadd.f32 %v626, %v596
          %v628 = vadd.f32 %v627, %v597
          %v629 = vadd.f32 %v628, %v598
          %v630 = vadd.f32 %v629, %v599
          %v631 = vadd.f32 %v630, %v600
          %v632 = vadd.f32 %v631, %v601
          %v633 = vadd.f32 %v632, %v602
          %v634 = vadd.f32 %v633, %v603
          %v635 = vadd.f32 %v634, %v604
          %v636 = vadd.f32 %v635, %v605
          %v637 = vadd.f32 %v636, %v606
          %v638 = vadd.f32 %v637, %v607
          %v639 = vadd.f32 %v638, %v608
          %v640 = vadd.f32 %v639, %v609
          %v641 = vadd.f32 %v640, %v610
          %v642 = vadd.f32 %v641, %v611
          %v643 = vrot.slane %v642, 4
          %v644 = vadd.f32 %v642, %v643
          %v645 = vrot.slane %v644, 2
          %v646 = vadd.f32 %v644, %v645
          %v647 = vrot.slane %v646, 1
          %v648 = vadd.f32 %v646, %v647
          %v649 = vmul.f32 %v648, 0.00390625
          %650 = vmatprep.subr.mxu0 0.0
          %651 = vmatpush1.msra.mxu0 %v420
          %652 = vmatprep.subr.mxu0 0.0
          %653 = vmatpush1.msra.mxu0 %v421
          %654 = vmatprep.subr.mxu0 0.0
          %655 = vmatpush1.msra.mxu0 %v422
          %656 = vmatprep.subr.mxu0 0.0
          %657 = vmatpush1.msra.mxu0 %v423
          %658 = vmatprep.subr.mxu0 0.0
          %659 = vmatpush1.msra.mxu0 %v424
          %660 = vmatprep.subr.mxu0 0.0
          %661 = vmatpush1.msra.mxu0 %v425
          %662 = vmatprep.subr.mxu0 0.0
          %663 = vmatpush1.msra.mxu0 %v426
          %664 = vmatprep.subr.mxu0 0.0
          %665 = vmatpush1.msra.mxu0 %v427
          %666 = vmatprep.subr.mxu0 0.0
          %667 = vmatpush1.msra.mxu0 %v428
          %668 = vmatprep.subr.mxu0 0.0
          %669 = vmatpush1.msra.mxu0 %v429
          %670 = vmatprep.subr.mxu0 0.0
          %671 = vmatpush1.msra.mxu0 %v430
          %672 = vmatprep.subr.mxu0 0.0
          %673 = vmatpush1.msra.mxu0 %v431
          %674 = vmatprep.subr.mxu0 0.0
          %675 = vmatpush1.msra.mxu0 %v432
          %676 = vmatprep.subr.mxu0 0.0
          %677 = vmatpush1.msra.mxu0 %v433
          %678 = vmatprep.subr.mxu0 0.0
          %679 = vmatpush1.msra.mxu0 %v434
          %680 = vmatprep.subr.mxu0 0.0
          %681 = vmatpush1.msra.mxu0 %v435
          %682 = vmatprep.subr.mxu0 0.0
          %683 = vmatpush1.msra.mxu0 0.0
          %684 = vmatprep.subr.mxu0 0.0
          %685 = vmatpush1.msra.mxu0 0.0
          %686 = vmatprep.subr.mxu0 0.0
          %687 = vmatpush1.msra.mxu0 0.0
          %688 = vmatprep.subr.mxu0 0.0
          %689 = vmatpush1.msra.mxu0 0.0
          %690 = vmatprep.subr.mxu0 0.0
          %691 = vmatpush1.msra.mxu0 0.0
          %692 = vmatprep.subr.mxu0 0.0
          %693 = vmatpush1.msra.mxu0 0.0
          %694 = vmatprep.subr.mxu0 0.0
          %695 = vmatpush1.msra.mxu0 0.0
          %696 = vmatprep.subr.mxu0 0.0
          %697 = vmatpush1.msra.mxu0 0.0
          %698 = vmatprep.subr.mxu0 0.0
          %699 = vmatpush1.msra.mxu0 0.0
          %700 = vmatprep.subr.mxu0 0.0
          %701 = vmatpush1.msra.mxu0 0.0
          %702 = vmatprep.subr.mxu0 0.0
          %703 = vmatpush1.msra.mxu0 0.0
          %704 = vmatprep.subr.mxu0 0.0
          %705 = vmatpush1.msra.mxu0 0.0
          %706 = vmatprep.subr.mxu0 0.0
          %707 = vmatpush1.msra.mxu0 0.0
          %708 = vmatprep.subr.mxu0 0.0
          %709 = vmatpush1.msra.mxu0 0.0
          %710 = vmatprep.subr.mxu0 0.0
          %711 = vmatpush1.msra.mxu0 0.0
          %712 = vmatprep.subr.mxu0 0.0
          %713 = vmatpush1.msra.mxu0 0.0
          %714 = vmatprep.mubr.f32.mxu0 0.0
          %715 = vmatmul.mubr.f32.gmra.mrb[0].mxu0 %v649
          %v716 = vpop.f32.mrb[0].mxu0
          %v717 = vadd.f32 1e-05, %v716
          %v718 = vpop.f32.mrb[0].mxu0
          %719 = vdwg.mxu0
          %v720 = vrsqrt.pop %v717
          %v721 = vlaneseq
          %v722 = vshrl.u32 %v721, 7
          %v723 = vsub.s32 0, %v722
          %v724 = vrot.slane %v720, %v723
          %v725 = vmul.f32 %v548, %v724
          %v726 = vmul.f32 %v549, %v724
          %v727 = vmul.f32 %v550, %v724
          %v728 = vmul.f32 %v551, %v724
          %v729 = vmul.f32 %v552, %v724
          %v730 = vmul.f32 %v553, %v724
          %v731 = vmul.f32 %v554, %v724
          %v732 = vmul.f32 %v555, %v724
          %v733 = vmul.f32 %v556, %v724
          %v734 = vmul.f32 %v557, %v724
          %v735 = vmul.f32 %v558, %v724
          %v736 = vmul.f32 %v559, %v724
          %v737 = vmul.f32 %v560, %v724
          %v738 = vmul.f32 %v561, %v724
          %v739 = vmul.f32 %v562, %v724
          %v740 = vmul.f32 %v563, %v724
          %v741 = vmul.f32 %v564, %v724
          %v742 = vmul.f32 %v565, %v724
          %v743 = vmul.f32 %v566, %v724
          %v744 = vmul.f32 %v567, %v724
          %v745 = vmul.f32 %v568, %v724
          %v746 = vmul.f32 %v569, %v724
          %v747 = vmul.f32 %v570, %v724
          %v748 = vmul.f32 %v571, %v724
          %v749 = vmul.f32 %v572, %v724
          %v750 = vmul.f32 %v573, %v724
          %v751 = vmul.f32 %v574, %v724
          %v752 = vmul.f32 %v575, %v724
          %v753 = vmul.f32 %v576, %v724
          %v754 = vmul.f32 %v577, %v724
          %v755 = vmul.f32 %v578, %v724
          %v756 = vmul.f32 %v579, %v724
          %v757 = vld [vmem:[%s2] sm:$0x1]
          %v759 = vlaneseq
          %v760 = vshrl.u32 %v759, 7
          %v761 = vsub.s32 0, %v760
          %v762 = vrot.slane %v757, %v761
          %v764 = vmul.f32 %v725, %v762
          %v765 = vmul.f32 %v726, %v762
          %v766 = vmul.f32 %v727, %v762
          %v767 = vmul.f32 %v728, %v762
          %v768 = vmul.f32 %v729, %v762
          %v769 = vmul.f32 %v730, %v762
          %v770 = vmul.f32 %v731, %v762
          %v771 = vmul.f32 %v732, %v762
          %v772 = vmul.f32 %v733, %v762
          %v773 = vmul.f32 %v734, %v762
          %v774 = vmul.f32 %v735, %v762
          %v775 = vmul.f32 %v736, %v762
          %v776 = vmul.f32 %v737, %v762
          %v777 = vmul.f32 %v738, %v762
          %v778 = vmul.f32 %v739, %v762
          %v779 = vmul.f32 %v740, %v762
          %v780 = vmul.f32 %v741, %v762
          %v781 = vmul.f32 %v742, %v762
          %v782 = vmul.f32 %v743, %v762
          %v783 = vmul.f32 %v744, %v762
          %v784 = vmul.f32 %v745, %v762
          %v785 = vmul.f32 %v746, %v762
          %v786 = vmul.f32 %v747, %v762
          %v787 = vmul.f32 %v748, %v762
          %v788 = vmul.f32 %v749, %v762
          %v789 = vmul.f32 %v750, %v762
          %v790 = vmul.f32 %v751, %v762
          %v791 = vmul.f32 %v752, %v762
          %v792 = vmul.f32 %v753, %v762
          %v793 = vmul.f32 %v754, %v762
          %v794 = vmul.f32 %v755, %v762
          %v795 = vmul.f32 %v756, %v762
          %v796 = vld [vmem:[%s3] sm:$0x1]
          %v798 = vlaneseq
          %v799 = vshrl.u32 %v798, 7
          %v800 = vsub.s32 0, %v799
          %v801 = vrot.slane %v796, %v800
          %v803 = vadd.f32 %v764, %v801
          %v804 = vadd.f32 %v765, %v801
          %v805 = vadd.f32 %v766, %v801
          %v806 = vadd.f32 %v767, %v801
          %v807 = vadd.f32 %v768, %v801
          %v808 = vadd.f32 %v769, %v801
          %v809 = vadd.f32 %v770, %v801
          %v810 = vadd.f32 %v771, %v801
          %v811 = vadd.f32 %v772, %v801
          %v812 = vadd.f32 %v773, %v801
          %v813 = vadd.f32 %v774, %v801
          %v814 = vadd.f32 %v775, %v801
          %v815 = vadd.f32 %v776, %v801
          %v816 = vadd.f32 %v777, %v801
          %v817 = vadd.f32 %v778, %v801
          %v818 = vadd.f32 %v779, %v801
          %v819 = vadd.f32 %v780, %v801
          %v820 = vadd.f32 %v781, %v801
          %v821 = vadd.f32 %v782, %v801
          %v822 = vadd.f32 %v783, %v801
          %v823 = vadd.f32 %v784, %v801
          %v824 = vadd.f32 %v785, %v801
          %v825 = vadd.f32 %v786, %v801
          %v826 = vadd.f32 %v787, %v801
          %v827 = vadd.f32 %v788, %v801
          %v828 = vadd.f32 %v789, %v801
          %v829 = vadd.f32 %v790, %v801
          %v830 = vadd.f32 %v791, %v801
          %v831 = vadd.f32 %v792, %v801
          %v832 = vadd.f32 %v793, %v801
          %v833 = vadd.f32 %v794, %v801
          %v834 = vadd.f32 %v795, %v801
          %835 = vst [vmem:[#allocation2] sm:$0xff] %v803
          %836 = vst [vmem:[#allocation2 + $0x8] sm:$0xff] %v804
          %837 = vst [vmem:[#allocation2 + $0x10] sm:$0xff] %v805
          %838 = vst [vmem:[#allocation2 + $0x18] sm:$0xff] %v806
          %839 = vst [vmem:[#allocation2 + $0x20] sm:$0xff] %v807
          %840 = vst [vmem:[#allocation2 + $0x28] sm:$0xff] %v808
          %841 = vst [vmem:[#allocation2 + $0x30] sm:$0xff] %v809
          %842 = vst [vmem:[#allocation2 + $0x38] sm:$0xff] %v810
          %843 = vst [vmem:[#allocation2 + $0x40] sm:$0xff] %v811
          %844 = vst [vmem:[#allocation2 + $0x48] sm:$0xff] %v812
          %845 = vst [vmem:[#allocation2 + $0x50] sm:$0xff] %v813
          %846 = vst [vmem:[#allocation2 + $0x58] sm:$0xff] %v814
          %847 = vst [vmem:[#allocation2 + $0x60] sm:$0xff] %v815
          %848 = vst [vmem:[#allocation2 + $0x68] sm:$0xff] %v816
          %849 = vst [vmem:[#allocation2 + $0x70] sm:$0xff] %v817
          %850 = vst [vmem:[#allocation2 + $0x78] sm:$0xff] %v818
          %851 = vst [vmem:[#allocation2 + $0x80] sm:$0xff] %v819
          %852 = vst [vmem:[#allocation2 + $0x88] sm:$0xff] %v820
          %853 = vst [vmem:[#allocation2 + $0x90] sm:$0xff] %v821
          %854 = vst [vmem:[#allocation2 + $0x98] sm:$0xff] %v822
          %855 = vst [vmem:[#allocation2 + $0xa0] sm:$0xff] %v823
          %856 = vst [vmem:[#allocation2 + $0xa8] sm:$0xff] %v824
          %857 = vst [vmem:[#allocation2 + $0xb0] sm:$0xff] %v825
          %858 = vst [vmem:[#allocation2 + $0xb8] sm:$0xff] %v826
          %859 = vst [vmem:[#allocation2 + $0xc0] sm:$0xff] %v827
          %860 = vst [vmem:[#allocation2 + $0xc8] sm:$0xff] %v828
          %861 = vst [vmem:[#allocation2 + $0xd0] sm:$0xff] %v829
          %862 = vst [vmem:[#allocation2 + $0xd8] sm:$0xff] %v830
          %863 = vst [vmem:[#allocation2 + $0xe0] sm:$0xff] %v831
          %864 = vst [vmem:[#allocation2 + $0xe8] sm:$0xff] %v832
          %865 = vst [vmem:[#allocation2 + $0xf0] sm:$0xff] %v833
          %866 = vst [vmem:[#allocation2 + $0xf8] sm:$0xff] %v834
          %v867 = vpack.c.bf16 %v804, %v803
          %v868 = vpack.c.bf16 %v806, %v805
          %v869 = vpack.c.bf16 %v808, %v807
          %v870 = vpack.c.bf16 %v810, %v809
          %v871 = vpack.c.bf16 %v812, %v811
          %v872 = vpack.c.bf16 %v814, %v813
          %v873 = vpack.c.bf16 %v816, %v815
          %v874 = vpack.c.bf16 %v818, %v817
          %v875 = vpack.c.bf16 %v820, %v819
          %v876 = vpack.c.bf16 %v822, %v821
          %v877 = vpack.c.bf16 %v824, %v823
          %v878 = vpack.c.bf16 %v826, %v825
          %v879 = vpack.c.bf16 %v828, %v827
          %v880 = vpack.c.bf16 %v830, %v829
          %v881 = vpack.c.bf16 %v832, %v831
          %v882 = vpack.c.bf16 %v834, %v833
          %v883 = vld [vmem:[#allocation11] sm:$0xff]
          %v884 = vld [vmem:[#allocation11 + $0x8] sm:$0xf]
          %v885 = vld [vmem:[#allocation11 + $0xc] sm:$0xff]
          %v886 = vld [vmem:[#allocation11 + $0x14] sm:$0xf]
          %v887 = vld [vmem:[#allocation11 + $0x18] sm:$0xff]
          %v888 = vld [vmem:[#allocation11 + $0x20] sm:$0xf]
          %v889 = vld [vmem:[#allocation11 + $0x24] sm:$0xff]
          %v890 = vld [vmem:[#allocation11 + $0x2c] sm:$0xf]
          %v891 = vld [vmem:[#allocation11 + $0x30] sm:$0xff]
          %v892 = vld [vmem:[#allocation11 + $0x38] sm:$0xf]
          %v893 = vld [vmem:[#allocation11 + $0x3c] sm:$0xff]
          %v894 = vld [vmem:[#allocation11 + $0x44] sm:$0xf]
          %v895 = vld [vmem:[#allocation11 + $0x48] sm:$0xff]
          %v896 = vld [vmem:[#allocation11 + $0x50] sm:$0xf]
          %v897 = vld [vmem:[#allocation11 + $0x54] sm:$0xff]
          %v898 = vld [vmem:[#allocation11 + $0x5c] sm:$0xf]
          %v899 = vld [vmem:[#allocation11 + $0x60] sm:$0xff]
          %v900 = vld [vmem:[#allocation11 + $0x68] sm:$0xf]
          %v901 = vld [vmem:[#allocation11 + $0x6c] sm:$0xff]
          %v902 = vld [vmem:[#allocation11 + $0x74] sm:$0xf]
          %v903 = vld [vmem:[#allocation11 + $0x78] sm:$0xff]
          %v904 = vld [vmem:[#allocation11 + $0x80] sm:$0xf]
          %v905 = vld [vmem:[#allocation11 + $0x84] sm:$0xff]
          %v906 = vld [vmem:[#allocation11 + $0x8c] sm:$0xf]
          %v907 = vld [vmem:[#allocation11 + $0x90] sm:$0xff]
          %v908 = vld [vmem:[#allocation11 + $0x98] sm:$0xf]
          %v909 = vld [vmem:[#allocation11 + $0x9c] sm:$0xff]
          %v910 = vld [vmem:[#allocation11 + $0xa4] sm:$0xf]
          %v911 = vld [vmem:[#allocation11 + $0xa8] sm:$0xff]
          %v912 = vld [vmem:[#allocation11 + $0xb0] sm:$0xf]
          %v913 = vld [vmem:[#allocation11 + $0xb4] sm:$0xff]
          %v914 = vld [vmem:[#allocation11 + $0xbc] sm:$0xf]
          %v915 = vld [vmem:[%s5] sm:$0x7]
          %v917 = vlaneseq
          %v918 = vshrl.u32 %v917, 7
          %v919 = vsub.s32 0, %v918
          %v920 = vrot.slane %v915, %v919
          %v921 = vlaneseq
          %v922 = vshrl.u32 %v921, 7
          %v923 = vsub.s32 1, %v922
          %v924 = vrot.slane %v915, %v923
          %v925 = vlaneseq
          %v926 = vshrl.u32 %v925, 7
          %v927 = vsub.s32 2, %v926
          %v928 = vrot.slane %v915, %v927
          %v964 = vunpack.c.l.b16 %v883
          %v965 = vunpack.c.h.b16 %v883
          %v966 = vunpack.c.l.b16 %v884
          %v967 = vunpack.c.l.b16 %v885
          %v968 = vunpack.c.h.b16 %v885
          %v969 = vunpack.c.l.b16 %v886
          %v970 = vunpack.c.l.b16 %v887
          %v971 = vunpack.c.h.b16 %v887
          %v972 = vunpack.c.l.b16 %v888
          %v973 = vunpack.c.l.b16 %v889
          %v974 = vunpack.c.h.b16 %v889
          %v975 = vunpack.c.l.b16 %v890
          %v976 = vunpack.c.l.b16 %v891
          %v977 = vunpack.c.h.b16 %v891
          %v978 = vunpack.c.l.b16 %v892
          %v979 = vunpack.c.l.b16 %v893
          %v980 = vunpack.c.h.b16 %v893
          %v981 = vunpack.c.l.b16 %v894
          %v982 = vunpack.c.l.b16 %v895
          %v983 = vunpack.c.h.b16 %v895
          %v984 = vunpack.c.l.b16 %v896
          %v985 = vunpack.c.l.b16 %v897
          %v986 = vunpack.c.h.b16 %v897
          %v987 = vunpack.c.l.b16 %v898
          %v988 = vunpack.c.l.b16 %v899
          %v989 = vunpack.c.h.b16 %v899
          %v990 = vunpack.c.l.b16 %v900
          %v991 = vunpack.c.l.b16 %v901
          %v992 = vunpack.c.h.b16 %v901
          %v993 = vunpack.c.l.b16 %v902
          %v994 = vunpack.c.l.b16 %v903
          %v995 = vunpack.c.h.b16 %v903
          %v996 = vunpack.c.l.b16 %v904
          %v997 = vunpack.c.l.b16 %v905
          %v998 = vunpack.c.h.b16 %v905
          %v999 = vunpack.c.l.b16 %v906
          %v1000 = vunpack.c.l.b16 %v907
          %v1001 = vunpack.c.h.b16 %v907
          %v1002 = vunpack.c.l.b16 %v908
          %v1003 = vunpack.c.l.b16 %v909
          %v1004 = vunpack.c.h.b16 %v909
          %v1005 = vunpack.c.l.b16 %v910
          %v1006 = vunpack.c.l.b16 %v911
          %v1007 = vunpack.c.h.b16 %v911
          %v1008 = vunpack.c.l.b16 %v912
          %v1009 = vunpack.c.l.b16 %v913
          %v1010 = vunpack.c.h.b16 %v913
          %v1011 = vunpack.c.l.b16 %v914
          %v1012 = vpack.c.b16 %v967, %v964
          %v1013 = vpack.c.b16 %v968, %v965
          %v1014 = vpack.c.b16 %v969, %v966
          %v1015 = vpack.c.b16 %v973, %v970
          %v1016 = vpack.c.b16 %v974, %v971
          %v1017 = vpack.c.b16 %v975, %v972
          %v1018 = vpack.c.b16 %v979, %v976
          %v1019 = vpack.c.b16 %v980, %v977
          %v1020 = vpack.c.b16 %v981, %v978
          %v1021 = vpack.c.b16 %v985, %v982
          %v1022 = vpack.c.b16 %v986, %v983
          %v1023 = vpack.c.b16 %v987, %v984
          %v1024 = vpack.c.b16 %v991, %v988
          %v1025 = vpack.c.b16 %v992, %v989
          %v1026 = vpack.c.b16 %v993, %v990
          %v1027 = vpack.c.b16 %v997, %v994
          %v1028 = vpack.c.b16 %v998, %v995
          %v1029 = vpack.c.b16 %v999, %v996
          %v1030 = vpack.c.b16 %v1003, %v1000
          %v1031 = vpack.c.b16 %v1004, %v1001
          %v1032 = vpack.c.b16 %v1005, %v1002
          %v1033 = vpack.c.b16 %v1009, %v1006
          %v1034 = vpack.c.b16 %v1010, %v1007
          %v1035 = vpack.c.b16 %v1011, %v1008
          %1060 = vmatprep.subr.bf16.mxu0 %v1013
          %1061 = vmatpush1.bf16.msra.mxu0 %v1012
          %1062 = vmatprep.subr.bf16.mxu0 %v1016
          %1063 = vmatpush1.bf16.msra.mxu0 %v1015
          %1064 = vmatprep.subr.bf16.mxu0 %v1019
          %1065 = vmatpush1.bf16.msra.mxu0 %v1018
          %1066 = vmatprep.subr.bf16.mxu0 %v1022
          %1067 = vmatpush1.bf16.msra.mxu0 %v1021
          %1068 = vmatprep.subr.bf16.mxu0 %v1025
          %1069 = vmatpush1.bf16.msra.mxu0 %v1024
          %1070 = vmatprep.subr.bf16.mxu0 %v1028
          %1071 = vmatpush1.bf16.msra.mxu0 %v1027
          %1072 = vmatprep.subr.bf16.mxu0 %v1031
          %1073 = vmatpush1.bf16.msra.mxu0 %v1030
          %1074 = vmatprep.subr.bf16.mxu0 %v1034
          %1075 = vmatpush1.bf16.msra.mxu0 %v1033
          %1076 = vmatprep.subr.bf16.mxu0 0
          %1077 = vmatpush1.bf16.msra.mxu0 0
          %1078 = vmatprep.subr.bf16.mxu0 0
          %1079 = vmatpush1.bf16.msra.mxu0 0
          %1080 = vmatprep.subr.bf16.mxu0 0
          %1081 = vmatpush1.bf16.msra.mxu0 0
          %1082 = vmatprep.subr.bf16.mxu0 0
          %1083 = vmatpush1.bf16.msra.mxu0 0
          %1084 = vmatprep.subr.bf16.mxu0 0
          %1085 = vmatpush1.bf16.msra.mxu0 0
          %1086 = vmatprep.subr.bf16.mxu0 0
          %1087 = vmatpush1.bf16.msra.mxu0 0
          %1088 = vmatprep.subr.bf16.mxu0 0
          %1089 = vmatpush1.bf16.msra.mxu0 0
          %1090 = vmatprep.subr.bf16.mxu0 0
          %1091 = vmatpush1.bf16.msra.mxu0 0
          %1092 = vmatprep.mubr.bf16.mxu0 0
          %1093 = vmatmul.mubr.bf16.gmra.mrb[0].mxu0 %v867
          %v1094 = vpop.f32.mrb[0].mxu0
          %v1095 = vadd.f32 %v920, %v1094
          %v1096 = vpop.f32.mrb[0].mxu0
          %v1097 = vadd.f32 %v924, %v1096
          %v1098 = vpop.f32.mrb[0].mxu0
          %v1099 = vadd.f32 %v920, %v1098
          %v1100 = vpop.f32.mrb[0].mxu0
          %v1101 = vadd.f32 %v924, %v1100
          %1102 = vmatprep.mubr.bf16.mxu0 0
          %1103 = vmatmul.mubr.bf16.gmra.mrb[0].mxu0 %v868
          %v1104 = vpop.f32.mrb[0].mxu0
          %v1105 = vadd.f32 %v920, %v1104
          %v1106 = vpop.f32.mrb[0].mxu0
          %v1107 = vadd.f32 %v924, %v1106
          %v1108 = vpop.f32.mrb[0].mxu0
          %v1109 = vadd.f32 %v920, %v1108
          %v1110 = vpop.f32.mrb[0].mxu0
          %v1111 = vadd.f32 %v924, %v1110
          %1112 = vmatprep.mubr.bf16.mxu0 0
          %1113 = vmatmul.mubr.bf16.gmra.mrb[0].mxu0 %v869
          %v1114 = vpop.f32.mrb[0].mxu0
          %v1115 = vadd.f32 %v920, %v1114
          %v1116 = vpop.f32.mrb[0].mxu0
          %v1117 = vadd.f32 %v924, %v1116
          %v1118 = vpop.f32.mrb[0].mxu0
          %v1119 = vadd.f32 %v920, %v1118
          %v1120 = vpop.f32.mrb[0].mxu0
          %v1121 = vadd.f32 %v924, %v1120
          %1122 = vmatprep.mubr.bf16.mxu0 0
          %1123 = vmatmul.mubr.bf16.gmra.mrb[0].mxu0 %v870
          %v1124 = vpop.f32.mrb[0].mxu0
          %v1125 = vadd.f32 %v920, %v1124
          %v1126 = vpop.f32.mrb[0].mxu0
          %v1127 = vadd.f32 %v924, %v1126
          %v1128 = vpop.f32.mrb[0].mxu0
          %v1129 = vadd.f32 %v920, %v1128
          %v1130 = vpop.f32.mrb[0].mxu0
          %v1131 = vadd.f32 %v924, %v1130
          %1132 = vmatprep.mubr.bf16.mxu0 0
          %1133 = vmatmul.mubr.bf16.gmra.mrb[0].mxu0 %v871
          %v1134 = vpop.f32.mrb[0].mxu0
          %v1135 = vadd.f32 %v920, %v1134
          %v1136 = vpop.f32.mrb[0].mxu0
          %v1137 = vadd.f32 %v924, %v1136
          %v1138 = vpop.f32.mrb[0].mxu0
          %v1139 = vadd.f32 %v920, %v1138
          %v1140 = vpop.f32.mrb[0].mxu0
          %v1141 = vadd.f32 %v924, %v1140
          %1142 = vmatprep.mubr.bf16.mxu0 0
          %1143 = vmatmul.mubr.bf16.gmra.mrb[0].mxu0 %v872
          %v1144 = vpop.f32.mrb[0].mxu0
          %v1145 = vadd.f32 %v920, %v1144
          %v1146 = vpop.f32.mrb[0].mxu0
          %v1147 = vadd.f32 %v924, %v1146
          %v1148 = vpop.f32.mrb[0].mxu0
          %v1149 = vadd.f32 %v920, %v1148
          %v1150 = vpop.f32.mrb[0].mxu0
          %v1151 = vadd.f32 %v924, %v1150
          %1152 = vmatprep.mubr.bf16.mxu0 0
          %1153 = vmatmul.mubr.bf16.gmra.mrb[0].mxu0 %v873
          %v1154 = vpop.f32.mrb[0].mxu0
          %v1155 = vadd.f32 %v920, %v1154
          %v1156 = vpop.f32.mrb[0].mxu0
          %v1157 = vadd.f32 %v924, %v1156
          %v1158 = vpop.f32.mrb[0].mxu0
          %v1159 = vadd.f32 %v920, %v1158
          %v1160 = vpop.f32.mrb[0].mxu0
          %v1161 = vadd.f32 %v924, %v1160
          %1162 = vmatprep.mubr.bf16.mxu0 0
          %1163 = vmatmul.mubr.bf16.gmra.mrb[0].mxu0 %v874
          %v1164 = vpop.f32.mrb[0].mxu0
          %v1165 = vadd.f32 %v920, %v1164
          %v1166 = vpop.f32.mrb[0].mxu0
          %v1167 = vadd.f32 %v924, %v1166
          %v1168 = vpop.f32.mrb[0].mxu0
          %v1169 = vadd.f32 %v920, %v1168
          %v1170 = vpop.f32.mrb[0].mxu0
          %v1171 = vadd.f32 %v924, %v1170
          %1172 = vmatprep.mubr.bf16.mxu0 0
          %1173 = vmatmul.mubr.bf16.gmra.mrb[0].mxu0 %v875
          %v1174 = vpop.f32.mrb[0].mxu0
          %v1175 = vadd.f32 %v920, %v1174
          %v1176 = vpop.f32.mrb[0].mxu0
          %v1177 = vadd.f32 %v924, %v1176
          %v1178 = vpop.f32.mrb[0].mxu0
          %v1179 = vadd.f32 %v920, %v1178
          %v1180 = vpop.f32.mrb[0].mxu0
          %v1181 = vadd.f32 %v924, %v1180
          %1182 = vmatprep.mubr.bf16.mxu0 0
          %1183 = vmatmul.mubr.bf16.gmra.mrb[0].mxu0 %v876
          %v1184 = vpop.f32.mrb[0].mxu0
          %v1185 = vadd.f32 %v920, %v1184
          %v1186 = vpop.f32.mrb[0].mxu0
          %v1187 = vadd.f32 %v924, %v1186
          %v1188 = vpop.f32.mrb[0].mxu0
          %v1189 = vadd.f32 %v920, %v1188
          %v1190 = vpop.f32.mrb[0].mxu0
          %v1191 = vadd.f32 %v924, %v1190
          %1192 = vmatprep.mubr.bf16.mxu0 0
          %1193 = vmatmul.mubr.bf16.gmra.mrb[0].mxu0 %v877
          %v1194 = vpop.f32.mrb[0].mxu0
          %v1195 = vadd.f32 %v920, %v1194
          %v1196 = vpop.f32.mrb[0].mxu0
          %v1197 = vadd.f32 %v924, %v1196
          %v1198 = vpop.f32.mrb[0].mxu0
          %v1199 = vadd.f32 %v920, %v1198
          %v1200 = vpop.f32.mrb[0].mxu0
          %v1201 = vadd.f32 %v924, %v1200
          %1202 = vmatprep.mubr.bf16.mxu0 0
          %1203 = vmatmul.mubr.bf16.gmra.mrb[0].mxu0 %v878
          %v1204 = vpop.f32.mrb[0].mxu0
          %v1205 = vadd.f32 %v920, %v1204
          %v1206 = vpop.f32.mrb[0].mxu0
          %v1207 = vadd.f32 %v924, %v1206
          %v1208 = vpop.f32.mrb[0].mxu0
          %v1209 = vadd.f32 %v920, %v1208
          %v1210 = vpop.f32.mrb[0].mxu0
          %v1211 = vadd.f32 %v924, %v1210
          %1212 = vmatprep.mubr.bf16.mxu0 0
          %1213 = vmatmul.mubr.bf16.gmra.mrb[0].mxu0 %v879
          %v1214 = vpop.f32.mrb[0].mxu0
          %v1215 = vadd.f32 %v920, %v1214
          %v1216 = vpop.f32.mrb[0].mxu0
          %v1217 = vadd.f32 %v924, %v1216
          %v1218 = vpop.f32.mrb[0].mxu0
          %v1219 = vadd.f32 %v920, %v1218
          %v1220 = vpop.f32.mrb[0].mxu0
          %v1221 = vadd.f32 %v924, %v1220
          %1222 = vmatprep.mubr.bf16.mxu0 0
          %1223 = vmatmul.mubr.bf16.gmra.mrb[0].mxu0 %v880
          %v1224 = vpop.f32.mrb[0].mxu0
          %v1225 = vadd.f32 %v920, %v1224
          %v1226 = vpop.f32.mrb[0].mxu0
          %v1227 = vadd.f32 %v924, %v1226
          %v1228 = vpop.f32.mrb[0].mxu0
          %v1229 = vadd.f32 %v920, %v1228
          %v1230 = vpop.f32.mrb[0].mxu0
          %v1231 = vadd.f32 %v924, %v1230
          %1232 = vmatprep.mubr.bf16.mxu0 0
          %1233 = vmatmul.mubr.bf16.gmra.mrb[0].mxu0 %v881
          %v1234 = vpop.f32.mrb[0].mxu0
          %v1235 = vadd.f32 %v920, %v1234
          %v1236 = vpop.f32.mrb[0].mxu0
          %v1237 = vadd.f32 %v924, %v1236
          %v1238 = vpop.f32.mrb[0].mxu0
          %v1239 = vadd.f32 %v920, %v1238
          %v1240 = vpop.f32.mrb[0].mxu0
          %v1241 = vadd.f32 %v924, %v1240
          %1242 = vmatprep.mubr.bf16.mxu0 0
          %1243 = vmatmul.mubr.bf16.gmra.mrb[0].mxu0 %v882
          %v1244 = vpop.f32.mrb[0].mxu0
          %v1245 = vadd.f32 %v920, %v1244
          %v1246 = vpop.f32.mrb[0].mxu0
          %v1247 = vadd.f32 %v924, %v1246
          %v1248 = vpop.f32.mrb[0].mxu0
          %v1249 = vadd.f32 %v920, %v1248
          %v1250 = vpop.f32.mrb[0].mxu0
          %v1251 = vadd.f32 %v924, %v1250
          %1252 = vdwg.mxu0
          %1253 = vmatprep.subr.bf16.mxu0 0
          %1254 = vmatpush1.bf16.msra.mxu0 %v1014
          %1255 = vmatprep.subr.bf16.mxu0 0
          %1256 = vmatpush1.bf16.msra.mxu0 %v1017
          %1257 = vmatprep.subr.bf16.mxu0 0
          %1258 = vmatpush1.bf16.msra.mxu0 %v1020
          %1259 = vmatprep.subr.bf16.mxu0 0
          %1260 = vmatpush1.bf16.msra.mxu0 %v1023
          %1261 = vmatprep.subr.bf16.mxu0 0
          %1262 = vmatpush1.bf16.msra.mxu0 %v1026
          %1263 = vmatprep.subr.bf16.mxu0 0
          %1264 = vmatpush1.bf16.msra.mxu0 %v1029
          %1265 = vmatprep.subr.bf16.mxu0 0
          %1266 = vmatpush1.bf16.msra.mxu0 %v1032
          %1267 = vmatprep.subr.bf16.mxu0 0
          %1268 = vmatpush1.bf16.msra.mxu0 %v1035
          %1269 = vmatprep.subr.bf16.mxu0 0
          %1270 = vmatpush1.bf16.msra.mxu0 0
          %1271 = vmatprep.subr.bf16.mxu0 0
          %1272 = vmatpush1.bf16.msra.mxu0 0
          %1273 = vmatprep.subr.bf16.mxu0 0
          %1274 = vmatpush1.bf16.msra.mxu0 0
          %1275 = vmatprep.subr.bf16.mxu0 0
          %1276 = vmatpush1.bf16.msra.mxu0 0
          %1277 = vmatprep.subr.bf16.mxu0 0
          %1278 = vmatpush1.bf16.msra.mxu0 0
          %1279 = vmatprep.subr.bf16.mxu0 0
          %1280 = vmatpush1.bf16.msra.mxu0 0
          %1281 = vmatprep.subr.bf16.mxu0 0
          %1282 = vmatpush1.bf16.msra.mxu0 0
          %1283 = vmatprep.subr.bf16.mxu0 0
          %1284 = vmatpush1.bf16.msra.mxu0 0
          %1285 = vmatprep.mubr.bf16.mxu0 0
          %1286 = vmatmul.mubr.bf16.gmra.mrb[0].mxu0 %v867
          %v1287 = vpop.f32.mrb[0].mxu0
          %v1288 = vadd.f32 %v928, %v1287
          %v1289 = vpop.f32.mrb[0].mxu0
          %v1290 = vpop.f32.mrb[0].mxu0
          %v1291 = vadd.f32 %v928, %v1290
          %v1292 = vpop.f32.mrb[0].mxu0
          %1293 = vmatprep.mubr.bf16.mxu0 0
          %1294 = vmatmul.mubr.bf16.gmra.mrb[0].mxu0 %v868
          %v1295 = vpop.f32.mrb[0].mxu0
          %v1296 = vadd.f32 %v928, %v1295
          %v1297 = vpop.f32.mrb[0].mxu0
          %v1298 = vpop.f32.mrb[0].mxu0
          %v1299 = vadd.f32 %v928, %v1298
          %v1300 = vpop.f32.mrb[0].mxu0
          %1301 = vmatprep.mubr.bf16.mxu0 0
          %1302 = vmatmul.mubr.bf16.gmra.mrb[0].mxu0 %v869
          %v1303 = vpop.f32.mrb[0].mxu0
          %v1304 = vadd.f32 %v928, %v1303
          %v1305 = vpop.f32.mrb[0].mxu0
          %v1306 = vpop.f32.mrb[0].mxu0
          %v1307 = vadd.f32 %v928, %v1306
          %v1308 = vpop.f32.mrb[0].mxu0
          %1309 = vmatprep.mubr.bf16.mxu0 0
          %1310 = vmatmul.mubr.bf16.gmra.mrb[0].mxu0 %v870
          %v1311 = vpop.f32.mrb[0].mxu0
          %v1312 = vadd.f32 %v928, %v1311
          %v1313 = vpop.f32.mrb[0].mxu0
          %v1314 = vpop.f32.mrb[0].mxu0
          %v1315 = vadd.f32 %v928, %v1314
          %v1316 = vpop.f32.mrb[0].mxu0
          %1317 = vmatprep.mubr.bf16.mxu0 0
          %1318 = vmatmul.mubr.bf16.gmra.mrb[0].mxu0 %v871
          %v1319 = vpop.f32.mrb[0].mxu0
          %v1320 = vadd.f32 %v928, %v1319
          %v1321 = vpop.f32.mrb[0].mxu0
          %v1322 = vpop.f32.mrb[0].mxu0
          %v1323 = vadd.f32 %v928, %v1322
          %v1324 = vpop.f32.mrb[0].mxu0
          %1325 = vmatprep.mubr.bf16.mxu0 0
          %1326 = vmatmul.mubr.bf16.gmra.mrb[0].mxu0 %v872
          %v1327 = vpop.f32.mrb[0].mxu0
          %v1328 = vadd.f32 %v928, %v1327
          %v1329 = vpop.f32.mrb[0].mxu0
          %v1330 = vpop.f32.mrb[0].mxu0
          %v1331 = vadd.f32 %v928, %v1330
          %v1332 = vpop.f32.mrb[0].mxu0
          %1333 = vmatprep.mubr.bf16.mxu0 0
          %1334 = vmatmul.mubr.bf16.gmra.mrb[0].mxu0 %v873
          %v1335 = vpop.f32.mrb[0].mxu0
          %v1336 = vadd.f32 %v928, %v1335
          %v1337 = vpop.f32.mrb[0].mxu0
          %v1338 = vpop.f32.mrb[0].mxu0
          %v1339 = vadd.f32 %v928, %v1338
          %v1340 = vpop.f32.mrb[0].mxu0
          %1341 = vmatprep.mubr.bf16.mxu0 0
          %1342 = vmatmul.mubr.bf16.gmra.mrb[0].mxu0 %v874
          %v1343 = vpop.f32.mrb[0].mxu0
          %v1344 = vadd.f32 %v928, %v1343
          %v1345 = vpop.f32.mrb[0].mxu0
          %v1346 = vpop.f32.mrb[0].mxu0
          %v1347 = vadd.f32 %v928, %v1346
          %v1348 = vpop.f32.mrb[0].mxu0
          %1349 = vmatprep.mubr.bf16.mxu0 0
          %1350 = vmatmul.mubr.bf16.gmra.mrb[0].mxu0 %v875
          %v1351 = vpop.f32.mrb[0].mxu0
          %v1352 = vadd.f32 %v928, %v1351
          %v1353 = vpop.f32.mrb[0].mxu0
          %v1354 = vpop.f32.mrb[0].mxu0
          %v1355 = vadd.f32 %v928, %v1354
          %v1356 = vpop.f32.mrb[0].mxu0
          %1357 = vmatprep.mubr.bf16.mxu0 0
          %1358 = vmatmul.mubr.bf16.gmra.mrb[0].mxu0 %v876
          %v1359 = vpop.f32.mrb[0].mxu0
          %v1360 = vadd.f32 %v928, %v1359
          %v1361 = vpop.f32.mrb[0].mxu0
          %v1362 = vpop.f32.mrb[0].mxu0
          %v1363 = vadd.f32 %v928, %v1362
          %v1364 = vpop.f32.mrb[0].mxu0
          %1365 = vmatprep.mubr.bf16.mxu0 0
          %1366 = vmatmul.mubr.bf16.gmra.mrb[0].mxu0 %v877
          %v1367 = vpop.f32.mrb[0].mxu0
          %v1368 = vadd.f32 %v928, %v1367
          %v1369 = vpop.f32.mrb[0].mxu0
          %v1370 = vpop.f32.mrb[0].mxu0
          %v1371 = vadd.f32 %v928, %v1370
          %v1372 = vpop.f32.mrb[0].mxu0
          %1373 = vmatprep.mubr.bf16.mxu0 0
          %1374 = vmatmul.mubr.bf16.gmra.mrb[0].mxu0 %v878
          %v1375 = vpop.f32.mrb[0].mxu0
          %v1376 = vadd.f32 %v928, %v1375
          %v1377 = vpop.f32.mrb[0].mxu0
          %v1378 = vpop.f32.mrb[0].mxu0
          %v1379 = vadd.f32 %v928, %v1378
          %v1380 = vpop.f32.mrb[0].mxu0
          %1381 = vmatprep.mubr.bf16.mxu0 0
          %1382 = vmatmul.mubr.bf16.gmra.mrb[0].mxu0 %v879
          %v1383 = vpop.f32.mrb[0].mxu0
          %v1384 = vadd.f32 %v928, %v1383
          %v1385 = vpop.f32.mrb[0].mxu0
          %v1386 = vpop.f32.mrb[0].mxu0
          %v1387 = vadd.f32 %v928, %v1386
          %v1388 = vpop.f32.mrb[0].mxu0
          %1389 = vmatprep.mubr.bf16.mxu0 0
          %1390 = vmatmul.mubr.bf16.gmra.mrb[0].mxu0 %v880
          %v1391 = vpop.f32.mrb[0].mxu0
          %v1392 = vadd.f32 %v928, %v1391
          %v1393 = vpop.f32.mrb[0].mxu0
          %v1394 = vpop.f32.mrb[0].mxu0
          %v1395 = vadd.f32 %v928, %v1394
          %v1396 = vpop.f32.mrb[0].mxu0
          %1397 = vmatprep.mubr.bf16.mxu0 0
          %1398 = vmatmul.mubr.bf16.gmra.mrb[0].mxu0 %v881
          %v1399 = vpop.f32.mrb[0].mxu0
          %v1400 = vadd.f32 %v928, %v1399
          %v1401 = vpop.f32.mrb[0].mxu0
          %v1402 = vpop.f32.mrb[0].mxu0
          %v1403 = vadd.f32 %v928, %v1402
          %v1404 = vpop.f32.mrb[0].mxu0
          %1405 = vmatprep.mubr.bf16.mxu0 0
          %1406 = vmatmul.mubr.bf16.gmra.mrb[0].mxu0 %v882
          %v1407 = vpop.f32.mrb[0].mxu0
          %v1408 = vadd.f32 %v928, %v1407
          %v1409 = vpop.f32.mrb[0].mxu0
          %v1410 = vpop.f32.mrb[0].mxu0
          %v1411 = vadd.f32 %v928, %v1410
          %v1412 = vpop.f32.mrb[0].mxu0
          %1413 = vdwg.mxu0
          %v1414 = vpack.c.bf16 %v1099, %v1095
          %v1415 = vpack.c.bf16 %v1109, %v1105
          %v1416 = vpack.c.bf16 %v1119, %v1115
          %v1417 = vpack.c.bf16 %v1129, %v1125
          %v1418 = vpack.c.bf16 %v1139, %v1135
          %v1419 = vpack.c.bf16 %v1149, %v1145
          %v1420 = vpack.c.bf16 %v1159, %v1155
          %v1421 = vpack.c.bf16 %v1169, %v1165
          %v1422 = vpack.c.bf16 %v1179, %v1175
          %v1423 = vpack.c.bf16 %v1189, %v1185
          %v1424 = vpack.c.bf16 %v1199, %v1195
          %v1425 = vpack.c.bf16 %v1209, %v1205
          %v1426 = vpack.c.bf16 %v1219, %v1215
          %v1427 = vpack.c.bf16 %v1229, %v1225
          %v1428 = vpack.c.bf16 %v1239, %v1235
          %v1429 = vpack.c.bf16 %v1249, %v1245
          %1430 = vst [vmem:[#allocation3] sm:$0xff] %v1414
          %1431 = vst [vmem:[#allocation3 + $0x8] sm:$0xff] %v1415
          %1432 = vst [vmem:[#allocation3 + $0x10] sm:$0xff] %v1416
          %1433 = vst [vmem:[#allocation3 + $0x18] sm:$0xff] %v1417
          %1434 = vst [vmem:[#allocation3 + $0x20] sm:$0xff] %v1418
          %1435 = vst [vmem:[#allocation3 + $0x28] sm:$0xff] %v1419
          %1436 = vst [vmem:[#allocation3 + $0x30] sm:$0xff] %v1420
          %1437 = vst [vmem:[#allocation3 + $0x38] sm:$0xff] %v1421
          %1438 = vst [vmem:[#allocation3 + $0x40] sm:$0xff] %v1422
          %1439 = vst [vmem:[#allocation3 + $0x48] sm:$0xff] %v1423
          %1440 = vst [vmem:[#allocation3 + $0x50] sm:$0xff] %v1424
          %1441 = vst [vmem:[#allocation3 + $0x58] sm:$0xff] %v1425
          %1442 = vst [vmem:[#allocation3 + $0x60] sm:$0xff] %v1426
          %1443 = vst [vmem:[#allocation3 + $0x68] sm:$0xff] %v1427
          %1444 = vst [vmem:[#allocation3 + $0x70] sm:$0xff] %v1428
          %1445 = vst [vmem:[#allocation3 + $0x78] sm:$0xff] %v1429
          %v1446 = vpack.c.bf16 %v1101, %v1097
          %v1447 = vpack.c.bf16 %v1111, %v1107
          %v1448 = vpack.c.bf16 %v1121, %v1117
          %v1449 = vpack.c.bf16 %v1131, %v1127
          %v1450 = vpack.c.bf16 %v1141, %v1137
          %v1451 = vpack.c.bf16 %v1151, %v1147
          %v1452 = vpack.c.bf16 %v1161, %v1157
          %v1453 = vpack.c.bf16 %v1171, %v1167
          %v1454 = vpack.c.bf16 %v1181, %v1177
          %v1455 = vpack.c.bf16 %v1191, %v1187
          %v1456 = vpack.c.bf16 %v1201, %v1197
          %v1457 = vpack.c.bf16 %v1211, %v1207
          %v1458 = vpack.c.bf16 %v1221, %v1217
          %v1459 = vpack.c.bf16 %v1231, %v1227
          %v1460 = vpack.c.bf16 %v1241, %v1237
          %v1461 = vpack.c.bf16 %v1251, %v1247
          %1462 = vst [vmem:[#allocation4] sm:$0xff] %v1446
          %1463 = vst [vmem:[#allocation4 + $0x8] sm:$0xff] %v1447
          %1464 = vst [vmem:[#allocation4 + $0x10] sm:$0xff] %v1448
          %1465 = vst [vmem:[#allocation4 + $0x18] sm:$0xff] %v1449
          %1466 = vst [vmem:[#allocation4 + $0x20] sm:$0xff] %v1450
          %1467 = vst [vmem:[#allocation4 + $0x28] sm:$0xff] %v1451
          %1468 = vst [vmem:[#allocation4 + $0x30] sm:$0xff] %v1452
          %1469 = vst [vmem:[#allocation4 + $0x38] sm:$0xff] %v1453
          %1470 = vst [vmem:[#allocation4 + $0x40] sm:$0xff] %v1454
          %1471 = vst [vmem:[#allocation4 + $0x48] sm:$0xff] %v1455
          %1472 = vst [vmem:[#allocation4 + $0x50] sm:$0xff] %v1456
          %1473 = vst [vmem:[#allocation4 + $0x58] sm:$0xff] %v1457
          %1474 = vst [vmem:[#allocation4 + $0x60] sm:$0xff] %v1458
          %1475 = vst [vmem:[#allocation4 + $0x68] sm:$0xff] %v1459
          %1476 = vst [vmem:[#allocation4 + $0x70] sm:$0xff] %v1460
          %1477 = vst [vmem:[#allocation4 + $0x78] sm:$0xff] %v1461
          %v1478 = vpack.c.bf16 %v1291, %v1288
          %v1479 = vpack.c.bf16 %v1299, %v1296
          %v1480 = vpack.c.bf16 %v1307, %v1304
          %v1481 = vpack.c.bf16 %v1315, %v1312
          %v1482 = vpack.c.bf16 %v1323, %v1320
          %v1483 = vpack.c.bf16 %v1331, %v1328
          %v1484 = vpack.c.bf16 %v1339, %v1336
          %v1485 = vpack.c.bf16 %v1347, %v1344
          %v1486 = vpack.c.bf16 %v1355, %v1352
          %v1487 = vpack.c.bf16 %v1363, %v1360
          %v1488 = vpack.c.bf16 %v1371, %v1368
          %v1489 = vpack.c.bf16 %v1379, %v1376
          %v1490 = vpack.c.bf16 %v1387, %v1384
          %v1491 = vpack.c.bf16 %v1395, %v1392
          %v1492 = vpack.c.bf16 %v1403, %v1400
          %v1493 = vpack.c.bf16 %v1411, %v1408
          %1494 = vst [vmem:[#allocation5] sm:$0xff] %v1478
          %1495 = vst [vmem:[#allocation5 + $0x8] sm:$0xff] %v1479
          %1496 = vst [vmem:[#allocation5 + $0x10] sm:$0xff] %v1480
          %1497 = vst [vmem:[#allocation5 + $0x18] sm:$0xff] %v1481
          %1498 = vst [vmem:[#allocation5 + $0x20] sm:$0xff] %v1482
          %1499 = vst [vmem:[#allocation5 + $0x28] sm:$0xff] %v1483
          %1500 = vst [vmem:[#allocation5 + $0x30] sm:$0xff] %v1484
          %1501 = vst [vmem:[#allocation5 + $0x38] sm:$0xff] %v1485
          %1502 = vst [vmem:[#allocation5 + $0x40] sm:$0xff] %v1486
          %1503 = vst [vmem:[#allocation5 + $0x48] sm:$0xff] %v1487
          %1504 = vst [vmem:[#allocation5 + $0x50] sm:$0xff] %v1488
          %1505 = vst [vmem:[#allocation5 + $0x58] sm:$0xff] %v1489
          %1506 = vst [vmem:[#allocation5 + $0x60] sm:$0xff] %v1490
          %1507 = vst [vmem:[#allocation5 + $0x68] sm:$0xff] %v1491
          %1508 = vst [vmem:[#allocation5 + $0x70] sm:$0xff] %v1492
          %1509 = vst [vmem:[#allocation5 + $0x78] sm:$0xff] %v1493
        $region72: #{tpu_custom_call.1} parent=51 // pred_fallthru
          _
        %s1510 = smul.u32 %s32, 256
        %s1511 = sshra.s32 %s1510, 4
        %s1512 = sand.u32 %s1510, 15
        %s1513 = smul.addr %s1511, 8
        %s1514 = scalar_lea.vmem [#allocation3], %s1513
        %v1515 = vld [vmem:[%s1514] sm:$0xff]
        %v1516 = vld [vmem:[%s1514 + $0x8] sm:$0xff]
        %v1517 = vld [vmem:[%s1514 + $0x10] sm:$0xff]
        %v1518 = vld [vmem:[%s1514 + $0x18] sm:$0xff]
        %v1519 = vld [vmem:[%s1514 + $0x20] sm:$0xff]
        %v1520 = vld [vmem:[%s1514 + $0x28] sm:$0xff]
        %v1521 = vld [vmem:[%s1514 + $0x30] sm:$0xff]
        %v1522 = vld [vmem:[%s1514 + $0x38] sm:$0xff]
        %v1523 = vld [vmem:[%s1514 + $0x40] sm:$0xff]
        %v1524 = vld [vmem:[%s1514 + $0x48] sm:$0xff]
        %v1525 = vld [vmem:[%s1514 + $0x50] sm:$0xff]
        %v1526 = vld [vmem:[%s1514 + $0x58] sm:$0xff]
        %v1527 = vld [vmem:[%s1514 + $0x60] sm:$0xff]
        %v1528 = vld [vmem:[%s1514 + $0x68] sm:$0xff]
        %v1529 = vld [vmem:[%s1514 + $0x70] sm:$0xff]
        %v1530 = vld [vmem:[%s1514 + $0x78] sm:$0xff]
        %v1531 = vld [vmem:[#allocation4] sm:$0xff]
        %v1532 = vld [vmem:[#allocation4 + $0x8] sm:$0xff]
        %v1533 = vld [vmem:[#allocation4 + $0x10] sm:$0xff]
        %v1534 = vld [vmem:[#allocation4 + $0x18] sm:$0xff]
        %v1535 = vld [vmem:[#allocation4 + $0x20] sm:$0xff]
        %v1536 = vld [vmem:[#allocation4 + $0x28] sm:$0xff]
        %v1537 = vld [vmem:[#allocation4 + $0x30] sm:$0xff]
        %v1538 = vld [vmem:[#allocation4 + $0x38] sm:$0xff]
        %v1539 = vld [vmem:[#allocation4 + $0x40] sm:$0xff]
        %v1540 = vld [vmem:[#allocation4 + $0x48] sm:$0xff]
        %v1541 = vld [vmem:[#allocation4 + $0x50] sm:$0xff]
        %v1542 = vld [vmem:[#allocation4 + $0x58] sm:$0xff]
        %v1543 = vld [vmem:[#allocation4 + $0x60] sm:$0xff]
        %v1544 = vld [vmem:[#allocation4 + $0x68] sm:$0xff]
        %v1545 = vld [vmem:[#allocation4 + $0x70] sm:$0xff]
        %v1546 = vld [vmem:[#allocation4 + $0x78] sm:$0xff]
        %v1547 = vld [vmem:[#allocation5] sm:$0xff]
        %v1548 = vld [vmem:[#allocation5 + $0x8] sm:$0xff]
        %v1549 = vld [vmem:[#allocation5 + $0x10] sm:$0xff]
        %v1550 = vld [vmem:[#allocation5 + $0x18] sm:$0xff]
        %v1551 = vld [vmem:[#allocation5 + $0x20] sm:$0xff]
        %v1552 = vld [vmem:[#allocation5 + $0x28] sm:$0xff]
        %v1553 = vld [vmem:[#allocation5 + $0x30] sm:$0xff]
        %v1554 = vld [vmem:[#allocation5 + $0x38] sm:$0xff]
        %v1555 = vld [vmem:[#allocation5 + $0x40] sm:$0xff]
        %v1556 = vld [vmem:[#allocation5 + $0x48] sm:$0xff]
        %v1557 = vld [vmem:[#allocation5 + $0x50] sm:$0xff]
        %v1558 = vld [vmem:[#allocation5 + $0x58] sm:$0xff]
        %v1559 = vld [vmem:[#allocation5 + $0x60] sm:$0xff]
        %v1560 = vld [vmem:[#allocation5 + $0x68] sm:$0xff]
        %v1561 = vld [vmem:[#allocation5 + $0x70] sm:$0xff]
        %v1562 = vld [vmem:[#allocation5 + $0x78] sm:$0xff]
        %1563 = vmatprep.subr.bf16.mxu0 0
        %1564 = vmatpush1.bf16.xpose.msra.mxu0 %v1531
        %1565 = vmatprep.subr.bf16.mxu0 0
        %1566 = vmatpush1.bf16.xpose.msra.mxu0 %v1532
        %1567 = vmatprep.subr.bf16.mxu0 0
        %1568 = vmatpush1.bf16.xpose.msra.mxu0 %v1533
        %1569 = vmatprep.subr.bf16.mxu0 0
        %1570 = vmatpush1.bf16.xpose.msra.mxu0 %v1534
        %1571 = vmatprep.subr.bf16.mxu0 0
        %1572 = vmatpush1.bf16.xpose.msra.mxu0 %v1535
        %1573 = vmatprep.subr.bf16.mxu0 0
        %1574 = vmatpush1.bf16.xpose.msra.mxu0 %v1536
        %1575 = vmatprep.subr.bf16.mxu0 0
        %1576 = vmatpush1.bf16.xpose.msra.mxu0 %v1537
        %1577 = vmatprep.subr.bf16.mxu0 0
        %1578 = vmatpush1.bf16.xpose.msra.mxu0 %v1538
        %1579 = vmatprep.subr.bf16.mxu0 0
        %1580 = vmatpush1.bf16.xpose.msra.mxu0 %v1539
        %1581 = vmatprep.subr.bf16.mxu0 0
        %1582 = vmatpush1.bf16.xpose.msra.mxu0 %v1540
        %1583 = vmatprep.subr.bf16.mxu0 0
        %1584 = vmatpush1.bf16.xpose.msra.mxu0 %v1541
        %1585 = vmatprep.subr.bf16.mxu0 0
        %1586 = vmatpush1.bf16.xpose.msra.mxu0 %v1542
        %1587 = vmatprep.subr.bf16.mxu0 0
        %1588 = vmatpush1.bf16.xpose.msra.mxu0 %v1543
        %1589 = vmatprep.subr.bf16.mxu0 0
        %1590 = vmatpush1.bf16.xpose.msra.mxu0 %v1544
        %1591 = vmatprep.subr.bf16.mxu0 0
        %1592 = vmatpush1.bf16.xpose.msra.mxu0 %v1545
        %1593 = vmatprep.subr.bf16.mxu0 0
        %1594 = vmatpush1.bf16.xpose.msra.mxu0 %v1546
        %1595 = vmatprep.mubr.bf16.mxu0 0
        %1596 = vmatmul.mubr.bf16.gmra.mrb[0].mxu0 %v1515
        %v1597 = vpop.f32.mrb[0].mxu0
        %v1598 = vadd.f32 0.0, %v1597
        %v1599 = vpop.f32.mrb[0].mxu0
        %v1600 = vadd.f32 0.0, %v1599
        %v1601 = vpop.f32.mrb[0].mxu0
        %v1602 = vadd.f32 0.0, %v1601
        %v1603 = vpop.f32.mrb[0].mxu0
        %v1604 = vadd.f32 0.0, %v1603
        %1605 = vmatprep.mubr.bf16.mxu0 0
        %1606 = vmatmul.mubr.bf16.gmra.mrb[0].mxu0 %v1516
        %v1607 = vpop.f32.mrb[0].mxu0
        %v1608 = vadd.f32 0.0, %v1607
        %v1609 = vpop.f32.mrb[0].mxu0
        %v1610 = vadd.f32 0.0, %v1609
        %v1611 = vpop.f32.mrb[0].mxu0
        %v1612 = vadd.f32 0.0, %v1611
        %v1613 = vpop.f32.mrb[0].mxu0
        %v1614 = vadd.f32 0.0, %v1613
        %1615 = vmatprep.mubr.bf16.mxu0 0
        %1616 = vmatmul.mubr.bf16.gmra.mrb[0].mxu0 %v1517
        %v1617 = vpop.f32.mrb[0].mxu0
        %v1618 = vadd.f32 0.0, %v1617
        %v1619 = vpop.f32.mrb[0].mxu0
        %v1620 = vadd.f32 0.0, %v1619
        %v1621 = vpop.f32.mrb[0].mxu0
        %v1622 = vadd.f32 0.0, %v1621
        %v1623 = vpop.f32.mrb[0].mxu0
        %v1624 = vadd.f32 0.0, %v1623
        %1625 = vmatprep.mubr.bf16.mxu0 0
        %1626 = vmatmul.mubr.bf16.gmra.mrb[0].mxu0 %v1518
        %v1627 = vpop.f32.mrb[0].mxu0
        %v1628 = vadd.f32 0.0, %v1627
        %v1629 = vpop.f32.mrb[0].mxu0
        %v1630 = vadd.f32 0.0, %v1629
        %v1631 = vpop.f32.mrb[0].mxu0
        %v1632 = vadd.f32 0.0, %v1631
        %v1633 = vpop.f32.mrb[0].mxu0
        %v1634 = vadd.f32 0.0, %v1633
        %1635 = vmatprep.mubr.bf16.mxu0 0
        %1636 = vmatmul.mubr.bf16.gmra.mrb[0].mxu0 %v1519
        %v1637 = vpop.f32.mrb[0].mxu0
        %v1638 = vadd.f32 0.0, %v1637
        %v1639 = vpop.f32.mrb[0].mxu0
        %v1640 = vadd.f32 0.0, %v1639
        %v1641 = vpop.f32.mrb[0].mxu0
        %v1642 = vadd.f32 0.0, %v1641
        %v1643 = vpop.f32.mrb[0].mxu0
        %v1644 = vadd.f32 0.0, %v1643
        %1645 = vmatprep.mubr.bf16.mxu0 0
        %1646 = vmatmul.mubr.bf16.gmra.mrb[0].mxu0 %v1520
        %v1647 = vpop.f32.mrb[0].mxu0
        %v1648 = vadd.f32 0.0, %v1647
        %v1649 = vpop.f32.mrb[0].mxu0
        %v1650 = vadd.f32 0.0, %v1649
        %v1651 = vpop.f32.mrb[0].mxu0
        %v1652 = vadd.f32 0.0, %v1651
        %v1653 = vpop.f32.mrb[0].mxu0
        %v1654 = vadd.f32 0.0, %v1653
        %1655 = vmatprep.mubr.bf16.mxu0 0
        %1656 = vmatmul.mubr.bf16.gmra.mrb[0].mxu0 %v1521
        %v1657 = vpop.f32.mrb[0].mxu0
        %v1658 = vadd.f32 0.0, %v1657
        %v1659 = vpop.f32.mrb[0].mxu0
        %v1660 = vadd.f32 0.0, %v1659
        %v1661 = vpop.f32.mrb[0].mxu0
        %v1662 = vadd.f32 0.0, %v1661
        %v1663 = vpop.f32.mrb[0].mxu0
        %v1664 = vadd.f32 0.0, %v1663
        %1665 = vmatprep.mubr.bf16.mxu0 0
        %1666 = vmatmul.mubr.bf16.gmra.mrb[0].mxu0 %v1522
        %v1667 = vpop.f32.mrb[0].mxu0
        %v1668 = vadd.f32 0.0, %v1667
        %v1669 = vpop.f32.mrb[0].mxu0
        %v1670 = vadd.f32 0.0, %v1669
        %v1671 = vpop.f32.mrb[0].mxu0
        %v1672 = vadd.f32 0.0, %v1671
        %v1673 = vpop.f32.mrb[0].mxu0
        %v1674 = vadd.f32 0.0, %v1673
        %1675 = vmatprep.mubr.bf16.mxu0 0
        %1676 = vmatmul.mubr.bf16.gmra.mrb[0].mxu0 %v1523
        %v1677 = vpop.f32.mrb[0].mxu0
        %v1678 = vadd.f32 0.0, %v1677
        %v1679 = vpop.f32.mrb[0].mxu0
        %v1680 = vadd.f32 0.0, %v1679
        %v1681 = vpop.f32.mrb[0].mxu0
        %v1682 = vadd.f32 0.0, %v1681
        %v1683 = vpop.f32.mrb[0].mxu0
        %v1684 = vadd.f32 0.0, %v1683
        %1685 = vmatprep.mubr.bf16.mxu0 0
        %1686 = vmatmul.mubr.bf16.gmra.mrb[0].mxu0 %v1524
        %v1687 = vpop.f32.mrb[0].mxu0
        %v1688 = vadd.f32 0.0, %v1687
        %v1689 = vpop.f32.mrb[0].mxu0
        %v1690 = vadd.f32 0.0, %v1689
        %v1691 = vpop.f32.mrb[0].mxu0
        %v1692 = vadd.f32 0.0, %v1691
        %v1693 = vpop.f32.mrb[0].mxu0
        %v1694 = vadd.f32 0.0, %v1693
        %1695 = vmatprep.mubr.bf16.mxu0 0
        %1696 = vmatmul.mubr.bf16.gmra.mrb[0].mxu0 %v1525
        %v1697 = vpop.f32.mrb[0].mxu0
        %v1698 = vadd.f32 0.0, %v1697
        %v1699 = vpop.f32.mrb[0].mxu0
        %v1700 = vadd.f32 0.0, %v1699
        %v1701 = vpop.f32.mrb[0].mxu0
        %v1702 = vadd.f32 0.0, %v1701
        %v1703 = vpop.f32.mrb[0].mxu0
        %v1704 = vadd.f32 0.0, %v1703
        %1705 = vmatprep.mubr.bf16.mxu0 0
        %1706 = vmatmul.mubr.bf16.gmra.mrb[0].mxu0 %v1526
        %v1707 = vpop.f32.mrb[0].mxu0
        %v1708 = vadd.f32 0.0, %v1707
        %v1709 = vpop.f32.mrb[0].mxu0
        %v1710 = vadd.f32 0.0, %v1709
        %v1711 = vpop.f32.mrb[0].mxu0
        %v1712 = vadd.f32 0.0, %v1711
        %v1713 = vpop.f32.mrb[0].mxu0
        %v1714 = vadd.f32 0.0, %v1713
        %1715 = vmatprep.mubr.bf16.mxu0 0
        %1716 = vmatmul.mubr.bf16.gmra.mrb[0].mxu0 %v1527
        %v1717 = vpop.f32.mrb[0].mxu0
        %v1718 = vadd.f32 0.0, %v1717
        %v1719 = vpop.f32.mrb[0].mxu0
        %v1720 = vadd.f32 0.0, %v1719
        %v1721 = vpop.f32.mrb[0].mxu0
        %v1722 = vadd.f32 0.0, %v1721
        %v1723 = vpop.f32.mrb[0].mxu0
        %v1724 = vadd.f32 0.0, %v1723
        %1725 = vmatprep.mubr.bf16.mxu0 0
        %1726 = vmatmul.mubr.bf16.gmra.mrb[0].mxu0 %v1528
        %v1727 = vpop.f32.mrb[0].mxu0
        %v1728 = vadd.f32 0.0, %v1727
        %v1729 = vpop.f32.mrb[0].mxu0
        %v1730 = vadd.f32 0.0, %v1729
        %v1731 = vpop.f32.mrb[0].mxu0
        %v1732 = vadd.f32 0.0, %v1731
        %v1733 = vpop.f32.mrb[0].mxu0
        %v1734 = vadd.f32 0.0, %v1733
        %1735 = vmatprep.mubr.bf16.mxu0 0
        %1736 = vmatmul.mubr.bf16.gmra.mrb[0].mxu0 %v1529
        %v1737 = vpop.f32.mrb[0].mxu0
        %v1738 = vadd.f32 0.0, %v1737
        %v1739 = vpop.f32.mrb[0].mxu0
        %v1740 = vadd.f32 0.0, %v1739
        %v1741 = vpop.f32.mrb[0].mxu0
        %v1742 = vadd.f32 0.0, %v1741
        %v1743 = vpop.f32.mrb[0].mxu0
        %v1744 = vadd.f32 0.0, %v1743
        %1745 = vmatprep.mubr.bf16.mxu0 0
        %1746 = vmatmul.mubr.bf16.gmra.mrb[0].mxu0 %v1530
        %v1747 = vpop.f32.mrb[0].mxu0
        %v1748 = vadd.f32 0.0, %v1747
        %v1749 = vpop.f32.mrb[0].mxu0
        %v1750 = vadd.f32 0.0, %v1749
        %v1751 = vpop.f32.mrb[0].mxu0
        %v1752 = vadd.f32 0.0, %v1751
        %v1753 = vpop.f32.mrb[0].mxu0
        %v1754 = vadd.f32 0.0, %v1753
        %1755 = vdwg.mxu0
        %v1756 = vmax.f32 %v1598, %v1600
        %1757 = vmax.xlane.f32.xlu0 %v1756
        %v1758 = vpop.xlane.xlu0 %1757
        %v1759 = vmax.f32 %v1602, %v1604
        %1760 = vmax.xlane.f32.xlu0 %v1759
        %v1761 = vpop.xlane.xlu0 %1760
        %v1762 = vmax.f32 %v1608, %v1610
        %1763 = vmax.xlane.f32.xlu0 %v1762
        %v1764 = vpop.xlane.xlu0 %1763
        %v1765 = vmax.f32 %v1612, %v1614
        %1766 = vmax.xlane.f32.xlu0 %v1765
        %v1767 = vpop.xlane.xlu0 %1766
        %v1768 = vmax.f32 %v1618, %v1620
        %1769 = vmax.xlane.f32.xlu0 %v1768
        %v1770 = vpop.xlane.xlu0 %1769
        %v1771 = vmax.f32 %v1622, %v1624
        %1772 = vmax.xlane.f32.xlu0 %v1771
        %v1773 = vpop.xlane.xlu0 %1772
        %v1774 = vmax.f32 %v1628, %v1630
        %1775 = vmax.xlane.f32.xlu0 %v1774
        %v1776 = vpop.xlane.xlu0 %1775
        %v1777 = vmax.f32 %v1632, %v1634
        %1778 = vmax.xlane.f32.xlu0 %v1777
        %v1779 = vpop.xlane.xlu0 %1778
        %v1780 = vmax.f32 %v1638, %v1640
        %1781 = vmax.xlane.f32.xlu0 %v1780
        %v1782 = vpop.xlane.xlu0 %1781
        %v1783 = vmax.f32 %v1642, %v1644
        %1784 = vmax.xlane.f32.xlu0 %v1783
        %v1785 = vpop.xlane.xlu0 %1784
        %v1786 = vmax.f32 %v1648, %v1650
        %1787 = vmax.xlane.f32.xlu0 %v1786
        %v1788 = vpop.xlane.xlu0 %1787
        %v1789 = vmax.f32 %v1652, %v1654
        %1790 = vmax.xlane.f32.xlu0 %v1789
        %v1791 = vpop.xlane.xlu0 %1790
        %v1792 = vmax.f32 %v1658, %v1660
        %1793 = vmax.xlane.f32.xlu0 %v1792
        %v1794 = vpop.xlane.xlu0 %1793
        %v1795 = vmax.f32 %v1662, %v1664
        %1796 = vmax.xlane.f32.xlu0 %v1795
        %v1797 = vpop.xlane.xlu0 %1796
        %v1798 = vmax.f32 %v1668, %v1670
        %1799 = vmax.xlane.f32.xlu0 %v1798
        %v1800 = vpop.xlane.xlu0 %1799
        %v1801 = vmax.f32 %v1672, %v1674
        %1802 = vmax.xlane.f32.xlu0 %v1801
        %v1803 = vpop.xlane.xlu0 %1802
        %v1804 = vmax.f32 %v1678, %v1680
        %1805 = vmax.xlane.f32.xlu0 %v1804
        %v1806 = vpop.xlane.xlu0 %1805
        %v1807 = vmax.f32 %v1682, %v1684
        %1808 = vmax.xlane.f32.xlu0 %v1807
        %v1809 = vpop.xlane.xlu0 %1808
        %v1810 = vmax.f32 %v1688, %v1690
        %1811 = vmax.xlane.f32.xlu0 %v1810
        %v1812 = vpop.xlane.xlu0 %1811
        %v1813 = vmax.f32 %v1692, %v1694
        %1814 = vmax.xlane.f32.xlu0 %v1813
        %v1815 = vpop.xlane.xlu0 %1814
        %v1816 = vmax.f32 %v1698, %v1700
        %1817 = vmax.xlane.f32.xlu0 %v1816
        %v1818 = vpop.xlane.xlu0 %1817
        %v1819 = vmax.f32 %v1702, %v1704
        %1820 = vmax.xlane.f32.xlu0 %v1819
        %v1821 = vpop.xlane.xlu0 %1820
        %v1822 = vmax.f32 %v1708, %v1710
        %1823 = vmax.xlane.f32.xlu0 %v1822
        %v1824 = vpop.xlane.xlu0 %1823
        %v1825 = vmax.f32 %v1712, %v1714
        %1826 = vmax.xlane.f32.xlu0 %v1825
        %v1827 = vpop.xlane.xlu0 %1826
        %v1828 = vmax.f32 %v1718, %v1720
        %1829 = vmax.xlane.f32.xlu0 %v1828
        %v1830 = vpop.xlane.xlu0 %1829
        %v1831 = vmax.f32 %v1722, %v1724
        %1832 = vmax.xlane.f32.xlu0 %v1831
        %v1833 = vpop.xlane.xlu0 %1832
        %v1834 = vmax.f32 %v1728, %v1730
        %1835 = vmax.xlane.f32.xlu0 %v1834
        %v1836 = vpop.xlane.xlu0 %1835
        %v1837 = vmax.f32 %v1732, %v1734
        %1838 = vmax.xlane.f32.xlu0 %v1837
        %v1839 = vpop.xlane.xlu0 %1838
        %v1840 = vmax.f32 %v1738, %v1740
        %1841 = vmax.xlane.f32.xlu0 %v1840
        %v1842 = vpop.xlane.xlu0 %1841
        %v1843 = vmax.f32 %v1742, %v1744
        %1844 = vmax.xlane.f32.xlu0 %v1843
        %v1845 = vpop.xlane.xlu0 %1844
        %v1846 = vmax.f32 %v1748, %v1750
        %1847 = vmax.xlane.f32.xlu0 %v1846
        %v1848 = vpop.xlane.xlu0 %1847
        %v1849 = vmax.f32 %v1752, %v1754
        %1850 = vmax.xlane.f32.xlu0 %v1849
        %v1851 = vpop.xlane.xlu0 %1850
        %v1852 = vsub.f32 %v1598, %v1758
        %v1853 = vsub.f32 %v1600, %v1758
        %v1854 = vsub.f32 %v1602, %v1761
        %v1855 = vsub.f32 %v1604, %v1761
        %v1856 = vsub.f32 %v1608, %v1764
        %v1857 = vsub.f32 %v1610, %v1764
        %v1858 = vsub.f32 %v1612, %v1767
        %v1859 = vsub.f32 %v1614, %v1767
        %v1860 = vsub.f32 %v1618, %v1770
        %v1861 = vsub.f32 %v1620, %v1770
        %v1862 = vsub.f32 %v1622, %v1773
        %v1863 = vsub.f32 %v1624, %v1773
        %v1864 = vsub.f32 %v1628, %v1776
        %v1865 = vsub.f32 %v1630, %v1776
        %v1866 = vsub.f32 %v1632, %v1779
        %v1867 = vsub.f32 %v1634, %v1779
        %v1868 = vsub.f32 %v1638, %v1782
        %v1869 = vsub.f32 %v1640, %v1782
        %v1870 = vsub.f32 %v1642, %v1785
        %v1871 = vsub.f32 %v1644, %v1785
        %v1872 = vsub.f32 %v1648, %v1788
        %v1873 = vsub.f32 %v1650, %v1788
        %v1874 = vsub.f32 %v1652, %v1791
        %v1875 = vsub.f32 %v1654, %v1791
        %v1876 = vsub.f32 %v1658, %v1794
        %v1877 = vsub.f32 %v1660, %v1794
        %v1878 = vsub.f32 %v1662, %v1797
        %v1879 = vsub.f32 %v1664, %v1797
        %v1880 = vsub.f32 %v1668, %v1800
        %v1881 = vsub.f32 %v1670, %v1800
        %v1882 = vsub.f32 %v1672, %v1803
        %v1883 = vsub.f32 %v1674, %v1803
        %v1884 = vsub.f32 %v1678, %v1806
        %v1885 = vsub.f32 %v1680, %v1806
        %v1886 = vsub.f32 %v1682, %v1809
        %v1887 = vsub.f32 %v1684, %v1809
        %v1888 = vsub.f32 %v1688, %v1812
        %v1889 = vsub.f32 %v1690, %v1812
        %v1890 = vsub.f32 %v1692, %v1815
        %v1891 = vsub.f32 %v1694, %v1815
        %v1892 = vsub.f32 %v1698, %v1818
        %v1893 = vsub.f32 %v1700, %v1818
        %v1894 = vsub.f32 %v1702, %v1821
        %v1895 = vsub.f32 %v1704, %v1821
        %v1896 = vsub.f32 %v1708, %v1824
        %v1897 = vsub.f32 %v1710, %v1824
        %v1898 = vsub.f32 %v1712, %v1827
        %v1899 = vsub.f32 %v1714, %v1827
        %v1900 = vsub.f32 %v1718, %v1830
        %v1901 = vsub.f32 %v1720, %v1830
        %v1902 = vsub.f32 %v1722, %v1833
        %v1903 = vsub.f32 %v1724, %v1833
        %v1904 = vsub.f32 %v1728, %v1836
        %v1905 = vsub.f32 %v1730, %v1836
        %v1906 = vsub.f32 %v1732, %v1839
        %v1907 = vsub.f32 %v1734, %v1839
        %v1908 = vsub.f32 %v1738, %v1842
        %v1909 = vsub.f32 %v1740, %v1842
        %v1910 = vsub.f32 %v1742, %v1845
        %v1911 = vsub.f32 %v1744, %v1845
        %v1912 = vsub.f32 %v1748, %v1848
        %v1913 = vsub.f32 %v1750, %v1848
        %v1914 = vsub.f32 %v1752, %v1851
        %v1915 = vsub.f32 %v1754, %v1851
        %v1916 = vpack.c.bf16 %v1854, %v1852
        %v1917 = vpack.c.bf16 %v1855, %v1853
        %v1918 = vpack.c.bf16 %v1858, %v1856
        %v1919 = vpack.c.bf16 %v1859, %v1857
        %v1920 = vpack.c.bf16 %v1862, %v1860
        %v1921 = vpack.c.bf16 %v1863, %v1861
        %v1922 = vpack.c.bf16 %v1866, %v1864
        %v1923 = vpack.c.bf16 %v1867, %v1865
        %v1924 = vpack.c.bf16 %v1870, %v1868
        %v1925 = vpack.c.bf16 %v1871, %v1869
        %v1926 = vpack.c.bf16 %v1874, %v1872
        %v1927 = vpack.c.bf16 %v1875, %v1873
        %v1928 = vpack.c.bf16 %v1878, %v1876
        %v1929 = vpack.c.bf16 %v1879, %v1877
        %v1930 = vpack.c.bf16 %v1882, %v1880
        %v1931 = vpack.c.bf16 %v1883, %v1881
        %v1932 = vpack.c.bf16 %v1886, %v1884
        %v1933 = vpack.c.bf16 %v1887, %v1885
        %v1934 = vpack.c.bf16 %v1890, %v1888
        %v1935 = vpack.c.bf16 %v1891, %v1889
        %v1936 = vpack.c.bf16 %v1894, %v1892
        %v1937 = vpack.c.bf16 %v1895, %v1893
        %v1938 = vpack.c.bf16 %v1898, %v1896
        %v1939 = vpack.c.bf16 %v1899, %v1897
        %v1940 = vpack.c.bf16 %v1902, %v1900
        %v1941 = vpack.c.bf16 %v1903, %v1901
        %v1942 = vpack.c.bf16 %v1906, %v1904
        %v1943 = vpack.c.bf16 %v1907, %v1905
        %v1944 = vpack.c.bf16 %v1910, %v1908
        %v1945 = vpack.c.bf16 %v1911, %v1909
        %v1946 = vpack.c.bf16 %v1914, %v1912
        %v1947 = vpack.c.bf16 %v1915, %v1913
        %v1949 = vmul.bf16 %v1916, 1069105081
        %v1950 = vpow.bf16.pop %v1949
        %v1952 = vmul.bf16 %v1917, 1069105081
        %v1953 = vpow.bf16.pop %v1952
        %v1955 = vmul.bf16 %v1918, 1069105081
        %v1956 = vpow.bf16.pop %v1955
        %v1958 = vmul.bf16 %v1919, 1069105081
        %v1959 = vpow.bf16.pop %v1958
        %v1961 = vmul.bf16 %v1920, 1069105081
        %v1962 = vpow.bf16.pop %v1961
        %v1964 = vmul.bf16 %v1921, 1069105081
        %v1965 = vpow.bf16.pop %v1964
        %v1967 = vmul.bf16 %v1922, 1069105081
        %v1968 = vpow.bf16.pop %v1967
        %v1970 = vmul.bf16 %v1923, 1069105081
        %v1971 = vpow.bf16.pop %v1970
        %v1973 = vmul.bf16 %v1924, 1069105081
        %v1974 = vpow.bf16.pop %v1973
        %v1976 = vmul.bf16 %v1925, 1069105081
        %v1977 = vpow.bf16.pop %v1976
        %v1979 = vmul.bf16 %v1926, 1069105081
        %v1980 = vpow.bf16.pop %v1979
        %v1982 = vmul.bf16 %v1927, 1069105081
        %v1983 = vpow.bf16.pop %v1982
        %v1985 = vmul.bf16 %v1928, 1069105081
        %v1986 = vpow.bf16.pop %v1985
        %v1988 = vmul.bf16 %v1929, 1069105081
        %v1989 = vpow.bf16.pop %v1988
        %v1991 = vmul.bf16 %v1930, 1069105081
        %v1992 = vpow.bf16.pop %v1991
        %v1994 = vmul.bf16 %v1931, 1069105081
        %v1995 = vpow.bf16.pop %v1994
        %v1997 = vmul.bf16 %v1932, 1069105081
        %v1998 = vpow.bf16.pop %v1997
        %v2000 = vmul.bf16 %v1933, 1069105081
        %v2001 = vpow.bf16.pop %v2000
        %v2003 = vmul.bf16 %v1934, 1069105081
        %v2004 = vpow.bf16.pop %v2003
        %v2006 = vmul.bf16 %v1935, 1069105081
        %v2007 = vpow.bf16.pop %v2006
        %v2009 = vmul.bf16 %v1936, 1069105081
        %v2010 = vpow.bf16.pop %v2009
        %v2012 = vmul.bf16 %v1937, 1069105081
        %v2013 = vpow.bf16.pop %v2012
        %v2015 = vmul.bf16 %v1938, 1069105081
        %v2016 = vpow.bf16.pop %v2015
        %v2018 = vmul.bf16 %v1939, 1069105081
        %v2019 = vpow.bf16.pop %v2018
        %v2021 = vmul.bf16 %v1940, 1069105081
        %v2022 = vpow.bf16.pop %v2021
        %v2024 = vmul.bf16 %v1941, 1069105081
        %v2025 = vpow.bf16.pop %v2024
        %v2027 = vmul.bf16 %v1942, 1069105081
        %v2028 = vpow.bf16.pop %v2027
        %v2030 = vmul.bf16 %v1943, 1069105081
        %v2031 = vpow.bf16.pop %v2030
        %v2033 = vmul.bf16 %v1944, 1069105081
        %v2034 = vpow.bf16.pop %v2033
        %v2036 = vmul.bf16 %v1945, 1069105081
        %v2037 = vpow.bf16.pop %v2036
        %v2039 = vmul.bf16 %v1946, 1069105081
        %v2040 = vpow.bf16.pop %v2039
        %v2042 = vmul.bf16 %v1947, 1069105081
        %v2043 = vpow.bf16.pop %v2042
        %v2044 = vunpack.c.l.bf16 %v1950
        %v2045 = vunpack.c.l.bf16 %v1953
        %v2046 = vunpack.c.h.bf16 %v1950
        %v2047 = vunpack.c.h.bf16 %v1953
        %v2048 = vunpack.c.l.bf16 %v1956
        %v2049 = vunpack.c.l.bf16 %v1959
        %v2050 = vunpack.c.h.bf16 %v1956
        %v2051 = vunpack.c.h.bf16 %v1959
        %v2052 = vunpack.c.l.bf16 %v1962
        %v2053 = vunpack.c.l.bf16 %v1965
        %v2054 = vunpack.c.h.bf16 %v1962
        %v2055 = vunpack.c.h.bf16 %v1965
        %v2056 = vunpack.c.l.bf16 %v1968
        %v2057 = vunpack.c.l.bf16 %v1971
        %v2058 = vunpack.c.h.bf16 %v1968
        %v2059 = vunpack.c.h.bf16 %v1971
        %v2060 = vunpack.c.l.bf16 %v1974
        %v2061 = vunpack.c.l.bf16 %v1977
        %v2062 = vunpack.c.h.bf16 %v1974
        %v2063 = vunpack.c.h.bf16 %v1977
        %v2064 = vunpack.c.l.bf16 %v1980
        %v2065 = vunpack.c.l.bf16 %v1983
        %v2066 = vunpack.c.h.bf16 %v1980
        %v2067 = vunpack.c.h.bf16 %v1983
        %v2068 = vunpack.c.l.bf16 %v1986
        %v2069 = vunpack.c.l.bf16 %v1989
        %v2070 = vunpack.c.h.bf16 %v1986
        %v2071 = vunpack.c.h.bf16 %v1989
        %v2072 = vunpack.c.l.bf16 %v1992
        %v2073 = vunpack.c.l.bf16 %v1995
        %v2074 = vunpack.c.h.bf16 %v1992
        %v2075 = vunpack.c.h.bf16 %v1995
        %v2076 = vunpack.c.l.bf16 %v1998
        %v2077 = vunpack.c.l.bf16 %v2001
        %v2078 = vunpack.c.h.bf16 %v1998
        %v2079 = vunpack.c.h.bf16 %v2001
        %v2080 = vunpack.c.l.bf16 %v2004
        %v2081 = vunpack.c.l.bf16 %v2007
        %v2082 = vunpack.c.h.bf16 %v2004
        %v2083 = vunpack.c.h.bf16 %v2007
        %v2084 = vunpack.c.l.bf16 %v2010
        %v2085 = vunpack.c.l.bf16 %v2013
        %v2086 = vunpack.c.h.bf16 %v2010
        %v2087 = vunpack.c.h.bf16 %v2013
        %v2088 = vunpack.c.l.bf16 %v2016
        %v2089 = vunpack.c.l.bf16 %v2019
        %v2090 = vunpack.c.h.bf16 %v2016
        %v2091 = vunpack.c.h.bf16 %v2019
        %v2092 = vunpack.c.l.bf16 %v2022
        %v2093 = vunpack.c.l.bf16 %v2025
        %v2094 = vunpack.c.h.bf16 %v2022
        %v2095 = vunpack.c.h.bf16 %v2025
        %v2096 = vunpack.c.l.bf16 %v2028
        %v2097 = vunpack.c.l.bf16 %v2031
        %v2098 = vunpack.c.h.bf16 %v2028
        %v2099 = vunpack.c.h.bf16 %v2031
        %v2100 = vunpack.c.l.bf16 %v2034
        %v2101 = vunpack.c.l.bf16 %v2037
        %v2102 = vunpack.c.h.bf16 %v2034
        %v2103 = vunpack.c.h.bf16 %v2037
        %v2104 = vunpack.c.l.bf16 %v2040
        %v2105 = vunpack.c.l.bf16 %v2043
        %v2106 = vunpack.c.h.bf16 %v2040
        %v2107 = vunpack.c.h.bf16 %v2043
        %v2108 = vadd.f32 %v2044, %v2045
        %2109 = vadd.xlane.f32.xlu0 %v2108
        %v2110 = vpop.xlane.xlu0 %2109
        %v2111 = vadd.f32 %v2046, %v2047
        %2112 = vadd.xlane.f32.xlu0 %v2111
        %v2113 = vpop.xlane.xlu0 %2112
        %v2114 = vadd.f32 %v2048, %v2049
        %2115 = vadd.xlane.f32.xlu0 %v2114
        %v2116 = vpop.xlane.xlu0 %2115
        %v2117 = vadd.f32 %v2050, %v2051
        %2118 = vadd.xlane.f32.xlu0 %v2117
        %v2119 = vpop.xlane.xlu0 %2118
        %v2120 = vadd.f32 %v2052, %v2053
        %2121 = vadd.xlane.f32.xlu0 %v2120
        %v2122 = vpop.xlane.xlu0 %2121
        %v2123 = vadd.f32 %v2054, %v2055
        %2124 = vadd.xlane.f32.xlu0 %v2123
        %v2125 = vpop.xlane.xlu0 %2124
        %v2126 = vadd.f32 %v2056, %v2057
        %2127 = vadd.xlane.f32.xlu0 %v2126
        %v2128 = vpop.xlane.xlu0 %2127
        %v2129 = vadd.f32 %v2058, %v2059
        %2130 = vadd.xlane.f32.xlu0 %v2129
        %v2131 = vpop.xlane.xlu0 %2130
        %v2132 = vadd.f32 %v2060, %v2061
        %2133 = vadd.xlane.f32.xlu0 %v2132
        %v2134 = vpop.xlane.xlu0 %2133
        %v2135 = vadd.f32 %v2062, %v2063
        %2136 = vadd.xlane.f32.xlu0 %v2135
        %v2137 = vpop.xlane.xlu0 %2136
        %v2138 = vadd.f32 %v2064, %v2065
        %2139 = vadd.xlane.f32.xlu0 %v2138
        %v2140 = vpop.xlane.xlu0 %2139
        %v2141 = vadd.f32 %v2066, %v2067
        %2142 = vadd.xlane.f32.xlu0 %v2141
        %v2143 = vpop.xlane.xlu0 %2142
        %v2144 = vadd.f32 %v2068, %v2069
        %2145 = vadd.xlane.f32.xlu0 %v2144
        %v2146 = vpop.xlane.xlu0 %2145
        %v2147 = vadd.f32 %v2070, %v2071
        %2148 = vadd.xlane.f32.xlu0 %v2147
        %v2149 = vpop.xlane.xlu0 %2148
        %v2150 = vadd.f32 %v2072, %v2073
        %2151 = vadd.xlane.f32.xlu0 %v2150
        %v2152 = vpop.xlane.xlu0 %2151
        %v2153 = vadd.f32 %v2074, %v2075
        %2154 = vadd.xlane.f32.xlu0 %v2153
        %v2155 = vpop.xlane.xlu0 %2154
        %v2156 = vadd.f32 %v2076, %v2077
        %2157 = vadd.xlane.f32.xlu0 %v2156
        %v2158 = vpop.xlane.xlu0 %2157
        %v2159 = vadd.f32 %v2078, %v2079
        %2160 = vadd.xlane.f32.xlu0 %v2159
        %v2161 = vpop.xlane.xlu0 %2160
        %v2162 = vadd.f32 %v2080, %v2081
        %2163 = vadd.xlane.f32.xlu0 %v2162
        %v2164 = vpop.xlane.xlu0 %2163
        %v2165 = vadd.f32 %v2082, %v2083
        %2166 = vadd.xlane.f32.xlu0 %v2165
        %v2167 = vpop.xlane.xlu0 %2166
        %v2168 = vadd.f32 %v2084, %v2085
        %2169 = vadd.xlane.f32.xlu0 %v2168
        %v2170 = vpop.xlane.xlu0 %2169
        %v2171 = vadd.f32 %v2086, %v2087
        %2172 = vadd.xlane.f32.xlu0 %v2171
        %v2173 = vpop.xlane.xlu0 %2172
        %v2174 = vadd.f32 %v2088, %v2089
        %2175 = vadd.xlane.f32.xlu0 %v2174
        %v2176 = vpop.xlane.xlu0 %2175
        %v2177 = vadd.f32 %v2090, %v2091
        %2178 = vadd.xlane.f32.xlu0 %v2177
        %v2179 = vpop.xlane.xlu0 %2178
        %v2180 = vadd.f32 %v2092, %v2093
        %2181 = vadd.xlane.f32.xlu0 %v2180
        %v2182 = vpop.xlane.xlu0 %2181
        %v2183 = vadd.f32 %v2094, %v2095
        %2184 = vadd.xlane.f32.xlu0 %v2183
        %v2185 = vpop.xlane.xlu0 %2184
        %v2186 = vadd.f32 %v2096, %v2097
        %2187 = vadd.xlane.f32.xlu0 %v2186
        %v2188 = vpop.xlane.xlu0 %2187
        %v2189 = vadd.f32 %v2098, %v2099
        %2190 = vadd.xlane.f32.xlu0 %v2189
        %v2191 = vpop.xlane.xlu0 %2190
        %v2192 = vadd.f32 %v2100, %v2101
        %2193 = vadd.xlane.f32.xlu0 %v2192
        %v2194 = vpop.xlane.xlu0 %2193
        %v2195 = vadd.f32 %v2102, %v2103
        %2196 = vadd.xlane.f32.xlu0 %v2195
        %v2197 = vpop.xlane.xlu0 %2196
        %v2198 = vadd.f32 %v2104, %v2105
        %2199 = vadd.xlane.f32.xlu0 %v2198
        %v2200 = vpop.xlane.xlu0 %2199
        %v2201 = vadd.f32 %v2106, %v2107
        %2202 = vadd.xlane.f32.xlu0 %v2201
        %v2203 = vpop.xlane.xlu0 %2202
        %2204 = vmatprep.subr.bf16.mxu0 0
        %2205 = vmatpush1.bf16.msra.mxu0 %v1547
        %2206 = vmatprep.subr.bf16.mxu0 0
        %2207 = vmatpush1.bf16.msra.mxu0 %v1548
        %2208 = vmatprep.subr.bf16.mxu0 0
        %2209 = vmatpush1.bf16.msra.mxu0 %v1549
        %2210 = vmatprep.subr.bf16.mxu0 0
        %2211 = vmatpush1.bf16.msra.mxu0 %v1550
        %2212 = vmatprep.subr.bf16.mxu0 0
        %2213 = vmatpush1.bf16.msra.mxu0 %v1551
        %2214 = vmatprep.subr.bf16.mxu0 0
        %2215 = vmatpush1.bf16.msra.mxu0 %v1552
        %2216 = vmatprep.subr.bf16.mxu0 0
        %2217 = vmatpush1.bf16.msra.mxu0 %v1553
        %2218 = vmatprep.subr.bf16.mxu0 0
        %2219 = vmatpush1.bf16.msra.mxu0 %v1554
        %2220 = vmatprep.subr.bf16.mxu0 0
        %2221 = vmatpush1.bf16.msra.mxu0 %v1555
        %2222 = vmatprep.subr.bf16.mxu0 0
        %2223 = vmatpush1.bf16.msra.mxu0 %v1556
        %2224 = vmatprep.subr.bf16.mxu0 0
        %2225 = vmatpush1.bf16.msra.mxu0 %v1557
        %2226 = vmatprep.subr.bf16.mxu0 0
        %2227 = vmatpush1.bf16.msra.mxu0 %v1558
        %2228 = vmatprep.subr.bf16.mxu0 0
        %2229 = vmatpush1.bf16.msra.mxu0 %v1559
        %2230 = vmatprep.subr.bf16.mxu0 0
        %2231 = vmatpush1.bf16.msra.mxu0 %v1560
        %2232 = vmatprep.subr.bf16.mxu0 0
        %2233 = vmatpush1.bf16.msra.mxu0 %v1561
        %2234 = vmatprep.subr.bf16.mxu0 0
        %2235 = vmatpush1.bf16.msra.mxu0 %v1562
        %2236 = vmatprep.mubr.bf16.mxu0 %v1953
        %2237 = vmatmul.mubr.bf16.gmra.mrb[0].mxu0 %v1950
        %v2238 = vpop.f32.mrb[0].mxu0
        %v2239 = vadd.f32 0.0, %v2238
        %v2240 = vpop.f32.mrb[0].mxu0
        %v2241 = vpop.f32.mrb[0].mxu0
        %v2242 = vadd.f32 0.0, %v2241
        %v2243 = vpop.f32.mrb[0].mxu0
        %2244 = vmatprep.mubr.bf16.mxu0 %v1959
        %2245 = vmatmul.mubr.bf16.gmra.mrb[0].mxu0 %v1956
        %v2246 = vpop.f32.mrb[0].mxu0
        %v2247 = vadd.f32 0.0, %v2246
        %v2248 = vpop.f32.mrb[0].mxu0
        %v2249 = vpop.f32.mrb[0].mxu0
        %v2250 = vadd.f32 0.0, %v2249
        %v2251 = vpop.f32.mrb[0].mxu0
        %2252 = vmatprep.mubr.bf16.mxu0 %v1965
        %2253 = vmatmul.mubr.bf16.gmra.mrb[0].mxu0 %v1962
        %v2254 = vpop.f32.mrb[0].mxu0
        %v2255 = vadd.f32 0.0, %v2254
        %v2256 = vpop.f32.mrb[0].mxu0
        %v2257 = vpop.f32.mrb[0].mxu0
        %v2258 = vadd.f32 0.0, %v2257
        %v2259 = vpop.f32.mrb[0].mxu0
        %2260 = vmatprep.mubr.bf16.mxu0 %v1971
        %2261 = vmatmul.mubr.bf16.gmra.mrb[0].mxu0 %v1968
        %v2262 = vpop.f32.mrb[0].mxu0
        %v2263 = vadd.f32 0.0, %v2262
        %v2264 = vpop.f32.mrb[0].mxu0
        %v2265 = vpop.f32.mrb[0].mxu0
        %v2266 = vadd.f32 0.0, %v2265
        %v2267 = vpop.f32.mrb[0].mxu0
        %2268 = vmatprep.mubr.bf16.mxu0 %v1977
        %2269 = vmatmul.mubr.bf16.gmra.mrb[0].mxu0 %v1974
        %v2270 = vpop.f32.mrb[0].mxu0
        %v2271 = vadd.f32 0.0, %v2270
        %v2272 = vpop.f32.mrb[0].mxu0
        %v2273 = vpop.f32.mrb[0].mxu0
        %v2274 = vadd.f32 0.0, %v2273
        %v2275 = vpop.f32.mrb[0].mxu0
        %2276 = vmatprep.mubr.bf16.mxu0 %v1983
        %2277 = vmatmul.mubr.bf16.gmra.mrb[0].mxu0 %v1980
        %v2278 = vpop.f32.mrb[0].mxu0
        %v2279 = vadd.f32 0.0, %v2278
        %v2280 = vpop.f32.mrb[0].mxu0
        %v2281 = vpop.f32.mrb[0].mxu0
        %v2282 = vadd.f32 0.0, %v2281
        %v2283 = vpop.f32.mrb[0].mxu0
        %2284 = vmatprep.mubr.bf16.mxu0 %v1989
        %2285 = vmatmul.mubr.bf16.gmra.mrb[0].mxu0 %v1986
        %v2286 = vpop.f32.mrb[0].mxu0
        %v2287 = vadd.f32 0.0, %v2286
        %v2288 = vpop.f32.mrb[0].mxu0
        %v2289 = vpop.f32.mrb[0].mxu0
        %v2290 = vadd.f32 0.0, %v2289
        %v2291 = vpop.f32.mrb[0].mxu0
        %2292 = vmatprep.mubr.bf16.mxu0 %v1995
        %2293 = vmatmul.mubr.bf16.gmra.mrb[0].mxu0 %v1992
        %v2294 = vpop.f32.mrb[0].mxu0
        %v2295 = vadd.f32 0.0, %v2294
        %v2296 = vpop.f32.mrb[0].mxu0
        %v2297 = vpop.f32.mrb[0].mxu0
        %v2298 = vadd.f32 0.0, %v2297
        %v2299 = vpop.f32.mrb[0].mxu0
        %2300 = vmatprep.mubr.bf16.mxu0 %v2001
        %2301 = vmatmul.mubr.bf16.gmra.mrb[0].mxu0 %v1998
        %v2302 = vpop.f32.mrb[0].mxu0
        %v2303 = vadd.f32 0.0, %v2302
        %v2304 = vpop.f32.mrb[0].mxu0
        %v2305 = vpop.f32.mrb[0].mxu0
        %v2306 = vadd.f32 0.0, %v2305
        %v2307 = vpop.f32.mrb[0].mxu0
        %2308 = vmatprep.mubr.bf16.mxu0 %v2007
        %2309 = vmatmul.mubr.bf16.gmra.mrb[0].mxu0 %v2004
        %v2310 = vpop.f32.mrb[0].mxu0
        %v2311 = vadd.f32 0.0, %v2310
        %v2312 = vpop.f32.mrb[0].mxu0
        %v2313 = vpop.f32.mrb[0].mxu0
        %v2314 = vadd.f32 0.0, %v2313
        %v2315 = vpop.f32.mrb[0].mxu0
        %2316 = vmatprep.mubr.bf16.mxu0 %v2013
        %2317 = vmatmul.mubr.bf16.gmra.mrb[0].mxu0 %v2010
        %v2318 = vpop.f32.mrb[0].mxu0
        %v2319 = vadd.f32 0.0, %v2318
        %v2320 = vpop.f32.mrb[0].mxu0
        %v2321 = vpop.f32.mrb[0].mxu0
        %v2322 = vadd.f32 0.0, %v2321
        %v2323 = vpop.f32.mrb[0].mxu0
        %2324 = vmatprep.mubr.bf16.mxu0 %v2019
        %2325 = vmatmul.mubr.bf16.gmra.mrb[0].mxu0 %v2016
        %v2326 = vpop.f32.mrb[0].mxu0
        %v2327 = vadd.f32 0.0, %v2326
        %v2328 = vpop.f32.mrb[0].mxu0
        %v2329 = vpop.f32.mrb[0].mxu0
        %v2330 = vadd.f32 0.0, %v2329
        %v2331 = vpop.f32.mrb[0].mxu0
        %2332 = vmatprep.mubr.bf16.mxu0 %v2025
        %2333 = vmatmul.mubr.bf16.gmra.mrb[0].mxu0 %v2022
        %v2334 = vpop.f32.mrb[0].mxu0
        %v2335 = vadd.f32 0.0, %v2334
        %v2336 = vpop.f32.mrb[0].mxu0
        %v2337 = vpop.f32.mrb[0].mxu0
        %v2338 = vadd.f32 0.0, %v2337
        %v2339 = vpop.f32.mrb[0].mxu0
        %2340 = vmatprep.mubr.bf16.mxu0 %v2031
        %2341 = vmatmul.mubr.bf16.gmra.mrb[0].mxu0 %v2028
        %v2342 = vpop.f32.mrb[0].mxu0
        %v2343 = vadd.f32 0.0, %v2342
        %v2344 = vpop.f32.mrb[0].mxu0
        %v2345 = vpop.f32.mrb[0].mxu0
        %v2346 = vadd.f32 0.0, %v2345
        %v2347 = vpop.f32.mrb[0].mxu0
        %2348 = vmatprep.mubr.bf16.mxu0 %v2037
        %2349 = vmatmul.mubr.bf16.gmra.mrb[0].mxu0 %v2034
        %v2350 = vpop.f32.mrb[0].mxu0
        %v2351 = vadd.f32 0.0, %v2350
        %v2352 = vpop.f32.mrb[0].mxu0
        %v2353 = vpop.f32.mrb[0].mxu0
        %v2354 = vadd.f32 0.0, %v2353
        %v2355 = vpop.f32.mrb[0].mxu0
        %2356 = vmatprep.mubr.bf16.mxu0 %v2043
        %2357 = vmatmul.mubr.bf16.gmra.mrb[0].mxu0 %v2040
        %v2358 = vpop.f32.mrb[0].mxu0
        %v2359 = vadd.f32 0.0, %v2358
        %v2360 = vpop.f32.mrb[0].mxu0
        %v2361 = vpop.f32.mrb[0].mxu0
        %v2362 = vadd.f32 0.0, %v2361
        %v2363 = vpop.f32.mrb[0].mxu0
        %2364 = vdwg.mxu0
        %v2365 = vrcp.pop %v2110
        %v2366 = vrcp.pop %v2113
        %v2367 = vrcp.pop %v2116
        %v2368 = vrcp.pop %v2119
        %v2369 = vrcp.pop %v2122
        %v2370 = vrcp.pop %v2125
        %v2371 = vrcp.pop %v2128
        %v2372 = vrcp.pop %v2131
        %v2373 = vrcp.pop %v2134
        %v2374 = vrcp.pop %v2137
        %v2375 = vrcp.pop %v2140
        %v2376 = vrcp.pop %v2143
        %v2377 = vrcp.pop %v2146
        %v2378 = vrcp.pop %v2149
        %v2379 = vrcp.pop %v2152
        %v2380 = vrcp.pop %v2155
        %v2381 = vrcp.pop %v2158
        %v2382 = vrcp.pop %v2161
        %v2383 = vrcp.pop %v2164
        %v2384 = vrcp.pop %v2167
        %v2385 = vrcp.pop %v2170
        %v2386 = vrcp.pop %v2173
        %v2387 = vrcp.pop %v2176
        %v2388 = vrcp.pop %v2179
        %v2389 = vrcp.pop %v2182
        %v2390 = vrcp.pop %v2185
        %v2391 = vrcp.pop %v2188
        %v2392 = vrcp.pop %v2191
        %v2393 = vrcp.pop %v2194
        %v2394 = vrcp.pop %v2197
        %v2395 = vrcp.pop %v2200
        %v2396 = vrcp.pop %v2203
        %v2397 = vmul.f32 %v2239, %v2365
        %v2398 = vmul.f32 %v2242, %v2366
        %v2399 = vmul.f32 %v2247, %v2367
        %v2400 = vmul.f32 %v2250, %v2368
        %v2401 = vmul.f32 %v2255, %v2369
        %v2402 = vmul.f32 %v2258, %v2370
        %v2403 = vmul.f32 %v2263, %v2371
        %v2404 = vmul.f32 %v2266, %v2372
        %v2405 = vmul.f32 %v2271, %v2373
        %v2406 = vmul.f32 %v2274, %v2374
        %v2407 = vmul.f32 %v2279, %v2375
        %v2408 = vmul.f32 %v2282, %v2376
        %v2409 = vmul.f32 %v2287, %v2377
        %v2410 = vmul.f32 %v2290, %v2378
        %v2411 = vmul.f32 %v2295, %v2379
        %v2412 = vmul.f32 %v2298, %v2380
        %v2413 = vmul.f32 %v2303, %v2381
        %v2414 = vmul.f32 %v2306, %v2382
        %v2415 = vmul.f32 %v2311, %v2383
        %v2416 = vmul.f32 %v2314, %v2384
        %v2417 = vmul.f32 %v2319, %v2385
        %v2418 = vmul.f32 %v2322, %v2386
        %v2419 = vmul.f32 %v2327, %v2387
        %v2420 = vmul.f32 %v2330, %v2388
        %v2421 = vmul.f32 %v2335, %v2389
        %v2422 = vmul.f32 %v2338, %v2390
        %v2423 = vmul.f32 %v2343, %v2391
        %v2424 = vmul.f32 %v2346, %v2392
        %v2425 = vmul.f32 %v2351, %v2393
        %v2426 = vmul.f32 %v2354, %v2394
        %v2427 = vmul.f32 %v2359, %v2395
        %v2428 = vmul.f32 %v2362, %v2396
        %v2429 = vpack.c.bf16 %v2398, %v2397
        %v2430 = vpack.c.bf16 %v2400, %v2399
        %v2431 = vpack.c.bf16 %v2402, %v2401
        %v2432 = vpack.c.bf16 %v2404, %v2403
        %v2433 = vpack.c.bf16 %v2406, %v2405
        %v2434 = vpack.c.bf16 %v2408, %v2407
        %v2435 = vpack.c.bf16 %v2410, %v2409
        %v2436 = vpack.c.bf16 %v2412, %v2411
        %v2437 = vpack.c.bf16 %v2414, %v2413
        %v2438 = vpack.c.bf16 %v2416, %v2415
        %v2439 = vpack.c.bf16 %v2418, %v2417
        %v2440 = vpack.c.bf16 %v2420, %v2419
        %v2441 = vpack.c.bf16 %v2422, %v2421
        %v2442 = vpack.c.bf16 %v2424, %v2423
        %v2443 = vpack.c.bf16 %v2426, %v2425
        %v2444 = vpack.c.bf16 %v2428, %v2427
        %v2445 = vld [vmem:[#allocation12] sm:$0xf]
        %v2446 = vld [vmem:[#allocation12 + $0x4] sm:$0xf]
        %v2447 = vld [vmem:[#allocation12 + $0x8] sm:$0xf]
        %v2448 = vld [vmem:[#allocation12 + $0xc] sm:$0xf]
        %v2449 = vld [vmem:[#allocation12 + $0x10] sm:$0xf]
        %v2450 = vld [vmem:[#allocation12 + $0x14] sm:$0xf]
        %v2451 = vld [vmem:[#allocation12 + $0x18] sm:$0xf]
        %v2452 = vld [vmem:[#allocation12 + $0x1c] sm:$0xf]
        %v2453 = vld [vmem:[#allocation12 + $0x20] sm:$0xf]
        %v2454 = vld [vmem:[#allocation12 + $0x24] sm:$0xf]
        %v2455 = vld [vmem:[#allocation12 + $0x28] sm:$0xf]
        %v2456 = vld [vmem:[#allocation12 + $0x2c] sm:$0xf]
        %v2457 = vld [vmem:[#allocation12 + $0x30] sm:$0xf]
        %v2458 = vld [vmem:[#allocation12 + $0x34] sm:$0xf]
        %v2459 = vld [vmem:[#allocation12 + $0x38] sm:$0xf]
        %v2460 = vld [vmem:[#allocation12 + $0x3c] sm:$0xf]
        %v2461 = vld [vmem:[%s7] sm:$0x1]
        %v2463 = vlaneseq
        %v2464 = vshrl.u32 %v2463, 7
        %v2465 = vsub.s32 0, %v2464
        %v2466 = vrot.slane %v2461, %v2465
        %v2484 = vunpack.c.l.b16 %v2445
        %v2485 = vunpack.c.l.b16 %v2446
        %v2486 = vunpack.c.l.b16 %v2447
        %v2487 = vunpack.c.l.b16 %v2448
        %v2488 = vunpack.c.l.b16 %v2449
        %v2489 = vunpack.c.l.b16 %v2450
        %v2490 = vunpack.c.l.b16 %v2451
        %v2491 = vunpack.c.l.b16 %v2452
        %v2492 = vunpack.c.l.b16 %v2453
        %v2493 = vunpack.c.l.b16 %v2454
        %v2494 = vunpack.c.l.b16 %v2455
        %v2495 = vunpack.c.l.b16 %v2456
        %v2496 = vunpack.c.l.b16 %v2457
        %v2497 = vunpack.c.l.b16 %v2458
        %v2498 = vunpack.c.l.b16 %v2459
        %v2499 = vunpack.c.l.b16 %v2460
        %v2500 = vpack.c.b16 %v2485, %v2484
        %v2501 = vpack.c.b16 %v2487, %v2486
        %v2502 = vpack.c.b16 %v2489, %v2488
        %v2503 = vpack.c.b16 %v2491, %v2490
        %v2504 = vpack.c.b16 %v2493, %v2492
        %v2505 = vpack.c.b16 %v2495, %v2494
        %v2506 = vpack.c.b16 %v2497, %v2496
        %v2507 = vpack.c.b16 %v2499, %v2498
        %2516 = vmatprep.subr.bf16.mxu0 0
        %2517 = vmatpush1.bf16.msra.mxu0 %v2500
        %2518 = vmatprep.subr.bf16.mxu0 0
        %2519 = vmatpush1.bf16.msra.mxu0 %v2501
        %2520 = vmatprep.subr.bf16.mxu0 0
        %2521 = vmatpush1.bf16.msra.mxu0 %v2502
        %2522 = vmatprep.subr.bf16.mxu0 0
        %2523 = vmatpush1.bf16.msra.mxu0 %v2503
        %2524 = vmatprep.subr.bf16.mxu0 0
        %2525 = vmatpush1.bf16.msra.mxu0 %v2504
        %2526 = vmatprep.subr.bf16.mxu0 0
        %2527 = vmatpush1.bf16.msra.mxu0 %v2505
        %2528 = vmatprep.subr.bf16.mxu0 0
        %2529 = vmatpush1.bf16.msra.mxu0 %v2506
        %2530 = vmatprep.subr.bf16.mxu0 0
        %2531 = vmatpush1.bf16.msra.mxu0 %v2507
        %2532 = vmatprep.subr.bf16.mxu0 0
        %2533 = vmatpush1.bf16.msra.mxu0 0
        %2534 = vmatprep.subr.bf16.mxu0 0
        %2535 = vmatpush1.bf16.msra.mxu0 0
        %2536 = vmatprep.subr.bf16.mxu0 0
        %2537 = vmatpush1.bf16.msra.mxu0 0
        %2538 = vmatprep.subr.bf16.mxu0 0
        %2539 = vmatpush1.bf16.msra.mxu0 0
        %2540 = vmatprep.subr.bf16.mxu0 0
        %2541 = vmatpush1.bf16.msra.mxu0 0
        %2542 = vmatprep.subr.bf16.mxu0 0
        %2543 = vmatpush1.bf16.msra.mxu0 0
        %2544 = vmatprep.subr.bf16.mxu0 0
        %2545 = vmatpush1.bf16.msra.mxu0 0
        %2546 = vmatprep.subr.bf16.mxu0 0
        %2547 = vmatpush1.bf16.msra.mxu0 0
        %2548 = vmatprep.mubr.bf16.mxu0 0
        %2549 = vmatmul.mubr.bf16.gmra.mrb[0].mxu0 %v2429
        %v2550 = vpop.f32.mrb[0].mxu0
        %v2551 = vadd.f32 %v2466, %v2550
        %v2552 = vpop.f32.mrb[0].mxu0
        %v2553 = vpop.f32.mrb[0].mxu0
        %v2554 = vadd.f32 %v2466, %v2553
        %v2555 = vpop.f32.mrb[0].mxu0
        %2556 = vmatprep.mubr.bf16.mxu0 0
        %2557 = vmatmul.mubr.bf16.gmra.mrb[0].mxu0 %v2430
        %v2558 = vpop.f32.mrb[0].mxu0
        %v2559 = vadd.f32 %v2466, %v2558
        %v2560 = vpop.f32.mrb[0].mxu0
        %v2561 = vpop.f32.mrb[0].mxu0
        %v2562 = vadd.f32 %v2466, %v2561
        %v2563 = vpop.f32.mrb[0].mxu0
        %2564 = vmatprep.mubr.bf16.mxu0 0
        %2565 = vmatmul.mubr.bf16.gmra.mrb[0].mxu0 %v2431
        %v2566 = vpop.f32.mrb[0].mxu0
        %v2567 = vadd.f32 %v2466, %v2566
        %v2568 = vpop.f32.mrb[0].mxu0
        %v2569 = vpop.f32.mrb[0].mxu0
        %v2570 = vadd.f32 %v2466, %v2569
        %v2571 = vpop.f32.mrb[0].mxu0
        %2572 = vmatprep.mubr.bf16.mxu0 0
        %2573 = vmatmul.mubr.bf16.gmra.mrb[0].mxu0 %v2432
        %v2574 = vpop.f32.mrb[0].mxu0
        %v2575 = vadd.f32 %v2466, %v2574
        %v2576 = vpop.f32.mrb[0].mxu0
        %v2577 = vpop.f32.mrb[0].mxu0
        %v2578 = vadd.f32 %v2466, %v2577
        %v2579 = vpop.f32.mrb[0].mxu0
        %2580 = vmatprep.mubr.bf16.mxu0 0
        %2581 = vmatmul.mubr.bf16.gmra.mrb[0].mxu0 %v2433
        %v2582 = vpop.f32.mrb[0].mxu0
        %v2583 = vadd.f32 %v2466, %v2582
        %v2584 = vpop.f32.mrb[0].mxu0
        %v2585 = vpop.f32.mrb[0].mxu0
        %v2586 = vadd.f32 %v2466, %v2585
        %v2587 = vpop.f32.mrb[0].mxu0
        %2588 = vmatprep.mubr.bf16.mxu0 0
        %2589 = vmatmul.mubr.bf16.gmra.mrb[0].mxu0 %v2434
        %v2590 = vpop.f32.mrb[0].mxu0
        %v2591 = vadd.f32 %v2466, %v2590
        %v2592 = vpop.f32.mrb[0].mxu0
        %v2593 = vpop.f32.mrb[0].mxu0
        %v2594 = vadd.f32 %v2466, %v2593
        %v2595 = vpop.f32.mrb[0].mxu0
        %2596 = vmatprep.mubr.bf16.mxu0 0
        %2597 = vmatmul.mubr.bf16.gmra.mrb[0].mxu0 %v2435
        %v2598 = vpop.f32.mrb[0].mxu0
        %v2599 = vadd.f32 %v2466, %v2598
        %v2600 = vpop.f32.mrb[0].mxu0
        %v2601 = vpop.f32.mrb[0].mxu0
        %v2602 = vadd.f32 %v2466, %v2601
        %v2603 = vpop.f32.mrb[0].mxu0
        %2604 = vmatprep.mubr.bf16.mxu0 0
        %2605 = vmatmul.mubr.bf16.gmra.mrb[0].mxu0 %v2436
        %v2606 = vpop.f32.mrb[0].mxu0
        %v2607 = vadd.f32 %v2466, %v2606
        %v2608 = vpop.f32.mrb[0].mxu0
        %v2609 = vpop.f32.mrb[0].mxu0
        %v2610 = vadd.f32 %v2466, %v2609
        %v2611 = vpop.f32.mrb[0].mxu0
        %2612 = vmatprep.mubr.bf16.mxu0 0
        %2613 = vmatmul.mubr.bf16.gmra.mrb[0].mxu0 %v2437
        %v2614 = vpop.f32.mrb[0].mxu0
        %v2615 = vadd.f32 %v2466, %v2614
        %v2616 = vpop.f32.mrb[0].mxu0
        %v2617 = vpop.f32.mrb[0].mxu0
        %v2618 = vadd.f32 %v2466, %v2617
        %v2619 = vpop.f32.mrb[0].mxu0
        %2620 = vmatprep.mubr.bf16.mxu0 0
        %2621 = vmatmul.mubr.bf16.gmra.mrb[0].mxu0 %v2438
        %v2622 = vpop.f32.mrb[0].mxu0
        %v2623 = vadd.f32 %v2466, %v2622
        %v2624 = vpop.f32.mrb[0].mxu0
        %v2625 = vpop.f32.mrb[0].mxu0
        %v2626 = vadd.f32 %v2466, %v2625
        %v2627 = vpop.f32.mrb[0].mxu0
        %2628 = vmatprep.mubr.bf16.mxu0 0
        %2629 = vmatmul.mubr.bf16.gmra.mrb[0].mxu0 %v2439
        %v2630 = vpop.f32.mrb[0].mxu0
        %v2631 = vadd.f32 %v2466, %v2630
        %v2632 = vpop.f32.mrb[0].mxu0
        %v2633 = vpop.f32.mrb[0].mxu0
        %v2634 = vadd.f32 %v2466, %v2633
        %v2635 = vpop.f32.mrb[0].mxu0
        %2636 = vmatprep.mubr.bf16.mxu0 0
        %2637 = vmatmul.mubr.bf16.gmra.mrb[0].mxu0 %v2440
        %v2638 = vpop.f32.mrb[0].mxu0
        %v2639 = vadd.f32 %v2466, %v2638
        %v2640 = vpop.f32.mrb[0].mxu0
        %v2641 = vpop.f32.mrb[0].mxu0
        %v2642 = vadd.f32 %v2466, %v2641
        %v2643 = vpop.f32.mrb[0].mxu0
        %2644 = vmatprep.mubr.bf16.mxu0 0
        %2645 = vmatmul.mubr.bf16.gmra.mrb[0].mxu0 %v2441
        %v2646 = vpop.f32.mrb[0].mxu0
        %v2647 = vadd.f32 %v2466, %v2646
        %v2648 = vpop.f32.mrb[0].mxu0
        %v2649 = vpop.f32.mrb[0].mxu0
        %v2650 = vadd.f32 %v2466, %v2649
        %v2651 = vpop.f32.mrb[0].mxu0
        %2652 = vmatprep.mubr.bf16.mxu0 0
        %2653 = vmatmul.mubr.bf16.gmra.mrb[0].mxu0 %v2442
        %v2654 = vpop.f32.mrb[0].mxu0
        %v2655 = vadd.f32 %v2466, %v2654
        %v2656 = vpop.f32.mrb[0].mxu0
        %v2657 = vpop.f32.mrb[0].mxu0
        %v2658 = vadd.f32 %v2466, %v2657
        %v2659 = vpop.f32.mrb[0].mxu0
        %2660 = vmatprep.mubr.bf16.mxu0 0
        %2661 = vmatmul.mubr.bf16.gmra.mrb[0].mxu0 %v2443
        %v2662 = vpop.f32.mrb[0].mxu0
        %v2663 = vadd.f32 %v2466, %v2662
        %v2664 = vpop.f32.mrb[0].mxu0
        %v2665 = vpop.f32.mrb[0].mxu0
        %v2666 = vadd.f32 %v2466, %v2665
        %v2667 = vpop.f32.mrb[0].mxu0
        %2668 = vmatprep.mubr.bf16.mxu0 0
        %2669 = vmatmul.mubr.bf16.gmra.mrb[0].mxu0 %v2444
        %v2670 = vpop.f32.mrb[0].mxu0
        %v2671 = vadd.f32 %v2466, %v2670
        %v2672 = vpop.f32.mrb[0].mxu0
        %v2673 = vpop.f32.mrb[0].mxu0
        %v2674 = vadd.f32 %v2466, %v2673
        %v2675 = vpop.f32.mrb[0].mxu0
        %2676 = vdwg.mxu0
        %s2677 = scalar_lea.vmem [#allocation2], %s1510
        %v2678 = vld [vmem:[%s2677] sm:$0xff]
        %v2679 = vld [vmem:[%s2677 + $0x8] sm:$0xff]
        %v2680 = vld [vmem:[%s2677 + $0x10] sm:$0xff]
        %v2681 = vld [vmem:[%s2677 + $0x18] sm:$0xff]
        %v2682 = vld [vmem:[%s2677 + $0x20] sm:$0xff]
        %v2683 = vld [vmem:[%s2677 + $0x28] sm:$0xff]
        %v2684 = vld [vmem:[%s2677 + $0x30] sm:$0xff]
        %v2685 = vld [vmem:[%s2677 + $0x38] sm:$0xff]
        %v2686 = vld [vmem:[%s2677 + $0x40] sm:$0xff]
        %v2687 = vld [vmem:[%s2677 + $0x48] sm:$0xff]
        %v2688 = vld [vmem:[%s2677 + $0x50] sm:$0xff]
        %v2689 = vld [vmem:[%s2677 + $0x58] sm:$0xff]
        %v2690 = vld [vmem:[%s2677 + $0x60] sm:$0xff]
        %v2691 = vld [vmem:[%s2677 + $0x68] sm:$0xff]
        %v2692 = vld [vmem:[%s2677 + $0x70] sm:$0xff]
        %v2693 = vld [vmem:[%s2677 + $0x78] sm:$0xff]
        %v2694 = vld [vmem:[%s2677 + $0x80] sm:$0xff]
        %v2695 = vld [vmem:[%s2677 + $0x88] sm:$0xff]
        %v2696 = vld [vmem:[%s2677 + $0x90] sm:$0xff]
        %v2697 = vld [vmem:[%s2677 + $0x98] sm:$0xff]
        %v2698 = vld [vmem:[%s2677 + $0xa0] sm:$0xff]
        %v2699 = vld [vmem:[%s2677 + $0xa8] sm:$0xff]
        %v2700 = vld [vmem:[%s2677 + $0xb0] sm:$0xff]
        %v2701 = vld [vmem:[%s2677 + $0xb8] sm:$0xff]
        %v2702 = vld [vmem:[%s2677 + $0xc0] sm:$0xff]
        %v2703 = vld [vmem:[%s2677 + $0xc8] sm:$0xff]
        %v2704 = vld [vmem:[%s2677 + $0xd0] sm:$0xff]
        %v2705 = vld [vmem:[%s2677 + $0xd8] sm:$0xff]
        %v2706 = vld [vmem:[%s2677 + $0xe0] sm:$0xff]
        %v2707 = vld [vmem:[%s2677 + $0xe8] sm:$0xff]
        %v2708 = vld [vmem:[%s2677 + $0xf0] sm:$0xff]
        %v2709 = vld [vmem:[%s2677 + $0xf8] sm:$0xff]
        %v2710 = vadd.f32 %v2551, %v2678
        %v2711 = vadd.f32 %v2554, %v2679
        %v2712 = vadd.f32 %v2559, %v2680
        %v2713 = vadd.f32 %v2562, %v2681
        %v2714 = vadd.f32 %v2567, %v2682
        %v2715 = vadd.f32 %v2570, %v2683
        %v2716 = vadd.f32 %v2575, %v2684
        %v2717 = vadd.f32 %v2578, %v2685
        %v2718 = vadd.f32 %v2583, %v2686
        %v2719 = vadd.f32 %v2586, %v2687
        %v2720 = vadd.f32 %v2591, %v2688
        %v2721 = vadd.f32 %v2594, %v2689
        %v2722 = vadd.f32 %v2599, %v2690
        %v2723 = vadd.f32 %v2602, %v2691
        %v2724 = vadd.f32 %v2607, %v2692
        %v2725 = vadd.f32 %v2610, %v2693
        %v2726 = vadd.f32 %v2615, %v2694
        %v2727 = vadd.f32 %v2618, %v2695
        %v2728 = vadd.f32 %v2623, %v2696
        %v2729 = vadd.f32 %v2626, %v2697
        %v2730 = vadd.f32 %v2631, %v2698
        %v2731 = vadd.f32 %v2634, %v2699
        %v2732 = vadd.f32 %v2639, %v2700
        %v2733 = vadd.f32 %v2642, %v2701
        %v2734 = vadd.f32 %v2647, %v2702
        %v2735 = vadd.f32 %v2650, %v2703
        %v2736 = vadd.f32 %v2655, %v2704
        %v2737 = vadd.f32 %v2658, %v2705
        %v2738 = vadd.f32 %v2663, %v2706
        %v2739 = vadd.f32 %v2666, %v2707
        %v2740 = vadd.f32 %v2671, %v2708
        %v2741 = vadd.f32 %v2674, %v2709
        %2742 = vst [vmem:[%s381] sm:$0xff] %v2710
        %2743 = vst [vmem:[%s381 + $0x8] sm:$0xff] %v2711
        %2744 = vst [vmem:[%s381 + $0x10] sm:$0xff] %v2712
        %2745 = vst [vmem:[%s381 + $0x18] sm:$0xff] %v2713
        %2746 = vst [vmem:[%s381 + $0x20] sm:$0xff] %v2714
        %2747 = vst [vmem:[%s381 + $0x28] sm:$0xff] %v2715
        %2748 = vst [vmem:[%s381 + $0x30] sm:$0xff] %v2716
        %2749 = vst [vmem:[%s381 + $0x38] sm:$0xff] %v2717
        %2750 = vst [vmem:[%s381 + $0x40] sm:$0xff] %v2718
        %2751 = vst [vmem:[%s381 + $0x48] sm:$0xff] %v2719
        %2752 = vst [vmem:[%s381 + $0x50] sm:$0xff] %v2720
        %2753 = vst [vmem:[%s381 + $0x58] sm:$0xff] %v2721
        %2754 = vst [vmem:[%s381 + $0x60] sm:$0xff] %v2722
        %2755 = vst [vmem:[%s381 + $0x68] sm:$0xff] %v2723
        %2756 = vst [vmem:[%s381 + $0x70] sm:$0xff] %v2724
        %2757 = vst [vmem:[%s381 + $0x78] sm:$0xff] %v2725
        %2758 = vst [vmem:[%s381 + $0x80] sm:$0xff] %v2726
        %2759 = vst [vmem:[%s381 + $0x88] sm:$0xff] %v2727
        %2760 = vst [vmem:[%s381 + $0x90] sm:$0xff] %v2728
        %2761 = vst [vmem:[%s381 + $0x98] sm:$0xff] %v2729
        %2762 = vst [vmem:[%s381 + $0xa0] sm:$0xff] %v2730
        %2763 = vst [vmem:[%s381 + $0xa8] sm:$0xff] %v2731
        %2764 = vst [vmem:[%s381 + $0xb0] sm:$0xff] %v2732
        %2765 = vst [vmem:[%s381 + $0xb8] sm:$0xff] %v2733
        %2766 = vst [vmem:[%s381 + $0xc0] sm:$0xff] %v2734
        %2767 = vst [vmem:[%s381 + $0xc8] sm:$0xff] %v2735
        %2768 = vst [vmem:[%s381 + $0xd0] sm:$0xff] %v2736
        %2769 = vst [vmem:[%s381 + $0xd8] sm:$0xff] %v2737
        %2770 = vst [vmem:[%s381 + $0xe0] sm:$0xff] %v2738
        %2771 = vst [vmem:[%s381 + $0xe8] sm:$0xff] %v2739
        %2772 = vst [vmem:[%s381 + $0xf0] sm:$0xff] %v2740
        %2773 = vst [vmem:[%s381 + $0xf8] sm:$0xff] %v2741
        %s2774 = sand.u32 %s222, 1
        %s2775 = scalar_lea.sflag [#allocation8], %s2774
        %s2776 = sand.u32 %s222, 1
        %s2777 = smul.addr %s2776, 256
        %s2778 = scalar_lea.vmem [#allocation14], %s2777
        // Predicated region
        $region73: #{tpu_custom_call.1} parent=51 // pred_check
          %p2779 = pneg %p232
        $region74: #{tpu_custom_call.1} parent=51 // pred_check_branch
          %2781 = sbr.rel (%p2779) target = $region76
        $region75: #{tpu_custom_call.1} parent=51 // pred_region
          %s2782 = smul.u32 32, %s32
          %s2784 = ssub.s32 4096, 4096
          %2785 = vsyncadd %s2775, %s2784
          %s2786 = smul.addr %s31, 32
          %s2787 = sadd.s32 %s2782, %s2786
          %s2788 = smul.addr %s2787, 128
          %s2789 = scalar_lea.hbm %s8, %s2788
          %s2790 = sshll.u32 %s2778, 4
          %s2791 = int_to_ptr.vmem [resolvable:$true] %s2790
          %2796 = dma.vmem_to_hbm [thread:$0]  %s2791, 4096, %s2789, %s2775, 128, 128, 8
        $region76: #{tpu_custom_call.1} parent=51 // pred_fallthru
          _
      $region52: #{tpu_custom_call.1} parent=5 // pred_fallthru
        _
      %p2797 = scmp.le.s32.totalorder 2, %s22
      // Predicated region
      $region77: #{tpu_custom_call.1} parent=5 // pred_check
        %p2798 = pneg %p2797
      $region78: #{tpu_custom_call.1} parent=5 // pred_check_branch
        %2800 = sbr.rel (%p2798) target = $region80
      $region79: #{tpu_custom_call.1} parent=5 // pred_region
        %s2801 = ssub.s32 %s22, 2
        // Predicated region
        $region81: #{tpu_custom_call.1} parent=79 // pred_check
          %p2802 = pneg %p238
        $region82: #{tpu_custom_call.1} parent=79 // pred_check_branch
          %2804 = sbr.rel (%p2802) target = $region84
        $region83: #{tpu_custom_call.1} parent=79 // pred_region
          %s2805 = sand.u32 %s223, 1
          %s2806 = scalar_lea.sflag [#allocation8], %s2805
          %s2807 = sand.u32 %s223, 1
          %s2808 = smul.addr %s2807, 256
          %s2809 = scalar_lea.vmem [#allocation14], %s2808
          %2810 = dma.done %s2806, 4096
        $region84: #{tpu_custom_call.1} parent=79 // pred_fallthru
          _
      $region80: #{tpu_custom_call.1} parent=5 // pred_fallthru
        _
    $region6: #{tpu_custom_call.1} parent=1 // loop_footer
      %s26 = sadd.s32 1, %s22
    $region7: #{tpu_custom_call.1} parent=1 // loop_footer_branch
      %21 = sbr.rel target = $region3
    $region8: #{tpu_custom_call.1} parent=1 // loop_exit
      _
    %2811 = vsyncpa [#allocation7], 1
    %s2812 = scalar_lea.sflag [#allocation7], 1
    %2813 = vsyncpa %s2812, 1
    %2814 = vsyncpa [#allocation10], 1
    %2815 = vsyncpa [#allocation13], 1
    %2816 = vsyncpa [#allocation8], 1
    %s2817 = scalar_lea.sflag [#allocation8], 1
    %2818 = vsyncpa %s2817, 1

</llo_original>
